<compile_context>
chip_gen: v5e
topology: v5e:2x2
jax: 0.10.0
libtpu: 0.0.40
codegen_flags: <defaults>
</compile_context>

<pallas_src>
import functools

import jax
import jax.numpy as jnp
from jax.experimental import pallas as pl
from jax.experimental.pallas import tpu as pltpu

HIDDEN = 784          # fixed by the PyTorch module
LANE = 128


def _round_up(n, m):
    return (n + m - 1) // m * m


HP = _round_up(HIDDEN, LANE)   # 896: lane-aligned hidden width


def masse_kernel(ctx_ref,                      # scalar prefetch (drives the index_maps)
                 x_ref, w1_ref, b1_ref, w2_ref, b2_ref, w3_ref, b3_ref,
                 o_ref):
    del ctx_ref
    # Layer 1 (gates pre-folded into w1/b1) + ReLU.  bf16 MXU, f32 accumulate.
    h1 = jnp.dot(x_ref[...], w1_ref[...], preferred_element_type=jnp.float32)
    h1 = jnp.maximum(h1 + b1_ref[...], 0.0).astype(jnp.bfloat16)
    # Layer 2 (gates pre-folded into w2/b2) + ReLU.
    h2 = jnp.dot(h1, w2_ref[...], preferred_element_type=jnp.float32)
    h2 = jnp.maximum(h2 + b2_ref[...], 0.0).astype(jnp.bfloat16)
    # Output head (dropout = identity in eval mode).
    out = jnp.dot(h2, w3_ref[...], preferred_element_type=jnp.float32) + b3_ref[...]
    o_ref[...] = out.astype(o_ref.dtype)


@functools.partial(jax.jit, static_argnames=("tb",))
def _masse_call(context, x_pad, w1c, b1c, w2c, b2c, w3, b3, *, tb):
    b_pad, n_in = x_pad.shape
    nop = w3.shape[-1]

    def xmap(i, ctx):            # batch-streamed arrays
        return (i, 0)

    def per_ctx(i, ctx):         # context-selected, constant across batch tiles -> resident
        return (ctx[0], 0, 0)

    def shared(i, ctx):          # context-independent, resident
        return (0, 0)

    grid_spec = pltpu.PrefetchScalarGridSpec(
        num_scalar_prefetch=1,
        grid=(b_pad // tb,),
        in_specs=[
            pl.BlockSpec((tb, n_in), xmap),             # x tile (streams)
            pl.BlockSpec((None, n_in, HP), per_ctx),    # W1*g1[ctx]   (bf16, resident)
            pl.BlockSpec((None, 1, HP), per_ctx),       # b1*g1[ctx]   (f32)
            pl.BlockSpec((None, HP, HP), per_ctx),      # W2*g2[ctx]   (bf16, resident)
            pl.BlockSpec((None, 1, HP), per_ctx),       # b2*g2[ctx]   (f32)
            pl.BlockSpec((HP, nop), shared),            # W3           (bf16, resident)
            pl.BlockSpec((1, nop), shared),             # b3           (f32)
        ],
        out_specs=pl.BlockSpec((tb, nop), xmap),
    )
    return pl.pallas_call(
        masse_kernel,
        out_shape=jax.ShapeDtypeStruct((b_pad, nop), jnp.float32),
        grid_spec=grid_spec,
        compiler_params=pltpu.CompilerParams(
            dimension_semantics=("parallel",)),         # shard batch tiles across v7x TCs
    )(context, x_pad, w1c, b1c, w2c, b2c, w3, b3)


def masse_model(params, x, context=0):
    """Glue: pad batch to the tile size, run the fused kernel, slice padding off."""
    B, n_in = x.shape
    n_out = params["n_out"]
    tb = min(128, _round_up(max(B, 1), 8))
    b_pad = _round_up(B, tb)
    x_pad = jnp.zeros((b_pad, n_in), jnp.bfloat16).at[:B].set(x.astype(jnp.bfloat16))
    ctx = jnp.asarray([context], dtype=jnp.int32)
    out = _masse_call(ctx, x_pad,
                      params["w1c"], params["b1c"],
                      params["w2c"], params["b2c"],
                      params["w3"], params["b3"], tb=tb)
    return out[:B, :n_out]


def make_params(key, n_in, n_out, n_contexts, sparsity):
    """nn.Linear-style init U(-1/sqrt(fan_in), +1/sqrt(fan_in)); gates folded + lane-padded."""
    ks = jax.random.split(key, 8)

    def linear(kw, kb, fan_in, fan_out):
        bound = 1.0 / jnp.sqrt(jnp.float32(fan_in))
        w = jax.random.uniform(kw, (fan_in, fan_out), jnp.float32, -bound, bound)  # (in, out)
        b = jax.random.uniform(kb, (fan_out,), jnp.float32, -bound, bound)
        return w, b

    w1, b1 = linear(ks[0], ks[1], n_in, HIDDEN)
    w2, b2 = linear(ks[2], ks[3], HIDDEN, HIDDEN)
    w3, b3 = linear(ks[4], ks[5], HIDDEN, n_out)

    # Fixed (non-learned) binary per-context gate masks with exactly `sparsity` fraction zeroed.
    # TODO(synk): BranchGatingActFunc's exact mask-generation RNG is not reproducible here;
    # shape/semantics (fixed binary per-context mask, exact sparsity fraction) are preserved.
    n_keep = HIDDEN - int(round(sparsity * HIDDEN))

    def one_mask(k):
        return (jax.random.permutation(k, HIDDEN) < n_keep).astype(jnp.float32)

    gates1 = jax.vmap(one_mask)(jax.random.split(ks[6], n_contexts))
    gates2 = jax.vmap(one_mask)(jax.random.split(ks[7], n_contexts))

    # Fold binary gates into weights + biases (exact: relu(g*(xW+b)) == relu(x(W*g)+b*g)).
    # NOTE: only valid because learn_gates=False -> gates are constant buffers.
    w1c = jnp.einsum("ih,ch->cih", w1, gates1)              # (C, n_in, H)
    b1c = (b1[None, :] * gates1)[:, None, :]                # (C, 1, H)
    w2c = jnp.einsum("ih,ch->cih", w2, gates2)              # (C, H, H)
    b2c = (b2[None, :] * gates2)[:, None, :]                # (C, 1, H)

    # Lane-pad hidden 784 -> 896 and n_out -> 128; padded units carry zero weights so the
    # extra lanes compute exact zeros and are sliced off in the wrapper.
    nop = _round_up(n_out, LANE)
    w1c_p = jnp.zeros((n_contexts, n_in, HP), jnp.float32).at[:, :, :HIDDEN].set(w1c)
    b1c_p = jnp.zeros((n_contexts, 1, HP), jnp.float32).at[:, :, :HIDDEN].set(b1c)
    w2c_p = jnp.zeros((n_contexts, HP, HP), jnp.float32).at[:, :HIDDEN, :HIDDEN].set(w2c)
    b2c_p = jnp.zeros((n_contexts, 1, HP), jnp.float32).at[:, :, :HIDDEN].set(b2c)
    w3_p = jnp.zeros((HP, nop), jnp.float32).at[:HIDDEN, :n_out].set(w3)
    b3_p = jnp.zeros((1, nop), jnp.float32).at[0, :n_out].set(b3)

    return dict(
        # kernel-ready: gate-folded, lane-padded, bf16 weights / f32 biases
        w1c=w1c_p.astype(jnp.bfloat16), b1c=b1c_p,
        w2c=w2c_p.astype(jnp.bfloat16), b2c=b2c_p,
        w3=w3_p.astype(jnp.bfloat16), b3=b3_p,
        n_out=n_out,
        # raw (un-folded, un-padded) params for the pure-JAX reference
        raw=dict(w1=w1, b1=b1, w2=w2, b2=b2, w3=w3, b3=b3, gates1=gates1, gates2=gates2),
    )


def reference(params, x, context=0):
    """Pure-JAX forward matching the PyTorch module (weights quantized to bf16 like the kernel)."""
    raw = params["raw"]
    q = lambda a: a.astype(jnp.bfloat16).astype(jnp.float32)
    xb = q(x)
    g1 = raw["gates1"][context][None, :]
    g2 = raw["gates2"][context][None, :]
    h1 = jnp.maximum((xb @ q(raw["w1"]) + raw["b1"]) * g1, 0.0)
    h2 = jnp.maximum((h1 @ q(raw["w2"]) + raw["b2"]) * g2, 0.0)
    return h2 @ q(raw["w3"]) + raw["b3"]


if __name__ == "__main__":
    # model_configs: n_in=64, n_out=16, n_contexts=4, sparsity=0.5, dropout (eval => identity)
    B, n_in, n_out, n_contexts, sparsity = 8, 64, 16, 4, 0.5
    key = jax.random.PRNGKey(0)
    k_params, k_x = jax.random.split(key)
    params = make_params(k_params, n_in, n_out, n_contexts, sparsity)
    x = jax.random.normal(k_x, (B, n_in), jnp.float32)

    out = jax.block_until_ready(masse_model(params, x, context=1))
    ref = reference(params, x, context=1)
    assert out.shape == (B, n_out)
    assert jnp.allclose(out, ref, atol=2e-2, rtol=2e-2), (
        f"mismatch vs reference: max|d|={float(jnp.max(jnp.abs(out - ref))):.4e}")

    # Exercise the batch-tiled path (grid > 1; weights stay VMEM-resident across tiles).
    x_big = jax.random.normal(jax.random.PRNGKey(2), (256, n_in), jnp.float32)
    out_big = jax.block_until_ready(masse_model(params, x_big, context=3))
    ref_big = reference(params, x_big, context=3)
    assert jnp.allclose(out_big, ref_big, atol=2e-2, rtol=2e-2), "mismatch on batched path"

    print("KERNEL_OK")
</pallas_src>

<mosaic_0001>
module attributes {stable_mosaic.version = 11 : i64} {
  func.func @masse_kernel(%arg0: i32, %arg1: memref<1xi32, #tpu.memory_space<smem>>, %arg2: memref<8x64xbf16, #tpu.memory_space<vmem>>, %arg3: memref<1x64x896xbf16, #tpu.memory_space<vmem>>, %arg4: memref<1x1x896xf32, #tpu.memory_space<vmem>>, %arg5: memref<1x896x896xbf16, #tpu.memory_space<vmem>>, %arg6: memref<1x1x896xf32, #tpu.memory_space<vmem>>, %arg7: memref<896x128xbf16, #tpu.memory_space<vmem>>, %arg8: memref<1x128xf32, #tpu.memory_space<vmem>>, %arg9: memref<8x128xf32, #tpu.memory_space<vmem>>) attributes {dimension_semantics = [#tpu.dimension_semantics<parallel>], iteration_bounds = array<i64: 1>, scalar_prefetch = 1 : i64, scratch_operands = 0 : i64, tpu.core_type = #tpu.core_type<tc>, window_params = [{transform_indices = @transform_0, window_bounds = array<i64: 8, 64>}, {transform_indices = @transform_1, window_bounds = array<i64: 1, 64, 896>}, {transform_indices = @transform_2, window_bounds = array<i64: 1, 1, 896>}, {transform_indices = @transform_3, window_bounds = array<i64: 1, 896, 896>}, {transform_indices = @transform_4, window_bounds = array<i64: 1, 1, 896>}, {pipeline_mode = #tpu.pipeline_mode<synchronous>, transform_indices = @transform_5, window_bounds = array<i64: 896, 128>}, {pipeline_mode = #tpu.pipeline_mode<synchronous>, transform_indices = @transform_6, window_bounds = array<i64: 1, 128>}, {transform_indices = @transform_7, window_bounds = array<i64: 8, 128>}]} {
    %c0 = arith.constant 0 : index
    %c0_0 = arith.constant 0 : index
    %0 = vector.load %arg2[%c0, %c0_0] : memref<8x64xbf16, #tpu.memory_space<vmem>>, vector<8x64xbf16>
    %c0_1 = arith.constant 0 : index
    %c0_2 = arith.constant 0 : index
    %c0_3 = arith.constant 0 : index
    %1 = vector.load %arg3[%c0_1, %c0_2, %c0_3] : memref<1x64x896xbf16, #tpu.memory_space<vmem>>, vector<1x64x896xbf16>
    %2 = vector.shape_cast %1 : vector<1x64x896xbf16> to vector<64x896xbf16>
    %cst = arith.constant dense<0.000000e+00> : vector<8x896xf32>
    %3 = tpu.matmul %0, %2, %cst {dimension_numbers = #tpu.dot_dimension_numbers<[1], [0], [0], [1], [0, 0, 1, 1], [], []>} : vector<8x64xbf16>, vector<64x896xbf16>, vector<8x896xf32> -> vector<8x896xf32>
    %c0_4 = arith.constant 0 : index
    %c0_5 = arith.constant 0 : index
    %c0_6 = arith.constant 0 : index
    %4 = vector.load %arg4[%c0_4, %c0_5, %c0_6] : memref<1x1x896xf32, #tpu.memory_space<vmem>>, vector<1x1x896xf32>
    %5 = vector.shape_cast %4 : vector<1x1x896xf32> to vector<1x896xf32>
    %6 = vector.broadcast %5 : vector<1x896xf32> to vector<8x896xf32>
    %7 = arith.addf %3, %6 : vector<8x896xf32>
    %cst_7 = arith.constant 0.000000e+00 : f32
    %8 = vector.broadcast %cst_7 : f32 to vector<8x896xf32>
    %9 = arith.maximumf %7, %8 : vector<8x896xf32>
    %10 = arith.truncf %9 : vector<8x896xf32> to vector<8x896xbf16>
    %c0_8 = arith.constant 0 : index
    %c0_9 = arith.constant 0 : index
    %c0_10 = arith.constant 0 : index
    %11 = vector.load %arg5[%c0_8, %c0_9, %c0_10] : memref<1x896x896xbf16, #tpu.memory_space<vmem>>, vector<1x896x896xbf16>
    %12 = vector.shape_cast %11 : vector<1x896x896xbf16> to vector<896x896xbf16>
    %cst_11 = arith.constant dense<0.000000e+00> : vector<8x896xf32>
    %13 = tpu.matmul %10, %12, %cst_11 {dimension_numbers = #tpu.dot_dimension_numbers<[1], [0], [0], [1], [0, 0, 1, 1], [], []>} : vector<8x896xbf16>, vector<896x896xbf16>, vector<8x896xf32> -> vector<8x896xf32>
    %c0_12 = arith.constant 0 : index
    %c0_13 = arith.constant 0 : index
    %c0_14 = arith.constant 0 : index
    %14 = vector.load %arg6[%c0_12, %c0_13, %c0_14] : memref<1x1x896xf32, #tpu.memory_space<vmem>>, vector<1x1x896xf32>
    %15 = vector.shape_cast %14 : vector<1x1x896xf32> to vector<1x896xf32>
    %16 = vector.broadcast %15 : vector<1x896xf32> to vector<8x896xf32>
    %17 = arith.addf %13, %16 : vector<8x896xf32>
    %cst_15 = arith.constant 0.000000e+00 : f32
    %18 = vector.broadcast %cst_15 : f32 to vector<8x896xf32>
    %19 = arith.maximumf %17, %18 : vector<8x896xf32>
    %20 = arith.truncf %19 : vector<8x896xf32> to vector<8x896xbf16>
    %c0_16 = arith.constant 0 : index
    %c0_17 = arith.constant 0 : index
    %21 = vector.load %arg7[%c0_16, %c0_17] : memref<896x128xbf16, #tpu.memory_space<vmem>>, vector<896x128xbf16>
    %cst_18 = arith.constant dense<0.000000e+00> : vector<8x128xf32>
    %22 = tpu.matmul %20, %21, %cst_18 {dimension_numbers = #tpu.dot_dimension_numbers<[1], [0], [0], [1], [0, 0, 1, 1], [], []>} : vector<8x896xbf16>, vector<896x128xbf16>, vector<8x128xf32> -> vector<8x128xf32>
    %c0_19 = arith.constant 0 : index
    %c0_20 = arith.constant 0 : index
    %23 = vector.load %arg8[%c0_19, %c0_20] : memref<1x128xf32, #tpu.memory_space<vmem>>, vector<1x128xf32>
    %24 = vector.broadcast %23 : vector<1x128xf32> to vector<8x128xf32>
    %25 = arith.addf %22, %24 : vector<8x128xf32>
    %c0_21 = arith.constant 0 : index
    %c0_22 = arith.constant 0 : index
    %26 = vector.load %arg9[%c0_21, %c0_22] : memref<8x128xf32, #tpu.memory_space<vmem>>, vector<8x128xf32>
    tpu.vector_store %arg9[%c0_21, %c0_22], %25 {strides = array<i32>} : memref<8x128xf32, #tpu.memory_space<vmem>>, vector<8x128xf32>,
    return
  }
  func.func @transform_0(%arg0: i32, %arg1: memref<1xi32, #tpu.memory_space<smem>>) -> (i32, i32) {
    %c0_i32 = arith.constant 0 : i32
    %c0_i32_0 = arith.constant 0 : i32
    return %arg0, %c0_i32 : i32, i32
  }
  func.func @transform_1(%arg0: i32, %arg1: memref<1xi32, #tpu.memory_space<smem>>) -> (i32, i32, i32) {
    %c0 = arith.constant 0 : index
    %0 = memref.load %arg1[%c0] : memref<1xi32, #tpu.memory_space<smem>>
    %c0_i32 = arith.constant 0 : i32
    %c0_i32_0 = arith.constant 0 : i32
    %c0_i32_1 = arith.constant 0 : i32
    return %0, %c0_i32, %c0_i32_0 : i32, i32, i32
  }
  func.func @transform_2(%arg0: i32, %arg1: memref<1xi32, #tpu.memory_space<smem>>) -> (i32, i32, i32) {
    %c0 = arith.constant 0 : index
    %0 = memref.load %arg1[%c0] : memref<1xi32, #tpu.memory_space<smem>>
    %c0_i32 = arith.constant 0 : i32
    %c0_i32_0 = arith.constant 0 : i32
    %c0_i32_1 = arith.constant 0 : i32
    return %0, %c0_i32, %c0_i32_0 : i32, i32, i32
  }
  func.func @transform_3(%arg0: i32, %arg1: memref<1xi32, #tpu.memory_space<smem>>) -> (i32, i32, i32) {
    %c0 = arith.constant 0 : index
    %0 = memref.load %arg1[%c0] : memref<1xi32, #tpu.memory_space<smem>>
    %c0_i32 = arith.constant 0 : i32
    %c0_i32_0 = arith.constant 0 : i32
    %c0_i32_1 = arith.constant 0 : i32
    return %0, %c0_i32, %c0_i32_0 : i32, i32, i32
  }
  func.func @transform_4(%arg0: i32, %arg1: memref<1xi32, #tpu.memory_space<smem>>) -> (i32, i32, i32) {
    %c0 = arith.constant 0 : index
    %0 = memref.load %arg1[%c0] : memref<1xi32, #tpu.memory_space<smem>>
    %c0_i32 = arith.constant 0 : i32
    %c0_i32_0 = arith.constant 0 : i32
    %c0_i32_1 = arith.constant 0 : i32
    return %0, %c0_i32, %c0_i32_0 : i32, i32, i32
  }
  func.func @transform_5(%arg0: i32, %arg1: memref<1xi32, #tpu.memory_space<smem>>) -> (i32, i32) {
    %c0_i32 = arith.constant 0 : i32
    %c0_i32_0 = arith.constant 0 : i32
    %c0_i32_1 = arith.constant 0 : i32
    return %c0_i32, %c0_i32_0 : i32, i32
  }
  func.func @transform_6(%arg0: i32, %arg1: memref<1xi32, #tpu.memory_space<smem>>) -> (i32, i32) {
    %c0_i32 = arith.constant 0 : i32
    %c0_i32_0 = arith.constant 0 : i32
    %c0_i32_1 = arith.constant 0 : i32
    return %c0_i32, %c0_i32_0 : i32, i32
  }
  func.func @transform_7(%arg0: i32, %arg1: memref<1xi32, #tpu.memory_space<smem>>) -> (i32, i32) {
    %c0_i32 = arith.constant 0 : i32
    %c0_i32_0 = arith.constant 0 : i32
    return %arg0, %c0_i32 : i32, i32
  }
}

</mosaic_0001>

<llo_original>
// kernel: _masse_call.1
$region0: #{_masse_call.1}
  #allocation0 [shape = 'u32[]', space=smem, size = 0x4, offset = 0x4, fixed_abs, tag = 'smem constant byte address 0x4 - core index']
  #allocation1 [shape = 'u32[72,128]{1,0:T(1,128)}', space=vmem, size = 0x9000, scoped, tag = 'internal scratch']
  #allocation2 [shape = 's32[1]{0}', space=sflag, size = 0x4, scoped, tag = 'scoped memory for _masse_call.1']
  #allocation3 [shape = 's32[1]{0:T(128)S(6)}', space=smem, size = 0x200, scoped, tag = 'prefetched SMEM operand 0']
  %s0 = inlined_call_operand.<no memory space> [shape: s32[1], index: 0, kind: input, shape index: {}]
  %s1 = inlined_call_operand.hbm [shape: bf16[8,64], index: 1, kind: input, shape index: {}]
  %s2 = inlined_call_operand.hbm [shape: bf16[4,64,896], index: 2, kind: input, shape index: {}]
  %s3 = inlined_call_operand.hbm [shape: f32[4,1,896], index: 3, kind: input, shape index: {}]
  %s4 = inlined_call_operand.hbm [shape: bf16[4,896,896], index: 4, kind: input, shape index: {}]
  %s5 = inlined_call_operand.hbm [shape: f32[4,1,896], index: 5, kind: input, shape index: {}]
  %s6 = inlined_call_operand.hbm [shape: bf16[896,128], index: 6, kind: input, shape index: {}]
  %s7 = inlined_call_operand.hbm [shape: f32[1,128], index: 7, kind: input, shape index: {}]
  %s8 = inlined_call_operand.hbm [shape: f32[8,128], index: 8, kind: output, shape index: {}]
  %s9 = sld [smem:[#allocation0]]
  $region66: #{_masse_call.1} parent=0
    _
  %s11 = ssub.s32 1, %s9
  %s12 = scalar_select 0, %s11, %s9
  %13 = sst [smem:[#allocation3]] %s0
  $region1: #{_masse_call.1} parent=0
    #allocation4 [shape = 'u8[2048]{0}', space=vmem, size = 0x800, scoped, tag = 'input window, operand 1, single buffered']
    #allocation5 [shape = 's32[1]{0}', space=sflag, size = 0x4, scoped, tag = 'scoped memory for _masse_call.1']
    #allocation6 [shape = 's32[1]{0}', space=sflag, size = 0x4, scoped, tag = 'scoped memory for _masse_call.1']
    #allocation7 [shape = 'u8[114688]{0}', space=vmem, size = 0x1c000, scoped, tag = 'input window, operand 2, single buffered']
    #allocation8 [shape = 's32[1]{0}', space=sflag, size = 0x4, scoped, tag = 'scoped memory for _masse_call.1']
    #allocation9 [shape = 'u8[3584]{0}', space=vmem, size = 0x1000, scoped, tag = 'input window, operand 3, single buffered']
    #allocation10 [shape = 'u8[1605632]{0}', space=vmem, size = 0x188000, scoped, tag = 'input window, operand 4, single buffered']
    #allocation11 [shape = 's32[1]{0}', space=sflag, size = 0x4, scoped, tag = 'scoped memory for _masse_call.1']
    #allocation12 [shape = 'u8[3584]{0}', space=vmem, size = 0x1000, scoped, tag = 'input window, operand 5, single buffered']
    #allocation13 [shape = 'u8[229376]{0}', space=vmem, size = 0x38000, scoped, tag = 'input window, operand 6, single buffered']
    #allocation14 [shape = 's32[1]{0}', space=sflag, size = 0x4, scoped, tag = 'scoped memory for _masse_call.1']
    #allocation15 [shape = 'u8[512]{0}', space=vmem, size = 0x400, scoped, tag = 'input window, operand 7, single buffered']
    #allocation16 [shape = 'u8[4096]{0}', space=vmem, size = 0x1000, scoped, tag = 'output window, operand 0, single buffered']
    %14 = vsyncpa [#allocation5], 0
    %15 = vsyncpa [#allocation8], 0
    %16 = vsyncpa [#allocation11], 0
    %17 = vsyncpa [#allocation14], 0
    %18 = vsyncpa [#allocation6], 0
    // Predicated region
    $region2: #{_masse_call.1} parent=1 // pred_check
      _
    $region3: #{_masse_call.1} parent=1 // pred_check_branch
      %20 = sbr.rel (0) target = $region5
    $region4: #{_masse_call.1} parent=1 // pred_region
      %22 = vsyncadd [#allocation5], 0
      %s24 = sshll.u32 %s1, 4
      %s25 = int_to_ptr.hbm [resolvable:$true] %s24
      %s26 = sshll.u32 [#allocation4], 4
      %s27 = int_to_ptr.vmem [resolvable:$true] %s26
      %29 = dma.hbm_to_vmem [thread:$0]  %s25, 64, %s27, [#allocation5]
    $region5: #{_masse_call.1} parent=1 // pred_fallthru
      _
    // Predicated region
    $region6: #{_masse_call.1} parent=1 // pred_check
      _
    $region7: #{_masse_call.1} parent=1 // pred_check_branch
      %31 = sbr.rel (0) target = $region9
    $region8: #{_masse_call.1} parent=1 // pred_region
      %s32 = sld [smem:[#allocation3]]
      %34 = vsyncadd [#allocation8], 0
      %s35 = smul.addr %s32, 56
      %s36 = smul.addr %s35, 4
      %s37 = scalar_lea.hbm %s2, %s36
      %s38 = sshll.u32 %s37, 4
      %s39 = int_to_ptr.hbm [resolvable:$true] %s38
      %s40 = sshll.u32 [#allocation7], 4
      %s41 = int_to_ptr.vmem [resolvable:$true] %s40
      %46 = dma.hbm_to_vmem [thread:$0]  %s39, 3584, %s41, [#allocation8], 448, 448, 28
    $region9: #{_masse_call.1} parent=1 // pred_fallthru
      _
    // Predicated region
    $region10: #{_masse_call.1} parent=1 // pred_check
      _
    $region11: #{_masse_call.1} parent=1 // pred_check_branch
      %48 = sbr.rel (0) target = $region13
    $region12: #{_masse_call.1} parent=1 // pred_region
      %s49 = sld [smem:[#allocation3]]
      %51 = vsyncadd [#allocation8], 0
      %s52 = smul.addr %s49, 7
      %s53 = scalar_lea.hbm %s3, %s52
      %s55 = sshll.u32 %s53, 4
      %s56 = int_to_ptr.hbm [resolvable:$true] %s55
      %s57 = sshll.u32 [#allocation9], 4
      %s58 = int_to_ptr.vmem [resolvable:$true] %s57
      %60 = dma.hbm_to_vmem [thread:$0]  %s56, 112, %s58, [#allocation8]
    $region13: #{_masse_call.1} parent=1 // pred_fallthru
      _
    // Predicated region
    $region14: #{_masse_call.1} parent=1 // pred_check
      _
    $region15: #{_masse_call.1} parent=1 // pred_check_branch
      %62 = sbr.rel (0) target = $region17
    $region16: #{_masse_call.1} parent=1 // pred_region
      %s63 = sld [smem:[#allocation3]]
      %65 = vsyncadd [#allocation11], 0
      %s66 = smul.addr %s63, 784
      %s67 = smul.addr %s66, 4
      %s68 = scalar_lea.hbm %s4, %s67
      %s69 = sshll.u32 %s68, 4
      %s70 = int_to_ptr.hbm [resolvable:$true] %s69
      %s71 = sshll.u32 [#allocation10], 4
      %s72 = int_to_ptr.vmem [resolvable:$true] %s71
      %77 = dma.hbm_to_vmem [thread:$0]  %s70, 50176, %s72, [#allocation11], 448, 448, 28
    $region17: #{_masse_call.1} parent=1 // pred_fallthru
      _
    // Predicated region
    $region18: #{_masse_call.1} parent=1 // pred_check
      _
    $region19: #{_masse_call.1} parent=1 // pred_check_branch
      %79 = sbr.rel (0) target = $region21
    $region20: #{_masse_call.1} parent=1 // pred_region
      %s80 = sld [smem:[#allocation3]]
      %82 = vsyncadd [#allocation11], 0
      %s83 = smul.addr %s80, 7
      %s84 = scalar_lea.hbm %s5, %s83
      %s86 = sshll.u32 %s84, 4
      %s87 = int_to_ptr.hbm [resolvable:$true] %s86
      %s88 = sshll.u32 [#allocation12], 4
      %s89 = int_to_ptr.vmem [resolvable:$true] %s88
      %91 = dma.hbm_to_vmem [thread:$0]  %s87, 112, %s89, [#allocation11]
    $region21: #{_masse_call.1} parent=1 // pred_fallthru
      _
    // Predicated region
    $region22: #{_masse_call.1} parent=1 // pred_check
      _
    $region23: #{_masse_call.1} parent=1 // pred_check_branch
      %93 = sbr.rel (0) target = $region25
    $region24: #{_masse_call.1} parent=1 // pred_region
      %95 = vsyncadd [#allocation14], 0
      %s96 = sshll.u32 %s6, 4
      %s97 = int_to_ptr.hbm [resolvable:$true] %s96
      %s98 = sshll.u32 [#allocation13], 4
      %s99 = int_to_ptr.vmem [resolvable:$true] %s98
      %104 = dma.hbm_to_vmem [thread:$0]  %s97, 7168, %s99, [#allocation14], 64, 64, 4
    $region25: #{_masse_call.1} parent=1 // pred_fallthru
      _
    // Predicated region
    $region26: #{_masse_call.1} parent=1 // pred_check
      _
    $region27: #{_masse_call.1} parent=1 // pred_check_branch
      %106 = sbr.rel (0) target = $region29
    $region28: #{_masse_call.1} parent=1 // pred_region
      %108 = vsyncadd [#allocation14], 0
      %s110 = sshll.u32 %s7, 4
      %s111 = int_to_ptr.hbm [resolvable:$true] %s110
      %s112 = sshll.u32 [#allocation15], 4
      %s113 = int_to_ptr.vmem [resolvable:$true] %s112
      %115 = dma.hbm_to_vmem [thread:$0]  %s111, 16, %s113, [#allocation14]
    $region29: #{_masse_call.1} parent=1 // pred_fallthru
      _
    // Predicated region
    $region30: #{_masse_call.1} parent=1 // pred_check
      _
    $region31: #{_masse_call.1} parent=1 // pred_check_branch
      %117 = sbr.rel (0) target = $region33
    $region32: #{_masse_call.1} parent=1 // pred_region
      %119 = dma.done [#allocation5], 64
    $region33: #{_masse_call.1} parent=1 // pred_fallthru
      _
    // Predicated region
    $region34: #{_masse_call.1} parent=1 // pred_check
      _
    $region35: #{_masse_call.1} parent=1 // pred_check_branch
      %121 = sbr.rel (0) target = $region37
    $region36: #{_masse_call.1} parent=1 // pred_region
      %123 = dma.done [#allocation8], 3584
    $region37: #{_masse_call.1} parent=1 // pred_fallthru
      _
    // Predicated region
    $region38: #{_masse_call.1} parent=1 // pred_check
      _
    $region39: #{_masse_call.1} parent=1 // pred_check_branch
      %125 = sbr.rel (0) target = $region41
    $region40: #{_masse_call.1} parent=1 // pred_region
      %127 = dma.done [#allocation8], 112
    $region41: #{_masse_call.1} parent=1 // pred_fallthru
      _
    // Predicated region
    $region42: #{_masse_call.1} parent=1 // pred_check
      _
    $region43: #{_masse_call.1} parent=1 // pred_check_branch
      %129 = sbr.rel (0) target = $region45
    $region44: #{_masse_call.1} parent=1 // pred_region
      %131 = dma.done [#allocation11], 50176
    $region45: #{_masse_call.1} parent=1 // pred_fallthru
      _
    // Predicated region
    $region46: #{_masse_call.1} parent=1 // pred_check
      _
    $region47: #{_masse_call.1} parent=1 // pred_check_branch
      %133 = sbr.rel (0) target = $region49
    $region48: #{_masse_call.1} parent=1 // pred_region
      %135 = dma.done [#allocation11], 112
    $region49: #{_masse_call.1} parent=1 // pred_fallthru
      _
    // Predicated region
    $region50: #{_masse_call.1} parent=1 // pred_check
      _
    $region51: #{_masse_call.1} parent=1 // pred_check_branch
      %137 = sbr.rel (0) target = $region53
    $region52: #{_masse_call.1} parent=1 // pred_region
      %139 = dma.done [#allocation14], 7168
    $region53: #{_masse_call.1} parent=1 // pred_fallthru
      _
    // Predicated region
    $region54: #{_masse_call.1} parent=1 // pred_check
      _
    $region55: #{_masse_call.1} parent=1 // pred_check_branch
      %141 = sbr.rel (0) target = $region57
    $region56: #{_masse_call.1} parent=1 // pred_region
      %143 = dma.done [#allocation14], 16
    $region57: #{_masse_call.1} parent=1 // pred_fallthru
      _
    %s144 = sld [smem:[#allocation3]]
    %s145 = sld [smem:[#allocation3]]
    %s146 = sld [smem:[#allocation3]]
    %s147 = sld [smem:[#allocation3]]
    %v149 = vld [vmem:[#allocation4] sm:$0xf]
    %v150 = vld [vmem:[#allocation7] sm:$0xff]
    %v151 = vld [vmem:[#allocation7 + $0x8] sm:$0xff]
    %v152 = vld [vmem:[#allocation7 + $0x10] sm:$0xff]
    %v153 = vld [vmem:[#allocation7 + $0x18] sm:$0xf]
    %v154 = vld [vmem:[#allocation7 + $0x1c] sm:$0xff]
    %v155 = vld [vmem:[#allocation7 + $0x24] sm:$0xff]
    %v156 = vld [vmem:[#allocation7 + $0x2c] sm:$0xff]
    %v157 = vld [vmem:[#allocation7 + $0x34] sm:$0xf]
    %v158 = vld [vmem:[#allocation7 + $0x38] sm:$0xff]
    %v159 = vld [vmem:[#allocation7 + $0x40] sm:$0xff]
    %v160 = vld [vmem:[#allocation7 + $0x48] sm:$0xff]
    %v161 = vld [vmem:[#allocation7 + $0x50] sm:$0xf]
    %v162 = vld [vmem:[#allocation7 + $0x54] sm:$0xff]
    %v163 = vld [vmem:[#allocation7 + $0x5c] sm:$0xff]
    %v164 = vld [vmem:[#allocation7 + $0x64] sm:$0xff]
    %v165 = vld [vmem:[#allocation7 + $0x6c] sm:$0xf]
    %v166 = vld [vmem:[#allocation7 + $0x70] sm:$0xff]
    %v167 = vld [vmem:[#allocation7 + $0x78] sm:$0xff]
    %v168 = vld [vmem:[#allocation7 + $0x80] sm:$0xff]
    %v169 = vld [vmem:[#allocation7 + $0x88] sm:$0xf]
    %v170 = vld [vmem:[#allocation7 + $0x8c] sm:$0xff]
    %v171 = vld [vmem:[#allocation7 + $0x94] sm:$0xff]
    %v172 = vld [vmem:[#allocation7 + $0x9c] sm:$0xff]
    %v173 = vld [vmem:[#allocation7 + $0xa4] sm:$0xf]
    %v174 = vld [vmem:[#allocation7 + $0xa8] sm:$0xff]
    %v175 = vld [vmem:[#allocation7 + $0xb0] sm:$0xff]
    %v176 = vld [vmem:[#allocation7 + $0xb8] sm:$0xff]
    %v177 = vld [vmem:[#allocation7 + $0xc0] sm:$0xf]
    %v178 = vld [vmem:[#allocation7 + $0xc4] sm:$0xff]
    %v179 = vld [vmem:[#allocation7 + $0xcc] sm:$0xff]
    %v180 = vld [vmem:[#allocation7 + $0xd4] sm:$0xff]
    %v181 = vld [vmem:[#allocation7 + $0xdc] sm:$0xf]
    %v182 = vld [vmem:[#allocation9] sm:$0xff]
    %v184 = vperm.slane %v182, 0
    %v185 = vperm.slane %v182, 1
    %v186 = vperm.slane %v182, 2
    %v187 = vperm.slane %v182, 3
    %v188 = vperm.slane %v182, 4
    %v189 = vperm.slane %v182, 5
    %v190 = vperm.slane %v182, 6
    %v230 = vunpack.c.l.b16 %v150
    %v231 = vunpack.c.h.b16 %v150
    %v232 = vunpack.c.l.b16 %v151
    %v233 = vunpack.c.h.b16 %v151
    %v234 = vunpack.c.l.b16 %v152
    %v235 = vunpack.c.h.b16 %v152
    %v236 = vunpack.c.l.b16 %v153
    %v237 = vunpack.c.l.b16 %v154
    %v238 = vunpack.c.h.b16 %v154
    %v239 = vunpack.c.l.b16 %v155
    %v240 = vunpack.c.h.b16 %v155
    %v241 = vunpack.c.l.b16 %v156
    %v242 = vunpack.c.h.b16 %v156
    %v243 = vunpack.c.l.b16 %v157
    %v244 = vunpack.c.l.b16 %v158
    %v245 = vunpack.c.h.b16 %v158
    %v246 = vunpack.c.l.b16 %v159
    %v247 = vunpack.c.h.b16 %v159
    %v248 = vunpack.c.l.b16 %v160
    %v249 = vunpack.c.h.b16 %v160
    %v250 = vunpack.c.l.b16 %v161
    %v251 = vunpack.c.l.b16 %v162
    %v252 = vunpack.c.h.b16 %v162
    %v253 = vunpack.c.l.b16 %v163
    %v254 = vunpack.c.h.b16 %v163
    %v255 = vunpack.c.l.b16 %v164
    %v256 = vunpack.c.h.b16 %v164
    %v257 = vunpack.c.l.b16 %v165
    %v258 = vunpack.c.l.b16 %v166
    %v259 = vunpack.c.h.b16 %v166
    %v260 = vunpack.c.l.b16 %v167
    %v261 = vunpack.c.h.b16 %v167
    %v262 = vunpack.c.l.b16 %v168
    %v263 = vunpack.c.h.b16 %v168
    %v264 = vunpack.c.l.b16 %v169
    %v265 = vunpack.c.l.b16 %v170
    %v266 = vunpack.c.h.b16 %v170
    %v267 = vunpack.c.l.b16 %v171
    %v268 = vunpack.c.h.b16 %v171
    %v269 = vunpack.c.l.b16 %v172
    %v270 = vunpack.c.h.b16 %v172
    %v271 = vunpack.c.l.b16 %v173
    %v272 = vunpack.c.l.b16 %v174
    %v273 = vunpack.c.h.b16 %v174
    %v274 = vunpack.c.l.b16 %v175
    %v275 = vunpack.c.h.b16 %v175
    %v276 = vunpack.c.l.b16 %v176
    %v277 = vunpack.c.h.b16 %v176
    %v278 = vunpack.c.l.b16 %v177
    %v279 = vunpack.c.l.b16 %v178
    %v280 = vunpack.c.h.b16 %v178
    %v281 = vunpack.c.l.b16 %v179
    %v282 = vunpack.c.h.b16 %v179
    %v283 = vunpack.c.l.b16 %v180
    %v284 = vunpack.c.h.b16 %v180
    %v285 = vunpack.c.l.b16 %v181
    %v286 = vpack.c.b16 %v237, %v230
    %v287 = vpack.c.b16 %v238, %v231
    %v288 = vpack.c.b16 %v239, %v232
    %v289 = vpack.c.b16 %v240, %v233
    %v290 = vpack.c.b16 %v241, %v234
    %v291 = vpack.c.b16 %v242, %v235
    %v292 = vpack.c.b16 %v243, %v236
    %v293 = vpack.c.b16 %v251, %v244
    %v294 = vpack.c.b16 %v252, %v245
    %v295 = vpack.c.b16 %v253, %v246
    %v296 = vpack.c.b16 %v254, %v247
    %v297 = vpack.c.b16 %v255, %v248
    %v298 = vpack.c.b16 %v256, %v249
    %v299 = vpack.c.b16 %v257, %v250
    %v300 = vpack.c.b16 %v265, %v258
    %v301 = vpack.c.b16 %v266, %v259
    %v302 = vpack.c.b16 %v267, %v260
    %v303 = vpack.c.b16 %v268, %v261
    %v304 = vpack.c.b16 %v269, %v262
    %v305 = vpack.c.b16 %v270, %v263
    %v306 = vpack.c.b16 %v271, %v264
    %v307 = vpack.c.b16 %v279, %v272
    %v308 = vpack.c.b16 %v280, %v273
    %v309 = vpack.c.b16 %v281, %v274
    %v310 = vpack.c.b16 %v282, %v275
    %v311 = vpack.c.b16 %v283, %v276
    %v312 = vpack.c.b16 %v284, %v277
    %v313 = vpack.c.b16 %v285, %v278
    %vm342 = vcmask 523264
    %v344 = vsel %vm342, %v149, 0
    %346 = vmatpush.bf16.msra.mxu0 0
    %347 = vmatpush.bf16.msra.mxu0 0
    %348 = vmatpush.bf16.msra.mxu0 0
    %349 = vmatpush.bf16.msra.mxu0 0
    %350 = vmatpush.bf16.msra.mxu0 %v307
    %351 = vmatpush.bf16.msra.mxu0 %v300
    %352 = vmatpush.bf16.msra.mxu0 %v293
    %353 = vmatpush.bf16.msra.mxu0 %v286
    %354 = vmatmul.bf16.gmra.mxu0 %v344
    %v355 = vpop.f32.mrf.mxu0
    %v356 = vadd.f32 %v184, %v355
    %v357 = vpop.f32.mrf.mxu0
    %358 = vdwg.mxu0
    %359 = vmatpush.bf16.msra.mxu0 0
    %360 = vmatpush.bf16.msra.mxu0 0
    %361 = vmatpush.bf16.msra.mxu0 0
    %362 = vmatpush.bf16.msra.mxu0 0
    %363 = vmatpush.bf16.msra.mxu0 %v308
    %364 = vmatpush.bf16.msra.mxu0 %v301
    %365 = vmatpush.bf16.msra.mxu0 %v294
    %366 = vmatpush.bf16.msra.mxu0 %v287
    %367 = vmatmul.bf16.gmra.mxu0 %v344
    %v368 = vpop.f32.mrf.mxu0
    %v369 = vadd.f32 %v185, %v368
    %v370 = vpop.f32.mrf.mxu0
    %371 = vdwg.mxu0
    %372 = vmatpush.bf16.msra.mxu0 0
    %373 = vmatpush.bf16.msra.mxu0 0
    %374 = vmatpush.bf16.msra.mxu0 0
    %375 = vmatpush.bf16.msra.mxu0 0
    %376 = vmatpush.bf16.msra.mxu0 %v309
    %377 = vmatpush.bf16.msra.mxu0 %v302
    %378 = vmatpush.bf16.msra.mxu0 %v295
    %379 = vmatpush.bf16.msra.mxu0 %v288
    %380 = vmatmul.bf16.gmra.mxu0 %v344
    %v381 = vpop.f32.mrf.mxu0
    %v382 = vadd.f32 %v186, %v381
    %v383 = vpop.f32.mrf.mxu0
    %384 = vdwg.mxu0
    %385 = vmatpush.bf16.msra.mxu0 0
    %386 = vmatpush.bf16.msra.mxu0 0
    %387 = vmatpush.bf16.msra.mxu0 0
    %388 = vmatpush.bf16.msra.mxu0 0
    %389 = vmatpush.bf16.msra.mxu0 %v310
    %390 = vmatpush.bf16.msra.mxu0 %v303
    %391 = vmatpush.bf16.msra.mxu0 %v296
    %392 = vmatpush.bf16.msra.mxu0 %v289
    %393 = vmatmul.bf16.gmra.mxu0 %v344
    %v394 = vpop.f32.mrf.mxu0
    %v395 = vadd.f32 %v187, %v394
    %v396 = vpop.f32.mrf.mxu0
    %397 = vdwg.mxu0
    %398 = vmatpush.bf16.msra.mxu0 0
    %399 = vmatpush.bf16.msra.mxu0 0
    %400 = vmatpush.bf16.msra.mxu0 0
    %401 = vmatpush.bf16.msra.mxu0 0
    %402 = vmatpush.bf16.msra.mxu0 %v311
    %403 = vmatpush.bf16.msra.mxu0 %v304
    %404 = vmatpush.bf16.msra.mxu0 %v297
    %405 = vmatpush.bf16.msra.mxu0 %v290
    %406 = vmatmul.bf16.gmra.mxu0 %v344
    %v407 = vpop.f32.mrf.mxu0
    %v408 = vadd.f32 %v188, %v407
    %v409 = vpop.f32.mrf.mxu0
    %410 = vdwg.mxu0
    %411 = vmatpush.bf16.msra.mxu0 0
    %412 = vmatpush.bf16.msra.mxu0 0
    %413 = vmatpush.bf16.msra.mxu0 0
    %414 = vmatpush.bf16.msra.mxu0 0
    %415 = vmatpush.bf16.msra.mxu0 %v312
    %416 = vmatpush.bf16.msra.mxu0 %v305
    %417 = vmatpush.bf16.msra.mxu0 %v298
    %418 = vmatpush.bf16.msra.mxu0 %v291
    %419 = vmatmul.bf16.gmra.mxu0 %v344
    %v420 = vpop.f32.mrf.mxu0
    %v421 = vadd.f32 %v189, %v420
    %v422 = vpop.f32.mrf.mxu0
    %423 = vdwg.mxu0
    %424 = vmatpush.bf16.msra.mxu0 0
    %425 = vmatpush.bf16.msra.mxu0 0
    %426 = vmatpush.bf16.msra.mxu0 0
    %427 = vmatpush.bf16.msra.mxu0 0
    %428 = vmatpush.bf16.msra.mxu0 %v313
    %429 = vmatpush.bf16.msra.mxu0 %v306
    %430 = vmatpush.bf16.msra.mxu0 %v299
    %431 = vmatpush.bf16.msra.mxu0 %v292
    %432 = vmatmul.bf16.gmra.mxu0 %v344
    %v433 = vpop.f32.mrf.mxu0
    %v434 = vadd.f32 %v190, %v433
    %v435 = vpop.f32.mrf.mxu0
    %436 = vdwg.mxu0
    %v437 = vmax.f32 %v356, 0.0
    %v438 = vmax.f32 %v369, 0.0
    %v439 = vmax.f32 %v382, 0.0
    %v440 = vmax.f32 %v395, 0.0
    %v441 = vmax.f32 %v408, 0.0
    %v442 = vmax.f32 %v421, 0.0
    %v443 = vmax.f32 %v434, 0.0
    %v444 = vpack.c.bf16 %v437, %v437
    %v445 = vpack.c.bf16 %v438, %v438
    %v446 = vpack.c.bf16 %v439, %v439
    %v447 = vpack.c.bf16 %v440, %v440
    %v448 = vpack.c.bf16 %v441, %v441
    %v449 = vpack.c.bf16 %v442, %v442
    %v450 = vpack.c.bf16 %v443, %v443
    %v451 = vld [vmem:[#allocation10] sm:$0xff]
    %v452 = vld [vmem:[#allocation10 + $0x8] sm:$0xff]
    %v453 = vld [vmem:[#allocation10 + $0x10] sm:$0xff]
    %v454 = vld [vmem:[#allocation10 + $0x18] sm:$0xf]
    %v455 = vld [vmem:[#allocation10 + $0x1c] sm:$0xff]
    %v456 = vld [vmem:[#allocation10 + $0x24] sm:$0xff]
    %v457 = vld [vmem:[#allocation10 + $0x2c] sm:$0xff]
    %v458 = vld [vmem:[#allocation10 + $0x34] sm:$0xf]
    %v459 = vld [vmem:[#allocation10 + $0x38] sm:$0xff]
    %v460 = vld [vmem:[#allocation10 + $0x40] sm:$0xff]
    %v461 = vld [vmem:[#allocation10 + $0x48] sm:$0xff]
    %v462 = vld [vmem:[#allocation10 + $0x50] sm:$0xf]
    %v463 = vld [vmem:[#allocation10 + $0x54] sm:$0xff]
    %v464 = vld [vmem:[#allocation10 + $0x5c] sm:$0xff]
    %v465 = vld [vmem:[#allocation10 + $0x64] sm:$0xff]
    %v466 = vld [vmem:[#allocation10 + $0x6c] sm:$0xf]
    %v467 = vld [vmem:[#allocation10 + $0x70] sm:$0xff]
    %v468 = vld [vmem:[#allocation10 + $0x78] sm:$0xff]
    %v469 = vld [vmem:[#allocation10 + $0x80] sm:$0xff]
    %v470 = vld [vmem:[#allocation10 + $0x88] sm:$0xf]
    %v471 = vld [vmem:[#allocation10 + $0x8c] sm:$0xff]
    %v472 = vld [vmem:[#allocation10 + $0x94] sm:$0xff]
    %v473 = vld [vmem:[#allocation10 + $0x9c] sm:$0xff]
    %v474 = vld [vmem:[#allocation10 + $0xa4] sm:$0xf]
    %v475 = vld [vmem:[#allocation10 + $0xa8] sm:$0xff]
    %v476 = vld [vmem:[#allocation10 + $0xb0] sm:$0xff]
    %v477 = vld [vmem:[#allocation10 + $0xb8] sm:$0xff]
    %v478 = vld [vmem:[#allocation10 + $0xc0] sm:$0xf]
    %v479 = vld [vmem:[#allocation10 + $0xc4] sm:$0xff]
    %v480 = vld [vmem:[#allocation10 + $0xcc] sm:$0xff]
    %v481 = vld [vmem:[#allocation10 + $0xd4] sm:$0xff]
    %v482 = vld [vmem:[#allocation10 + $0xdc] sm:$0xf]
    %v483 = vld [vmem:[#allocation10 + $0xe0] sm:$0xff]
    %v484 = vld [vmem:[#allocation10 + $0xe8] sm:$0xff]
    %v485 = vld [vmem:[#allocation10 + $0xf0] sm:$0xff]
    %v486 = vld [vmem:[#allocation10 + $0xf8] sm:$0xf]
    %v487 = vld [vmem:[#allocation10 + $0xfc] sm:$0xff]
    %v488 = vld [vmem:[#allocation10 + $0x104] sm:$0xff]
    %v489 = vld [vmem:[#allocation10 + $0x10c] sm:$0xff]
    %v490 = vld [vmem:[#allocation10 + $0x114] sm:$0xf]
    %v491 = vld [vmem:[#allocation10 + $0x118] sm:$0xff]
    %v492 = vld [vmem:[#allocation10 + $0x120] sm:$0xff]
    %v493 = vld [vmem:[#allocation10 + $0x128] sm:$0xff]
    %v494 = vld [vmem:[#allocation10 + $0x130] sm:$0xf]
    %v495 = vld [vmem:[#allocation10 + $0x134] sm:$0xff]
    %v496 = vld [vmem:[#allocation10 + $0x13c] sm:$0xff]
    %v497 = vld [vmem:[#allocation10 + $0x144] sm:$0xff]
    %v498 = vld [vmem:[#allocation10 + $0x14c] sm:$0xf]
    %v499 = vld [vmem:[#allocation10 + $0x150] sm:$0xff]
    %v500 = vld [vmem:[#allocation10 + $0x158] sm:$0xff]
    %v501 = vld [vmem:[#allocation10 + $0x160] sm:$0xff]
    %v502 = vld [vmem:[#allocation10 + $0x168] sm:$0xf]
    %v503 = vld [vmem:[#allocation10 + $0x16c] sm:$0xff]
    %v504 = vld [vmem:[#allocation10 + $0x174] sm:$0xff]
    %v505 = vld [vmem:[#allocation10 + $0x17c] sm:$0xff]
    %v506 = vld [vmem:[#allocation10 + $0x184] sm:$0xf]
    %v507 = vld [vmem:[#allocation10 + $0x188] sm:$0xff]
    %v508 = vld [vmem:[#allocation10 + $0x190] sm:$0xff]
    %v509 = vld [vmem:[#allocation10 + $0x198] sm:$0xff]
    %v510 = vld [vmem:[#allocation10 + $0x1a0] sm:$0xf]
    %v511 = vld [vmem:[#allocation10 + $0x1a4] sm:$0xff]
    %v512 = vld [vmem:[#allocation10 + $0x1ac] sm:$0xff]
    %v513 = vld [vmem:[#allocation10 + $0x1b4] sm:$0xff]
    %v514 = vld [vmem:[#allocation10 + $0x1bc] sm:$0xf]
    %v515 = vld [vmem:[#allocation10 + $0x1c0] sm:$0xff]
    %v516 = vld [vmem:[#allocation10 + $0x1c8] sm:$0xff]
    %v517 = vld [vmem:[#allocation10 + $0x1d0] sm:$0xff]
    %v518 = vld [vmem:[#allocation10 + $0x1d8] sm:$0xf]
    %v519 = vld [vmem:[#allocation10 + $0x1dc] sm:$0xff]
    %v520 = vld [vmem:[#allocation10 + $0x1e4] sm:$0xff]
    %v521 = vld [vmem:[#allocation10 + $0x1ec] sm:$0xff]
    %v522 = vld [vmem:[#allocation10 + $0x1f4] sm:$0xf]
    %v523 = vld [vmem:[#allocation10 + $0x1f8] sm:$0xff]
    %v524 = vld [vmem:[#allocation10 + $0x200] sm:$0xff]
    %v525 = vld [vmem:[#allocation10 + $0x208] sm:$0xff]
    %v526 = vld [vmem:[#allocation10 + $0x210] sm:$0xf]
    %v527 = vld [vmem:[#allocation10 + $0x214] sm:$0xff]
    %v528 = vld [vmem:[#allocation10 + $0x21c] sm:$0xff]
    %v529 = vld [vmem:[#allocation10 + $0x224] sm:$0xff]
    %v530 = vld [vmem:[#allocation10 + $0x22c] sm:$0xf]
    %v531 = vld [vmem:[#allocation10 + $0x230] sm:$0xff]
    %v532 = vld [vmem:[#allocation10 + $0x238] sm:$0xff]
    %v533 = vld [vmem:[#allocation10 + $0x240] sm:$0xff]
    %v534 = vld [vmem:[#allocation10 + $0x248] sm:$0xf]
    %v535 = vld [vmem:[#allocation10 + $0x24c] sm:$0xff]
    %v536 = vld [vmem:[#allocation10 + $0x254] sm:$0xff]
    %v537 = vld [vmem:[#allocation10 + $0x25c] sm:$0xff]
    %v538 = vld [vmem:[#allocation10 + $0x264] sm:$0xf]
    %v539 = vld [vmem:[#allocation10 + $0x268] sm:$0xff]
    %v540 = vld [vmem:[#allocation10 + $0x270] sm:$0xff]
    %v541 = vld [vmem:[#allocation10 + $0x278] sm:$0xff]
    %v542 = vld [vmem:[#allocation10 + $0x280] sm:$0xf]
    %v543 = vld [vmem:[#allocation10 + $0x284] sm:$0xff]
    %v544 = vld [vmem:[#allocation10 + $0x28c] sm:$0xff]
    %v545 = vld [vmem:[#allocation10 + $0x294] sm:$0xff]
    %v546 = vld [vmem:[#allocation10 + $0x29c] sm:$0xf]
    %v547 = vld [vmem:[#allocation10 + $0x2a0] sm:$0xff]
    %v548 = vld [vmem:[#allocation10 + $0x2a8] sm:$0xff]
    %v549 = vld [vmem:[#allocation10 + $0x2b0] sm:$0xff]
    %v550 = vld [vmem:[#allocation10 + $0x2b8] sm:$0xf]
    %v551 = vld [vmem:[#allocation10 + $0x2bc] sm:$0xff]
    %v552 = vld [vmem:[#allocation10 + $0x2c4] sm:$0xff]
    %v553 = vld [vmem:[#allocation10 + $0x2cc] sm:$0xff]
    %v554 = vld [vmem:[#allocation10 + $0x2d4] sm:$0xf]
    %v555 = vld [vmem:[#allocation10 + $0x2d8] sm:$0xff]
    %v556 = vld [vmem:[#allocation10 + $0x2e0] sm:$0xff]
    %v557 = vld [vmem:[#allocation10 + $0x2e8] sm:$0xff]
    %v558 = vld [vmem:[#allocation10 + $0x2f0] sm:$0xf]
    %v559 = vld [vmem:[#allocation10 + $0x2f4] sm:$0xff]
    %v560 = vld [vmem:[#allocation10 + $0x2fc] sm:$0xff]
    %v561 = vld [vmem:[#allocation10 + $0x304] sm:$0xff]
    %v562 = vld [vmem:[#allocation10 + $0x30c] sm:$0xf]
    %v563 = vld [vmem:[#allocation10 + $0x310] sm:$0xff]
    %v564 = vld [vmem:[#allocation10 + $0x318] sm:$0xff]
    %v565 = vld [vmem:[#allocation10 + $0x320] sm:$0xff]
    %v566 = vld [vmem:[#allocation10 + $0x328] sm:$0xf]
    %v567 = vld [vmem:[#allocation10 + $0x32c] sm:$0xff]
    %v568 = vld [vmem:[#allocation10 + $0x334] sm:$0xff]
    %v569 = vld [vmem:[#allocation10 + $0x33c] sm:$0xff]
    %v570 = vld [vmem:[#allocation10 + $0x344] sm:$0xf]
    %v571 = vld [vmem:[#allocation10 + $0x348] sm:$0xff]
    %v572 = vld [vmem:[#allocation10 + $0x350] sm:$0xff]
    %v573 = vld [vmem:[#allocation10 + $0x358] sm:$0xff]
    %v574 = vld [vmem:[#allocation10 + $0x360] sm:$0xf]
    %v575 = vld [vmem:[#allocation10 + $0x364] sm:$0xff]
    %v576 = vld [vmem:[#allocation10 + $0x36c] sm:$0xff]
    %v577 = vld [vmem:[#allocation10 + $0x374] sm:$0xff]
    %v578 = vld [vmem:[#allocation10 + $0x37c] sm:$0xf]
    %v579 = vld [vmem:[#allocation10 + $0x380] sm:$0xff]
    %v580 = vld [vmem:[#allocation10 + $0x388] sm:$0xff]
    %v581 = vld [vmem:[#allocation10 + $0x390] sm:$0xff]
    %v582 = vld [vmem:[#allocation10 + $0x398] sm:$0xf]
    %v583 = vld [vmem:[#allocation10 + $0x39c] sm:$0xff]
    %v584 = vld [vmem:[#allocation10 + $0x3a4] sm:$0xff]
    %v585 = vld [vmem:[#allocation10 + $0x3ac] sm:$0xff]
    %v586 = vld [vmem:[#allocation10 + $0x3b4] sm:$0xf]
    %v587 = vld [vmem:[#allocation10 + $0x3b8] sm:$0xff]
    %v588 = vld [vmem:[#allocation10 + $0x3c0] sm:$0xff]
    %v589 = vld [vmem:[#allocation10 + $0x3c8] sm:$0xff]
    %v590 = vld [vmem:[#allocation10 + $0x3d0] sm:$0xf]
    %v591 = vld [vmem:[#allocation10 + $0x3d4] sm:$0xff]
    %v592 = vld [vmem:[#allocation10 + $0x3dc] sm:$0xff]
    %v593 = vld [vmem:[#allocation10 + $0x3e4] sm:$0xff]
    %v594 = vld [vmem:[#allocation10 + $0x3ec] sm:$0xf]
    %v595 = vld [vmem:[#allocation10 + $0x3f0] sm:$0xff]
    %v596 = vld [vmem:[#allocation10 + $0x3f8] sm:$0xff]
    %v597 = vld [vmem:[#allocation10 + $0x400] sm:$0xff]
    %v598 = vld [vmem:[#allocation10 + $0x408] sm:$0xf]
    %v599 = vld [vmem:[#allocation10 + $0x40c] sm:$0xff]
    %v600 = vld [vmem:[#allocation10 + $0x414] sm:$0xff]
    %v601 = vld [vmem:[#allocation10 + $0x41c] sm:$0xff]
    %v602 = vld [vmem:[#allocation10 + $0x424] sm:$0xf]
    %v603 = vld [vmem:[#allocation10 + $0x428] sm:$0xff]
    %v604 = vld [vmem:[#allocation10 + $0x430] sm:$0xff]
    %v605 = vld [vmem:[#allocation10 + $0x438] sm:$0xff]
    %v606 = vld [vmem:[#allocation10 + $0x440] sm:$0xf]
    %v607 = vld [vmem:[#allocation10 + $0x444] sm:$0xff]
    %v608 = vld [vmem:[#allocation10 + $0x44c] sm:$0xff]
    %v609 = vld [vmem:[#allocation10 + $0x454] sm:$0xff]
    %v610 = vld [vmem:[#allocation10 + $0x45c] sm:$0xf]
    %v611 = vld [vmem:[#allocation10 + $0x460] sm:$0xff]
    %v612 = vld [vmem:[#allocation10 + $0x468] sm:$0xff]
    %v613 = vld [vmem:[#allocation10 + $0x470] sm:$0xff]
    %v614 = vld [vmem:[#allocation10 + $0x478] sm:$0xf]
    %v615 = vld [vmem:[#allocation10 + $0x47c] sm:$0xff]
    %v616 = vld [vmem:[#allocation10 + $0x484] sm:$0xff]
    %v617 = vld [vmem:[#allocation10 + $0x48c] sm:$0xff]
    %v618 = vld [vmem:[#allocation10 + $0x494] sm:$0xf]
    %v619 = vld [vmem:[#allocation10 + $0x498] sm:$0xff]
    %v620 = vld [vmem:[#allocation10 + $0x4a0] sm:$0xff]
    %v621 = vld [vmem:[#allocation10 + $0x4a8] sm:$0xff]
    %v622 = vld [vmem:[#allocation10 + $0x4b0] sm:$0xf]
    %v623 = vld [vmem:[#allocation10 + $0x4b4] sm:$0xff]
    %v624 = vld [vmem:[#allocation10 + $0x4bc] sm:$0xff]
    %v625 = vld [vmem:[#allocation10 + $0x4c4] sm:$0xff]
    %v626 = vld [vmem:[#allocation10 + $0x4cc] sm:$0xf]
    %v627 = vld [vmem:[#allocation10 + $0x4d0] sm:$0xff]
    %v628 = vld [vmem:[#allocation10 + $0x4d8] sm:$0xff]
    %v629 = vld [vmem:[#allocation10 + $0x4e0] sm:$0xff]
    %v630 = vld [vmem:[#allocation10 + $0x4e8] sm:$0xf]
    %v631 = vld [vmem:[#allocation10 + $0x4ec] sm:$0xff]
    %v632 = vld [vmem:[#allocation10 + $0x4f4] sm:$0xff]
    %v633 = vld [vmem:[#allocation10 + $0x4fc] sm:$0xff]
    %v634 = vld [vmem:[#allocation10 + $0x504] sm:$0xf]
    %v635 = vld [vmem:[#allocation10 + $0x508] sm:$0xff]
    %v636 = vld [vmem:[#allocation10 + $0x510] sm:$0xff]
    %v637 = vld [vmem:[#allocation10 + $0x518] sm:$0xff]
    %v638 = vld [vmem:[#allocation10 + $0x520] sm:$0xf]
    %v639 = vld [vmem:[#allocation10 + $0x524] sm:$0xff]
    %v640 = vld [vmem:[#allocation10 + $0x52c] sm:$0xff]
    %v641 = vld [vmem:[#allocation10 + $0x534] sm:$0xff]
    %v642 = vld [vmem:[#allocation10 + $0x53c] sm:$0xf]
    %v643 = vld [vmem:[#allocation10 + $0x540] sm:$0xff]
    %v644 = vld [vmem:[#allocation10 + $0x548] sm:$0xff]
    %v645 = vld [vmem:[#allocation10 + $0x550] sm:$0xff]
    %v646 = vld [vmem:[#allocation10 + $0x558] sm:$0xf]
    %v647 = vld [vmem:[#allocation10 + $0x55c] sm:$0xff]
    %v648 = vld [vmem:[#allocation10 + $0x564] sm:$0xff]
    %v649 = vld [vmem:[#allocation10 + $0x56c] sm:$0xff]
    %v650 = vld [vmem:[#allocation10 + $0x574] sm:$0xf]
    %v651 = vld [vmem:[#allocation10 + $0x578] sm:$0xff]
    %v652 = vld [vmem:[#allocation10 + $0x580] sm:$0xff]
    %v653 = vld [vmem:[#allocation10 + $0x588] sm:$0xff]
    %v654 = vld [vmem:[#allocation10 + $0x590] sm:$0xf]
    %v655 = vld [vmem:[#allocation10 + $0x594] sm:$0xff]
    %v656 = vld [vmem:[#allocation10 + $0x59c] sm:$0xff]
    %v657 = vld [vmem:[#allocation10 + $0x5a4] sm:$0xff]
    %v658 = vld [vmem:[#allocation10 + $0x5ac] sm:$0xf]
    %v659 = vld [vmem:[#allocation10 + $0x5b0] sm:$0xff]
    %v660 = vld [vmem:[#allocation10 + $0x5b8] sm:$0xff]
    %v661 = vld [vmem:[#allocation10 + $0x5c0] sm:$0xff]
    %v662 = vld [vmem:[#allocation10 + $0x5c8] sm:$0xf]
    %v663 = vld [vmem:[#allocation10 + $0x5cc] sm:$0xff]
    %v664 = vld [vmem:[#allocation10 + $0x5d4] sm:$0xff]
    %v665 = vld [vmem:[#allocation10 + $0x5dc] sm:$0xff]
    %v666 = vld [vmem:[#allocation10 + $0x5e4] sm:$0xf]
    %v667 = vld [vmem:[#allocation10 + $0x5e8] sm:$0xff]
    %v668 = vld [vmem:[#allocation10 + $0x5f0] sm:$0xff]
    %v669 = vld [vmem:[#allocation10 + $0x5f8] sm:$0xff]
    %v670 = vld [vmem:[#allocation10 + $0x600] sm:$0xf]
    %v671 = vld [vmem:[#allocation10 + $0x604] sm:$0xff]
    %v672 = vld [vmem:[#allocation10 + $0x60c] sm:$0xff]
    %v673 = vld [vmem:[#allocation10 + $0x614] sm:$0xff]
    %v674 = vld [vmem:[#allocation10 + $0x61c] sm:$0xf]
    %v675 = vld [vmem:[#allocation10 + $0x620] sm:$0xff]
    %v676 = vld [vmem:[#allocation10 + $0x628] sm:$0xff]
    %v677 = vld [vmem:[#allocation10 + $0x630] sm:$0xff]
    %v678 = vld [vmem:[#allocation10 + $0x638] sm:$0xf]
    %v679 = vld [vmem:[#allocation10 + $0x63c] sm:$0xff]
    %v680 = vld [vmem:[#allocation10 + $0x644] sm:$0xff]
    %v681 = vld [vmem:[#allocation10 + $0x64c] sm:$0xff]
    %v682 = vld [vmem:[#allocation10 + $0x654] sm:$0xf]
    %v683 = vld [vmem:[#allocation10 + $0x658] sm:$0xff]
    %v684 = vld [vmem:[#allocation10 + $0x660] sm:$0xff]
    %v685 = vld [vmem:[#allocation10 + $0x668] sm:$0xff]
    %v686 = vld [vmem:[#allocation10 + $0x670] sm:$0xf]
    %v687 = vld [vmem:[#allocation10 + $0x674] sm:$0xff]
    %v688 = vld [vmem:[#allocation10 + $0x67c] sm:$0xff]
    %v689 = vld [vmem:[#allocation10 + $0x684] sm:$0xff]
    %v690 = vld [vmem:[#allocation10 + $0x68c] sm:$0xf]
    %v691 = vld [vmem:[#allocation10 + $0x690] sm:$0xff]
    %v692 = vld [vmem:[#allocation10 + $0x698] sm:$0xff]
    %v693 = vld [vmem:[#allocation10 + $0x6a0] sm:$0xff]
    %v694 = vld [vmem:[#allocation10 + $0x6a8] sm:$0xf]
    %v695 = vld [vmem:[#allocation10 + $0x6ac] sm:$0xff]
    %v696 = vld [vmem:[#allocation10 + $0x6b4] sm:$0xff]
    %v697 = vld [vmem:[#allocation10 + $0x6bc] sm:$0xff]
    %v698 = vld [vmem:[#allocation10 + $0x6c4] sm:$0xf]
    %v699 = vld [vmem:[#allocation10 + $0x6c8] sm:$0xff]
    %v700 = vld [vmem:[#allocation10 + $0x6d0] sm:$0xff]
    %v701 = vld [vmem:[#allocation10 + $0x6d8] sm:$0xff]
    %v702 = vld [vmem:[#allocation10 + $0x6e0] sm:$0xf]
    %v703 = vld [vmem:[#allocation10 + $0x6e4] sm:$0xff]
    %v704 = vld [vmem:[#allocation10 + $0x6ec] sm:$0xff]
    %v705 = vld [vmem:[#allocation10 + $0x6f4] sm:$0xff]
    %v706 = vld [vmem:[#allocation10 + $0x6fc] sm:$0xf]
    %v707 = vld [vmem:[#allocation10 + $0x700] sm:$0xff]
    %v708 = vld [vmem:[#allocation10 + $0x708] sm:$0xff]
    %v709 = vld [vmem:[#allocation10 + $0x710] sm:$0xff]
    %v710 = vld [vmem:[#allocation10 + $0x718] sm:$0xf]
    %v711 = vld [vmem:[#allocation10 + $0x71c] sm:$0xff]
    %v712 = vld [vmem:[#allocation10 + $0x724] sm:$0xff]
    %v713 = vld [vmem:[#allocation10 + $0x72c] sm:$0xff]
    %v714 = vld [vmem:[#allocation10 + $0x734] sm:$0xf]
    %v715 = vld [vmem:[#allocation10 + $0x738] sm:$0xff]
    %v716 = vld [vmem:[#allocation10 + $0x740] sm:$0xff]
    %v717 = vld [vmem:[#allocation10 + $0x748] sm:$0xff]
    %v718 = vld [vmem:[#allocation10 + $0x750] sm:$0xf]
    %v719 = vld [vmem:[#allocation10 + $0x754] sm:$0xff]
    %v720 = vld [vmem:[#allocation10 + $0x75c] sm:$0xff]
    %v721 = vld [vmem:[#allocation10 + $0x764] sm:$0xff]
    %v722 = vld [vmem:[#allocation10 + $0x76c] sm:$0xf]
    %v723 = vld [vmem:[#allocation10 + $0x770] sm:$0xff]
    %v724 = vld [vmem:[#allocation10 + $0x778] sm:$0xff]
    %v725 = vld [vmem:[#allocation10 + $0x780] sm:$0xff]
    %v726 = vld [vmem:[#allocation10 + $0x788] sm:$0xf]
    %v727 = vld [vmem:[#allocation10 + $0x78c] sm:$0xff]
    %v728 = vld [vmem:[#allocation10 + $0x794] sm:$0xff]
    %v729 = vld [vmem:[#allocation10 + $0x79c] sm:$0xff]
    %v730 = vld [vmem:[#allocation10 + $0x7a4] sm:$0xf]
    %v731 = vld [vmem:[#allocation10 + $0x7a8] sm:$0xff]
    %v732 = vld [vmem:[#allocation10 + $0x7b0] sm:$0xff]
    %v733 = vld [vmem:[#allocation10 + $0x7b8] sm:$0xff]
    %v734 = vld [vmem:[#allocation10 + $0x7c0] sm:$0xf]
    %v735 = vld [vmem:[#allocation10 + $0x7c4] sm:$0xff]
    %v736 = vld [vmem:[#allocation10 + $0x7cc] sm:$0xff]
    %v737 = vld [vmem:[#allocation10 + $0x7d4] sm:$0xff]
    %v738 = vld [vmem:[#allocation10 + $0x7dc] sm:$0xf]
    %v739 = vld [vmem:[#allocation10 + $0x7e0] sm:$0xff]
    %v740 = vld [vmem:[#allocation10 + $0x7e8] sm:$0xff]
    %v741 = vld [vmem:[#allocation10 + $0x7f0] sm:$0xff]
    %v742 = vld [vmem:[#allocation10 + $0x7f8] sm:$0xf]
    %v743 = vld [vmem:[#allocation10 + $0x7fc] sm:$0xff]
    %v744 = vld [vmem:[#allocation10 + $0x804] sm:$0xff]
    %v745 = vld [vmem:[#allocation10 + $0x80c] sm:$0xff]
    %v746 = vld [vmem:[#allocation10 + $0x814] sm:$0xf]
    %v747 = vld [vmem:[#allocation10 + $0x818] sm:$0xff]
    %v748 = vld [vmem:[#allocation10 + $0x820] sm:$0xff]
    %v749 = vld [vmem:[#allocation10 + $0x828] sm:$0xff]
    %v750 = vld [vmem:[#allocation10 + $0x830] sm:$0xf]
    %v751 = vld [vmem:[#allocation10 + $0x834] sm:$0xff]
    %v752 = vld [vmem:[#allocation10 + $0x83c] sm:$0xff]
    %v753 = vld [vmem:[#allocation10 + $0x844] sm:$0xff]
    %v754 = vld [vmem:[#allocation10 + $0x84c] sm:$0xf]
    %v755 = vld [vmem:[#allocation10 + $0x850] sm:$0xff]
    %v756 = vld [vmem:[#allocation10 + $0x858] sm:$0xff]
    %v757 = vld [vmem:[#allocation10 + $0x860] sm:$0xff]
    %v758 = vld [vmem:[#allocation10 + $0x868] sm:$0xf]
    %v759 = vld [vmem:[#allocation10 + $0x86c] sm:$0xff]
    %v760 = vld [vmem:[#allocation10 + $0x874] sm:$0xff]
    %v761 = vld [vmem:[#allocation10 + $0x87c] sm:$0xff]
    %v762 = vld [vmem:[#allocation10 + $0x884] sm:$0xf]
    %v763 = vld [vmem:[#allocation10 + $0x888] sm:$0xff]
    %v764 = vld [vmem:[#allocation10 + $0x890] sm:$0xff]
    %v765 = vld [vmem:[#allocation10 + $0x898] sm:$0xff]
    %v766 = vld [vmem:[#allocation10 + $0x8a0] sm:$0xf]
    %v767 = vld [vmem:[#allocation10 + $0x8a4] sm:$0xff]
    %v768 = vld [vmem:[#allocation10 + $0x8ac] sm:$0xff]
    %v769 = vld [vmem:[#allocation10 + $0x8b4] sm:$0xff]
    %v770 = vld [vmem:[#allocation10 + $0x8bc] sm:$0xf]
    %v771 = vld [vmem:[#allocation10 + $0x8c0] sm:$0xff]
    %v772 = vld [vmem:[#allocation10 + $0x8c8] sm:$0xff]
    %v773 = vld [vmem:[#allocation10 + $0x8d0] sm:$0xff]
    %v774 = vld [vmem:[#allocation10 + $0x8d8] sm:$0xf]
    %v775 = vld [vmem:[#allocation10 + $0x8dc] sm:$0xff]
    %v776 = vld [vmem:[#allocation10 + $0x8e4] sm:$0xff]
    %v777 = vld [vmem:[#allocation10 + $0x8ec] sm:$0xff]
    %v778 = vld [vmem:[#allocation10 + $0x8f4] sm:$0xf]
    %v779 = vld [vmem:[#allocation10 + $0x8f8] sm:$0xff]
    %v780 = vld [vmem:[#allocation10 + $0x900] sm:$0xff]
    %v781 = vld [vmem:[#allocation10 + $0x908] sm:$0xff]
    %v782 = vld [vmem:[#allocation10 + $0x910] sm:$0xf]
    %v783 = vld [vmem:[#allocation10 + $0x914] sm:$0xff]
    %v784 = vld [vmem:[#allocation10 + $0x91c] sm:$0xff]
    %v785 = vld [vmem:[#allocation10 + $0x924] sm:$0xff]
    %v786 = vld [vmem:[#allocation10 + $0x92c] sm:$0xf]
    %v787 = vld [vmem:[#allocation10 + $0x930] sm:$0xff]
    %v788 = vld [vmem:[#allocation10 + $0x938] sm:$0xff]
    %v789 = vld [vmem:[#allocation10 + $0x940] sm:$0xff]
    %v790 = vld [vmem:[#allocation10 + $0x948] sm:$0xf]
    %v791 = vld [vmem:[#allocation10 + $0x94c] sm:$0xff]
    %v792 = vld [vmem:[#allocation10 + $0x954] sm:$0xff]
    %v793 = vld [vmem:[#allocation10 + $0x95c] sm:$0xff]
    %v794 = vld [vmem:[#allocation10 + $0x964] sm:$0xf]
    %v795 = vld [vmem:[#allocation10 + $0x968] sm:$0xff]
    %v796 = vld [vmem:[#allocation10 + $0x970] sm:$0xff]
    %v797 = vld [vmem:[#allocation10 + $0x978] sm:$0xff]
    %v798 = vld [vmem:[#allocation10 + $0x980] sm:$0xf]
    %v799 = vld [vmem:[#allocation10 + $0x984] sm:$0xff]
    %v800 = vld [vmem:[#allocation10 + $0x98c] sm:$0xff]
    %v801 = vld [vmem:[#allocation10 + $0x994] sm:$0xff]
    %v802 = vld [vmem:[#allocation10 + $0x99c] sm:$0xf]
    %v803 = vld [vmem:[#allocation10 + $0x9a0] sm:$0xff]
    %v804 = vld [vmem:[#allocation10 + $0x9a8] sm:$0xff]
    %v805 = vld [vmem:[#allocation10 + $0x9b0] sm:$0xff]
    %v806 = vld [vmem:[#allocation10 + $0x9b8] sm:$0xf]
    %v807 = vld [vmem:[#allocation10 + $0x9bc] sm:$0xff]
    %v808 = vld [vmem:[#allocation10 + $0x9c4] sm:$0xff]
    %v809 = vld [vmem:[#allocation10 + $0x9cc] sm:$0xff]
    %v810 = vld [vmem:[#allocation10 + $0x9d4] sm:$0xf]
    %v811 = vld [vmem:[#allocation10 + $0x9d8] sm:$0xff]
    %v812 = vld [vmem:[#allocation10 + $0x9e0] sm:$0xff]
    %v813 = vld [vmem:[#allocation10 + $0x9e8] sm:$0xff]
    %v814 = vld [vmem:[#allocation10 + $0x9f0] sm:$0xf]
    %v815 = vld [vmem:[#allocation10 + $0x9f4] sm:$0xff]
    %v816 = vld [vmem:[#allocation10 + $0x9fc] sm:$0xff]
    %v817 = vld [vmem:[#allocation10 + $0xa04] sm:$0xff]
    %v818 = vld [vmem:[#allocation10 + $0xa0c] sm:$0xf]
    %v819 = vld [vmem:[#allocation10 + $0xa10] sm:$0xff]
    %v820 = vld [vmem:[#allocation10 + $0xa18] sm:$0xff]
    %v821 = vld [vmem:[#allocation10 + $0xa20] sm:$0xff]
    %v822 = vld [vmem:[#allocation10 + $0xa28] sm:$0xf]
    %v823 = vld [vmem:[#allocation10 + $0xa2c] sm:$0xff]
    %v824 = vld [vmem:[#allocation10 + $0xa34] sm:$0xff]
    %v825 = vld [vmem:[#allocation10 + $0xa3c] sm:$0xff]
    %v826 = vld [vmem:[#allocation10 + $0xa44] sm:$0xf]
    %v827 = vld [vmem:[#allocation10 + $0xa48] sm:$0xff]
    %v828 = vld [vmem:[#allocation10 + $0xa50] sm:$0xff]
    %v829 = vld [vmem:[#allocation10 + $0xa58] sm:$0xff]
    %v830 = vld [vmem:[#allocation10 + $0xa60] sm:$0xf]
    %v831 = vld [vmem:[#allocation10 + $0xa64] sm:$0xff]
    %v832 = vld [vmem:[#allocation10 + $0xa6c] sm:$0xff]
    %v833 = vld [vmem:[#allocation10 + $0xa74] sm:$0xff]
    %v834 = vld [vmem:[#allocation10 + $0xa7c] sm:$0xf]
    %v835 = vld [vmem:[#allocation10 + $0xa80] sm:$0xff]
    %v836 = vld [vmem:[#allocation10 + $0xa88] sm:$0xff]
    %v837 = vld [vmem:[#allocation10 + $0xa90] sm:$0xff]
    %v838 = vld [vmem:[#allocation10 + $0xa98] sm:$0xf]
    %v839 = vld [vmem:[#allocation10 + $0xa9c] sm:$0xff]
    %v840 = vld [vmem:[#allocation10 + $0xaa4] sm:$0xff]
    %v841 = vld [vmem:[#allocation10 + $0xaac] sm:$0xff]
    %v842 = vld [vmem:[#allocation10 + $0xab4] sm:$0xf]
    %v843 = vld [vmem:[#allocation10 + $0xab8] sm:$0xff]
    %v844 = vld [vmem:[#allocation10 + $0xac0] sm:$0xff]
    %v845 = vld [vmem:[#allocation10 + $0xac8] sm:$0xff]
    %v846 = vld [vmem:[#allocation10 + $0xad0] sm:$0xf]
    %v847 = vld [vmem:[#allocation10 + $0xad4] sm:$0xff]
    %v848 = vld [vmem:[#allocation10 + $0xadc] sm:$0xff]
    %v849 = vld [vmem:[#allocation10 + $0xae4] sm:$0xff]
    %v850 = vld [vmem:[#allocation10 + $0xaec] sm:$0xf]
    %v851 = vld [vmem:[#allocation10 + $0xaf0] sm:$0xff]
    %v852 = vld [vmem:[#allocation10 + $0xaf8] sm:$0xff]
    %v853 = vld [vmem:[#allocation10 + $0xb00] sm:$0xff]
    %v854 = vld [vmem:[#allocation10 + $0xb08] sm:$0xf]
    %v855 = vld [vmem:[#allocation10 + $0xb0c] sm:$0xff]
    %v856 = vld [vmem:[#allocation10 + $0xb14] sm:$0xff]
    %v857 = vld [vmem:[#allocation10 + $0xb1c] sm:$0xff]
    %v858 = vld [vmem:[#allocation10 + $0xb24] sm:$0xf]
    %v859 = vld [vmem:[#allocation10 + $0xb28] sm:$0xff]
    %v860 = vld [vmem:[#allocation10 + $0xb30] sm:$0xff]
    %v861 = vld [vmem:[#allocation10 + $0xb38] sm:$0xff]
    %v862 = vld [vmem:[#allocation10 + $0xb40] sm:$0xf]
    %v863 = vld [vmem:[#allocation10 + $0xb44] sm:$0xff]
    %v864 = vld [vmem:[#allocation10 + $0xb4c] sm:$0xff]
    %v865 = vld [vmem:[#allocation10 + $0xb54] sm:$0xff]
    %v866 = vld [vmem:[#allocation10 + $0xb5c] sm:$0xf]
    %v867 = vld [vmem:[#allocation10 + $0xb60] sm:$0xff]
    %v868 = vld [vmem:[#allocation10 + $0xb68] sm:$0xff]
    %v869 = vld [vmem:[#allocation10 + $0xb70] sm:$0xff]
    %v870 = vld [vmem:[#allocation10 + $0xb78] sm:$0xf]
    %v871 = vld [vmem:[#allocation10 + $0xb7c] sm:$0xff]
    %v872 = vld [vmem:[#allocation10 + $0xb84] sm:$0xff]
    %v873 = vld [vmem:[#allocation10 + $0xb8c] sm:$0xff]
    %v874 = vld [vmem:[#allocation10 + $0xb94] sm:$0xf]
    %v875 = vld [vmem:[#allocation10 + $0xb98] sm:$0xff]
    %v876 = vld [vmem:[#allocation10 + $0xba0] sm:$0xff]
    %v877 = vld [vmem:[#allocation10 + $0xba8] sm:$0xff]
    %v878 = vld [vmem:[#allocation10 + $0xbb0] sm:$0xf]
    %v879 = vld [vmem:[#allocation10 + $0xbb4] sm:$0xff]
    %v880 = vld [vmem:[#allocation10 + $0xbbc] sm:$0xff]
    %v881 = vld [vmem:[#allocation10 + $0xbc4] sm:$0xff]
    %v882 = vld [vmem:[#allocation10 + $0xbcc] sm:$0xf]
    %v883 = vld [vmem:[#allocation10 + $0xbd0] sm:$0xff]
    %v884 = vld [vmem:[#allocation10 + $0xbd8] sm:$0xff]
    %v885 = vld [vmem:[#allocation10 + $0xbe0] sm:$0xff]
    %v886 = vld [vmem:[#allocation10 + $0xbe8] sm:$0xf]
    %v887 = vld [vmem:[#allocation10 + $0xbec] sm:$0xff]
    %v888 = vld [vmem:[#allocation10 + $0xbf4] sm:$0xff]
    %v889 = vld [vmem:[#allocation10 + $0xbfc] sm:$0xff]
    %v890 = vld [vmem:[#allocation10 + $0xc04] sm:$0xf]
    %v891 = vld [vmem:[#allocation10 + $0xc08] sm:$0xff]
    %v892 = vld [vmem:[#allocation10 + $0xc10] sm:$0xff]
    %v893 = vld [vmem:[#allocation10 + $0xc18] sm:$0xff]
    %v894 = vld [vmem:[#allocation10 + $0xc20] sm:$0xf]
    %v895 = vld [vmem:[#allocation10 + $0xc24] sm:$0xff]
    %v896 = vld [vmem:[#allocation10 + $0xc2c] sm:$0xff]
    %v897 = vld [vmem:[#allocation10 + $0xc34] sm:$0xff]
    %v898 = vld [vmem:[#allocation10 + $0xc3c] sm:$0xf]
    %v899 = vld [vmem:[#allocation12] sm:$0xff]
    %v901 = vperm.slane %v899, 0
    %v902 = vperm.slane %v899, 1
    %v903 = vperm.slane %v899, 2
    %v904 = vperm.slane %v899, 3
    %v905 = vperm.slane %v899, 4
    %v906 = vperm.slane %v899, 5
    %v907 = vperm.slane %v899, 6
    %v1363 = vunpack.c.l.b16 %v451
    %v1364 = vunpack.c.h.b16 %v451
    %v1365 = vunpack.c.l.b16 %v452
    %v1366 = vunpack.c.h.b16 %v452
    %v1367 = vunpack.c.l.b16 %v453
    %v1368 = vunpack.c.h.b16 %v453
    %v1369 = vunpack.c.l.b16 %v454
    %v1370 = vunpack.c.l.b16 %v455
    %v1371 = vunpack.c.h.b16 %v455
    %v1372 = vunpack.c.l.b16 %v456
    %v1373 = vunpack.c.h.b16 %v456
    %v1374 = vunpack.c.l.b16 %v457
    %v1375 = vunpack.c.h.b16 %v457
    %v1376 = vunpack.c.l.b16 %v458
    %v1377 = vunpack.c.l.b16 %v459
    %v1378 = vunpack.c.h.b16 %v459
    %v1379 = vunpack.c.l.b16 %v460
    %v1380 = vunpack.c.h.b16 %v460
    %v1381 = vunpack.c.l.b16 %v461
    %v1382 = vunpack.c.h.b16 %v461
    %v1383 = vunpack.c.l.b16 %v462
    %v1384 = vunpack.c.l.b16 %v463
    %v1385 = vunpack.c.h.b16 %v463
    %v1386 = vunpack.c.l.b16 %v464
    %v1387 = vunpack.c.h.b16 %v464
    %v1388 = vunpack.c.l.b16 %v465
    %v1389 = vunpack.c.h.b16 %v465
    %v1390 = vunpack.c.l.b16 %v466
    %v1391 = vunpack.c.l.b16 %v467
    %v1392 = vunpack.c.h.b16 %v467
    %v1393 = vunpack.c.l.b16 %v468
    %v1394 = vunpack.c.h.b16 %v468
    %v1395 = vunpack.c.l.b16 %v469
    %v1396 = vunpack.c.h.b16 %v469
    %v1397 = vunpack.c.l.b16 %v470
    %v1398 = vunpack.c.l.b16 %v471
    %v1399 = vunpack.c.h.b16 %v471
    %v1400 = vunpack.c.l.b16 %v472
    %v1401 = vunpack.c.h.b16 %v472
    %v1402 = vunpack.c.l.b16 %v473
    %v1403 = vunpack.c.h.b16 %v473
    %v1404 = vunpack.c.l.b16 %v474
    %v1405 = vunpack.c.l.b16 %v475
    %v1406 = vunpack.c.h.b16 %v475
    %v1407 = vunpack.c.l.b16 %v476
    %v1408 = vunpack.c.h.b16 %v476
    %v1409 = vunpack.c.l.b16 %v477
    %v1410 = vunpack.c.h.b16 %v477
    %v1411 = vunpack.c.l.b16 %v478
    %v1412 = vunpack.c.l.b16 %v479
    %v1413 = vunpack.c.h.b16 %v479
    %v1414 = vunpack.c.l.b16 %v480
    %v1415 = vunpack.c.h.b16 %v480
    %v1416 = vunpack.c.l.b16 %v481
    %v1417 = vunpack.c.h.b16 %v481
    %v1418 = vunpack.c.l.b16 %v482
    %v1419 = vunpack.c.l.b16 %v483
    %v1420 = vunpack.c.h.b16 %v483
    %v1421 = vunpack.c.l.b16 %v484
    %v1422 = vunpack.c.h.b16 %v484
    %v1423 = vunpack.c.l.b16 %v485
    %v1424 = vunpack.c.h.b16 %v485
    %v1425 = vunpack.c.l.b16 %v486
    %v1426 = vunpack.c.l.b16 %v487
    %v1427 = vunpack.c.h.b16 %v487
    %v1428 = vunpack.c.l.b16 %v488
    %v1429 = vunpack.c.h.b16 %v488
    %v1430 = vunpack.c.l.b16 %v489
    %v1431 = vunpack.c.h.b16 %v489
    %v1432 = vunpack.c.l.b16 %v490
    %v1433 = vunpack.c.l.b16 %v491
    %v1434 = vunpack.c.h.b16 %v491
    %v1435 = vunpack.c.l.b16 %v492
    %v1436 = vunpack.c.h.b16 %v492
    %v1437 = vunpack.c.l.b16 %v493
    %v1438 = vunpack.c.h.b16 %v493
    %v1439 = vunpack.c.l.b16 %v494
    %v1440 = vunpack.c.l.b16 %v495
    %v1441 = vunpack.c.h.b16 %v495
    %v1442 = vunpack.c.l.b16 %v496
    %v1443 = vunpack.c.h.b16 %v496
    %v1444 = vunpack.c.l.b16 %v497
    %v1445 = vunpack.c.h.b16 %v497
    %v1446 = vunpack.c.l.b16 %v498
    %v1447 = vunpack.c.l.b16 %v499
    %v1448 = vunpack.c.h.b16 %v499
    %v1449 = vunpack.c.l.b16 %v500
    %v1450 = vunpack.c.h.b16 %v500
    %v1451 = vunpack.c.l.b16 %v501
    %v1452 = vunpack.c.h.b16 %v501
    %v1453 = vunpack.c.l.b16 %v502
    %v1454 = vunpack.c.l.b16 %v503
    %v1455 = vunpack.c.h.b16 %v503
    %v1456 = vunpack.c.l.b16 %v504
    %v1457 = vunpack.c.h.b16 %v504
    %v1458 = vunpack.c.l.b16 %v505
    %v1459 = vunpack.c.h.b16 %v505
    %v1460 = vunpack.c.l.b16 %v506
    %v1461 = vunpack.c.l.b16 %v507
    %v1462 = vunpack.c.h.b16 %v507
    %v1463 = vunpack.c.l.b16 %v508
    %v1464 = vunpack.c.h.b16 %v508
    %v1465 = vunpack.c.l.b16 %v509
    %v1466 = vunpack.c.h.b16 %v509
    %v1467 = vunpack.c.l.b16 %v510
    %v1468 = vunpack.c.l.b16 %v511
    %v1469 = vunpack.c.h.b16 %v511
    %v1470 = vunpack.c.l.b16 %v512
    %v1471 = vunpack.c.h.b16 %v512
    %v1472 = vunpack.c.l.b16 %v513
    %v1473 = vunpack.c.h.b16 %v513
    %v1474 = vunpack.c.l.b16 %v514
    %v1475 = vunpack.c.l.b16 %v515
    %v1476 = vunpack.c.h.b16 %v515
    %v1477 = vunpack.c.l.b16 %v516
    %v1478 = vunpack.c.h.b16 %v516
    %v1479 = vunpack.c.l.b16 %v517
    %v1480 = vunpack.c.h.b16 %v517
    %v1481 = vunpack.c.l.b16 %v518
    %v1482 = vunpack.c.l.b16 %v519
    %v1483 = vunpack.c.h.b16 %v519
    %v1484 = vunpack.c.l.b16 %v520
    %v1485 = vunpack.c.h.b16 %v520
    %v1486 = vunpack.c.l.b16 %v521
    %v1487 = vunpack.c.h.b16 %v521
    %v1488 = vunpack.c.l.b16 %v522
    %v1489 = vunpack.c.l.b16 %v523
    %v1490 = vunpack.c.h.b16 %v523
    %v1491 = vunpack.c.l.b16 %v524
    %v1492 = vunpack.c.h.b16 %v524
    %v1493 = vunpack.c.l.b16 %v525
    %v1494 = vunpack.c.h.b16 %v525
    %v1495 = vunpack.c.l.b16 %v526
    %v1496 = vunpack.c.l.b16 %v527
    %v1497 = vunpack.c.h.b16 %v527
    %v1498 = vunpack.c.l.b16 %v528
    %v1499 = vunpack.c.h.b16 %v528
    %v1500 = vunpack.c.l.b16 %v529
    %v1501 = vunpack.c.h.b16 %v529
    %v1502 = vunpack.c.l.b16 %v530
    %v1503 = vunpack.c.l.b16 %v531
    %v1504 = vunpack.c.h.b16 %v531
    %v1505 = vunpack.c.l.b16 %v532
    %v1506 = vunpack.c.h.b16 %v532
    %v1507 = vunpack.c.l.b16 %v533
    %v1508 = vunpack.c.h.b16 %v533
    %v1509 = vunpack.c.l.b16 %v534
    %v1510 = vunpack.c.l.b16 %v535
    %v1511 = vunpack.c.h.b16 %v535
    %v1512 = vunpack.c.l.b16 %v536
    %v1513 = vunpack.c.h.b16 %v536
    %v1514 = vunpack.c.l.b16 %v537
    %v1515 = vunpack.c.h.b16 %v537
    %v1516 = vunpack.c.l.b16 %v538
    %v1517 = vunpack.c.l.b16 %v539
    %v1518 = vunpack.c.h.b16 %v539
    %v1519 = vunpack.c.l.b16 %v540
    %v1520 = vunpack.c.h.b16 %v540
    %v1521 = vunpack.c.l.b16 %v541
    %v1522 = vunpack.c.h.b16 %v541
    %v1523 = vunpack.c.l.b16 %v542
    %v1524 = vunpack.c.l.b16 %v543
    %v1525 = vunpack.c.h.b16 %v543
    %v1526 = vunpack.c.l.b16 %v544
    %v1527 = vunpack.c.h.b16 %v544
    %v1528 = vunpack.c.l.b16 %v545
    %v1529 = vunpack.c.h.b16 %v545
    %v1530 = vunpack.c.l.b16 %v546
    %v1531 = vunpack.c.l.b16 %v547
    %v1532 = vunpack.c.h.b16 %v547
    %v1533 = vunpack.c.l.b16 %v548
    %v1534 = vunpack.c.h.b16 %v548
    %v1535 = vunpack.c.l.b16 %v549
    %v1536 = vunpack.c.h.b16 %v549
    %v1537 = vunpack.c.l.b16 %v550
    %v1538 = vunpack.c.l.b16 %v551
    %v1539 = vunpack.c.h.b16 %v551
    %v1540 = vunpack.c.l.b16 %v552
    %v1541 = vunpack.c.h.b16 %v552
    %v1542 = vunpack.c.l.b16 %v553
    %v1543 = vunpack.c.h.b16 %v553
    %v1544 = vunpack.c.l.b16 %v554
    %v1545 = vunpack.c.l.b16 %v555
    %v1546 = vunpack.c.h.b16 %v555
    %v1547 = vunpack.c.l.b16 %v556
    %v1548 = vunpack.c.h.b16 %v556
    %v1549 = vunpack.c.l.b16 %v557
    %v1550 = vunpack.c.h.b16 %v557
    %v1551 = vunpack.c.l.b16 %v558
    %v1552 = vunpack.c.l.b16 %v559
    %v1553 = vunpack.c.h.b16 %v559
    %v1554 = vunpack.c.l.b16 %v560
    %v1555 = vunpack.c.h.b16 %v560
    %v1556 = vunpack.c.l.b16 %v561
    %v1557 = vunpack.c.h.b16 %v561
    %v1558 = vunpack.c.l.b16 %v562
    %v1559 = vunpack.c.l.b16 %v563
    %v1560 = vunpack.c.h.b16 %v563
    %v1561 = vunpack.c.l.b16 %v564
    %v1562 = vunpack.c.h.b16 %v564
    %v1563 = vunpack.c.l.b16 %v565
    %v1564 = vunpack.c.h.b16 %v565
    %v1565 = vunpack.c.l.b16 %v566
    %v1566 = vunpack.c.l.b16 %v567
    %v1567 = vunpack.c.h.b16 %v567
    %v1568 = vunpack.c.l.b16 %v568
    %v1569 = vunpack.c.h.b16 %v568
    %v1570 = vunpack.c.l.b16 %v569
    %v1571 = vunpack.c.h.b16 %v569
    %v1572 = vunpack.c.l.b16 %v570
    %v1573 = vunpack.c.l.b16 %v571
    %v1574 = vunpack.c.h.b16 %v571
    %v1575 = vunpack.c.l.b16 %v572
    %v1576 = vunpack.c.h.b16 %v572
    %v1577 = vunpack.c.l.b16 %v573
    %v1578 = vunpack.c.h.b16 %v573
    %v1579 = vunpack.c.l.b16 %v574
    %v1580 = vunpack.c.l.b16 %v575
    %v1581 = vunpack.c.h.b16 %v575
    %v1582 = vunpack.c.l.b16 %v576
    %v1583 = vunpack.c.h.b16 %v576
    %v1584 = vunpack.c.l.b16 %v577
    %v1585 = vunpack.c.h.b16 %v577
    %v1586 = vunpack.c.l.b16 %v578
    %v1587 = vunpack.c.l.b16 %v579
    %v1588 = vunpack.c.h.b16 %v579
    %v1589 = vunpack.c.l.b16 %v580
    %v1590 = vunpack.c.h.b16 %v580
    %v1591 = vunpack.c.l.b16 %v581
    %v1592 = vunpack.c.h.b16 %v581
    %v1593 = vunpack.c.l.b16 %v582
    %v1594 = vunpack.c.l.b16 %v583
    %v1595 = vunpack.c.h.b16 %v583
    %v1596 = vunpack.c.l.b16 %v584
    %v1597 = vunpack.c.h.b16 %v584
    %v1598 = vunpack.c.l.b16 %v585
    %v1599 = vunpack.c.h.b16 %v585
    %v1600 = vunpack.c.l.b16 %v586
    %v1601 = vunpack.c.l.b16 %v587
    %v1602 = vunpack.c.h.b16 %v587
    %v1603 = vunpack.c.l.b16 %v588
    %v1604 = vunpack.c.h.b16 %v588
    %v1605 = vunpack.c.l.b16 %v589
    %v1606 = vunpack.c.h.b16 %v589
    %v1607 = vunpack.c.l.b16 %v590
    %v1608 = vunpack.c.l.b16 %v591
    %v1609 = vunpack.c.h.b16 %v591
    %v1610 = vunpack.c.l.b16 %v592
    %v1611 = vunpack.c.h.b16 %v592
    %v1612 = vunpack.c.l.b16 %v593
    %v1613 = vunpack.c.h.b16 %v593
    %v1614 = vunpack.c.l.b16 %v594
    %v1615 = vunpack.c.l.b16 %v595
    %v1616 = vunpack.c.h.b16 %v595
    %v1617 = vunpack.c.l.b16 %v596
    %v1618 = vunpack.c.h.b16 %v596
    %v1619 = vunpack.c.l.b16 %v597
    %v1620 = vunpack.c.h.b16 %v597
    %v1621 = vunpack.c.l.b16 %v598
    %v1622 = vunpack.c.l.b16 %v599
    %v1623 = vunpack.c.h.b16 %v599
    %v1624 = vunpack.c.l.b16 %v600
    %v1625 = vunpack.c.h.b16 %v600
    %v1626 = vunpack.c.l.b16 %v601
    %v1627 = vunpack.c.h.b16 %v601
    %v1628 = vunpack.c.l.b16 %v602
    %v1629 = vunpack.c.l.b16 %v603
    %v1630 = vunpack.c.h.b16 %v603
    %v1631 = vunpack.c.l.b16 %v604
    %v1632 = vunpack.c.h.b16 %v604
    %v1633 = vunpack.c.l.b16 %v605
    %v1634 = vunpack.c.h.b16 %v605
    %v1635 = vunpack.c.l.b16 %v606
    %v1636 = vunpack.c.l.b16 %v607
    %v1637 = vunpack.c.h.b16 %v607
    %v1638 = vunpack.c.l.b16 %v608
    %v1639 = vunpack.c.h.b16 %v608
    %v1640 = vunpack.c.l.b16 %v609
    %v1641 = vunpack.c.h.b16 %v609
    %v1642 = vunpack.c.l.b16 %v610
    %v1643 = vunpack.c.l.b16 %v611
    %v1644 = vunpack.c.h.b16 %v611
    %v1645 = vunpack.c.l.b16 %v612
    %v1646 = vunpack.c.h.b16 %v612
    %v1647 = vunpack.c.l.b16 %v613
    %v1648 = vunpack.c.h.b16 %v613
    %v1649 = vunpack.c.l.b16 %v614
    %v1650 = vunpack.c.l.b16 %v615
    %v1651 = vunpack.c.h.b16 %v615
    %v1652 = vunpack.c.l.b16 %v616
    %v1653 = vunpack.c.h.b16 %v616
    %v1654 = vunpack.c.l.b16 %v617
    %v1655 = vunpack.c.h.b16 %v617
    %v1656 = vunpack.c.l.b16 %v618
    %v1657 = vunpack.c.l.b16 %v619
    %v1658 = vunpack.c.h.b16 %v619
    %v1659 = vunpack.c.l.b16 %v620
    %v1660 = vunpack.c.h.b16 %v620
    %v1661 = vunpack.c.l.b16 %v621
    %v1662 = vunpack.c.h.b16 %v621
    %v1663 = vunpack.c.l.b16 %v622
    %v1664 = vunpack.c.l.b16 %v623
    %v1665 = vunpack.c.h.b16 %v623
    %v1666 = vunpack.c.l.b16 %v624
    %v1667 = vunpack.c.h.b16 %v624
    %v1668 = vunpack.c.l.b16 %v625
    %v1669 = vunpack.c.h.b16 %v625
    %v1670 = vunpack.c.l.b16 %v626
    %v1671 = vunpack.c.l.b16 %v627
    %v1672 = vunpack.c.h.b16 %v627
    %v1673 = vunpack.c.l.b16 %v628
    %v1674 = vunpack.c.h.b16 %v628
    %v1675 = vunpack.c.l.b16 %v629
    %v1676 = vunpack.c.h.b16 %v629
    %v1677 = vunpack.c.l.b16 %v630
    %v1678 = vunpack.c.l.b16 %v631
    %v1679 = vunpack.c.h.b16 %v631
    %v1680 = vunpack.c.l.b16 %v632
    %v1681 = vunpack.c.h.b16 %v632
    %v1682 = vunpack.c.l.b16 %v633
    %v1683 = vunpack.c.h.b16 %v633
    %v1684 = vunpack.c.l.b16 %v634
    %v1685 = vunpack.c.l.b16 %v635
    %v1686 = vunpack.c.h.b16 %v635
    %v1687 = vunpack.c.l.b16 %v636
    %v1688 = vunpack.c.h.b16 %v636
    %v1689 = vunpack.c.l.b16 %v637
    %v1690 = vunpack.c.h.b16 %v637
    %v1691 = vunpack.c.l.b16 %v638
    %v1692 = vunpack.c.l.b16 %v639
    %v1693 = vunpack.c.h.b16 %v639
    %v1694 = vunpack.c.l.b16 %v640
    %v1695 = vunpack.c.h.b16 %v640
    %v1696 = vunpack.c.l.b16 %v641
    %v1697 = vunpack.c.h.b16 %v641
    %v1698 = vunpack.c.l.b16 %v642
    %v1699 = vunpack.c.l.b16 %v643
    %v1700 = vunpack.c.h.b16 %v643
    %v1701 = vunpack.c.l.b16 %v644
    %v1702 = vunpack.c.h.b16 %v644
    %v1703 = vunpack.c.l.b16 %v645
    %v1704 = vunpack.c.h.b16 %v645
    %v1705 = vunpack.c.l.b16 %v646
    %v1706 = vunpack.c.l.b16 %v647
    %v1707 = vunpack.c.h.b16 %v647
    %v1708 = vunpack.c.l.b16 %v648
    %v1709 = vunpack.c.h.b16 %v648
    %v1710 = vunpack.c.l.b16 %v649
    %v1711 = vunpack.c.h.b16 %v649
    %v1712 = vunpack.c.l.b16 %v650
    %v1713 = vunpack.c.l.b16 %v651
    %v1714 = vunpack.c.h.b16 %v651
    %v1715 = vunpack.c.l.b16 %v652
    %v1716 = vunpack.c.h.b16 %v652
    %v1717 = vunpack.c.l.b16 %v653
    %v1718 = vunpack.c.h.b16 %v653
    %v1719 = vunpack.c.l.b16 %v654
    %v1720 = vunpack.c.l.b16 %v655
    %v1721 = vunpack.c.h.b16 %v655
    %v1722 = vunpack.c.l.b16 %v656
    %v1723 = vunpack.c.h.b16 %v656
    %v1724 = vunpack.c.l.b16 %v657
    %v1725 = vunpack.c.h.b16 %v657
    %v1726 = vunpack.c.l.b16 %v658
    %v1727 = vunpack.c.l.b16 %v659
    %v1728 = vunpack.c.h.b16 %v659
    %v1729 = vunpack.c.l.b16 %v660
    %v1730 = vunpack.c.h.b16 %v660
    %v1731 = vunpack.c.l.b16 %v661
    %v1732 = vunpack.c.h.b16 %v661
    %v1733 = vunpack.c.l.b16 %v662
    %v1734 = vunpack.c.l.b16 %v663
    %v1735 = vunpack.c.h.b16 %v663
    %v1736 = vunpack.c.l.b16 %v664
    %v1737 = vunpack.c.h.b16 %v664
    %v1738 = vunpack.c.l.b16 %v665
    %v1739 = vunpack.c.h.b16 %v665
    %v1740 = vunpack.c.l.b16 %v666
    %v1741 = vunpack.c.l.b16 %v667
    %v1742 = vunpack.c.h.b16 %v667
    %v1743 = vunpack.c.l.b16 %v668
    %v1744 = vunpack.c.h.b16 %v668
    %v1745 = vunpack.c.l.b16 %v669
    %v1746 = vunpack.c.h.b16 %v669
    %v1747 = vunpack.c.l.b16 %v670
    %v1748 = vunpack.c.l.b16 %v671
    %v1749 = vunpack.c.h.b16 %v671
    %v1750 = vunpack.c.l.b16 %v672
    %v1751 = vunpack.c.h.b16 %v672
    %v1752 = vunpack.c.l.b16 %v673
    %v1753 = vunpack.c.h.b16 %v673
    %v1754 = vunpack.c.l.b16 %v674
    %v1755 = vunpack.c.l.b16 %v675
    %v1756 = vunpack.c.h.b16 %v675
    %v1757 = vunpack.c.l.b16 %v676
    %v1758 = vunpack.c.h.b16 %v676
    %v1759 = vunpack.c.l.b16 %v677
    %v1760 = vunpack.c.h.b16 %v677
    %v1761 = vunpack.c.l.b16 %v678
    %v1762 = vunpack.c.l.b16 %v679
    %v1763 = vunpack.c.h.b16 %v679
    %v1764 = vunpack.c.l.b16 %v680
    %v1765 = vunpack.c.h.b16 %v680
    %v1766 = vunpack.c.l.b16 %v681
    %v1767 = vunpack.c.h.b16 %v681
    %v1768 = vunpack.c.l.b16 %v682
    %v1769 = vunpack.c.l.b16 %v683
    %v1770 = vunpack.c.h.b16 %v683
    %v1771 = vunpack.c.l.b16 %v684
    %v1772 = vunpack.c.h.b16 %v684
    %v1773 = vunpack.c.l.b16 %v685
    %v1774 = vunpack.c.h.b16 %v685
    %v1775 = vunpack.c.l.b16 %v686
    %v1776 = vunpack.c.l.b16 %v687
    %v1777 = vunpack.c.h.b16 %v687
    %v1778 = vunpack.c.l.b16 %v688
    %v1779 = vunpack.c.h.b16 %v688
    %v1780 = vunpack.c.l.b16 %v689
    %v1781 = vunpack.c.h.b16 %v689
    %v1782 = vunpack.c.l.b16 %v690
    %v1783 = vunpack.c.l.b16 %v691
    %v1784 = vunpack.c.h.b16 %v691
    %v1785 = vunpack.c.l.b16 %v692
    %v1786 = vunpack.c.h.b16 %v692
    %v1787 = vunpack.c.l.b16 %v693
    %v1788 = vunpack.c.h.b16 %v693
    %v1789 = vunpack.c.l.b16 %v694
    %v1790 = vunpack.c.l.b16 %v695
    %v1791 = vunpack.c.h.b16 %v695
    %v1792 = vunpack.c.l.b16 %v696
    %v1793 = vunpack.c.h.b16 %v696
    %v1794 = vunpack.c.l.b16 %v697
    %v1795 = vunpack.c.h.b16 %v697
    %v1796 = vunpack.c.l.b16 %v698
    %v1797 = vunpack.c.l.b16 %v699
    %v1798 = vunpack.c.h.b16 %v699
    %v1799 = vunpack.c.l.b16 %v700
    %v1800 = vunpack.c.h.b16 %v700
    %v1801 = vunpack.c.l.b16 %v701
    %v1802 = vunpack.c.h.b16 %v701
    %v1803 = vunpack.c.l.b16 %v702
    %v1804 = vunpack.c.l.b16 %v703
    %v1805 = vunpack.c.h.b16 %v703
    %v1806 = vunpack.c.l.b16 %v704
    %v1807 = vunpack.c.h.b16 %v704
    %v1808 = vunpack.c.l.b16 %v705
    %v1809 = vunpack.c.h.b16 %v705
    %v1810 = vunpack.c.l.b16 %v706
    %v1811 = vunpack.c.l.b16 %v707
    %v1812 = vunpack.c.h.b16 %v707
    %v1813 = vunpack.c.l.b16 %v708
    %v1814 = vunpack.c.h.b16 %v708
    %v1815 = vunpack.c.l.b16 %v709
    %v1816 = vunpack.c.h.b16 %v709
    %v1817 = vunpack.c.l.b16 %v710
    %v1818 = vunpack.c.l.b16 %v711
    %v1819 = vunpack.c.h.b16 %v711
    %v1820 = vunpack.c.l.b16 %v712
    %v1821 = vunpack.c.h.b16 %v712
    %v1822 = vunpack.c.l.b16 %v713
    %v1823 = vunpack.c.h.b16 %v713
    %v1824 = vunpack.c.l.b16 %v714
    %v1825 = vunpack.c.l.b16 %v715
    %v1826 = vunpack.c.h.b16 %v715
    %v1827 = vunpack.c.l.b16 %v716
    %v1828 = vunpack.c.h.b16 %v716
    %v1829 = vunpack.c.l.b16 %v717
    %v1830 = vunpack.c.h.b16 %v717
    %v1831 = vunpack.c.l.b16 %v718
    %v1832 = vunpack.c.l.b16 %v719
    %v1833 = vunpack.c.h.b16 %v719
    %v1834 = vunpack.c.l.b16 %v720
    %v1835 = vunpack.c.h.b16 %v720
    %v1836 = vunpack.c.l.b16 %v721
    %v1837 = vunpack.c.h.b16 %v721
    %v1838 = vunpack.c.l.b16 %v722
    %v1839 = vunpack.c.l.b16 %v723
    %v1840 = vunpack.c.h.b16 %v723
    %v1841 = vunpack.c.l.b16 %v724
    %v1842 = vunpack.c.h.b16 %v724
    %v1843 = vunpack.c.l.b16 %v725
    %v1844 = vunpack.c.h.b16 %v725
    %v1845 = vunpack.c.l.b16 %v726
    %v1846 = vunpack.c.l.b16 %v727
    %v1847 = vunpack.c.h.b16 %v727
    %v1848 = vunpack.c.l.b16 %v728
    %v1849 = vunpack.c.h.b16 %v728
    %v1850 = vunpack.c.l.b16 %v729
    %v1851 = vunpack.c.h.b16 %v729
    %v1852 = vunpack.c.l.b16 %v730
    %v1853 = vunpack.c.l.b16 %v731
    %v1854 = vunpack.c.h.b16 %v731
    %v1855 = vunpack.c.l.b16 %v732
    %v1856 = vunpack.c.h.b16 %v732
    %v1857 = vunpack.c.l.b16 %v733
    %v1858 = vunpack.c.h.b16 %v733
    %v1859 = vunpack.c.l.b16 %v734
    %v1860 = vunpack.c.l.b16 %v735
    %v1861 = vunpack.c.h.b16 %v735
    %v1862 = vunpack.c.l.b16 %v736
    %v1863 = vunpack.c.h.b16 %v736
    %v1864 = vunpack.c.l.b16 %v737
    %v1865 = vunpack.c.h.b16 %v737
    %v1866 = vunpack.c.l.b16 %v738
    %v1867 = vunpack.c.l.b16 %v739
    %v1868 = vunpack.c.h.b16 %v739
    %v1869 = vunpack.c.l.b16 %v740
    %v1870 = vunpack.c.h.b16 %v740
    %v1871 = vunpack.c.l.b16 %v741
    %v1872 = vunpack.c.h.b16 %v741
    %v1873 = vunpack.c.l.b16 %v742
    %v1874 = vunpack.c.l.b16 %v743
    %v1875 = vunpack.c.h.b16 %v743
    %v1876 = vunpack.c.l.b16 %v744
    %v1877 = vunpack.c.h.b16 %v744
    %v1878 = vunpack.c.l.b16 %v745
    %v1879 = vunpack.c.h.b16 %v745
    %v1880 = vunpack.c.l.b16 %v746
    %v1881 = vunpack.c.l.b16 %v747
    %v1882 = vunpack.c.h.b16 %v747
    %v1883 = vunpack.c.l.b16 %v748
    %v1884 = vunpack.c.h.b16 %v748
    %v1885 = vunpack.c.l.b16 %v749
    %v1886 = vunpack.c.h.b16 %v749
    %v1887 = vunpack.c.l.b16 %v750
    %v1888 = vunpack.c.l.b16 %v751
    %v1889 = vunpack.c.h.b16 %v751
    %v1890 = vunpack.c.l.b16 %v752
    %v1891 = vunpack.c.h.b16 %v752
    %v1892 = vunpack.c.l.b16 %v753
    %v1893 = vunpack.c.h.b16 %v753
    %v1894 = vunpack.c.l.b16 %v754
    %v1895 = vunpack.c.l.b16 %v755
    %v1896 = vunpack.c.h.b16 %v755
    %v1897 = vunpack.c.l.b16 %v756
    %v1898 = vunpack.c.h.b16 %v756
    %v1899 = vunpack.c.l.b16 %v757
    %v1900 = vunpack.c.h.b16 %v757
    %v1901 = vunpack.c.l.b16 %v758
    %v1902 = vunpack.c.l.b16 %v759
    %v1903 = vunpack.c.h.b16 %v759
    %v1904 = vunpack.c.l.b16 %v760
    %v1905 = vunpack.c.h.b16 %v760
    %v1906 = vunpack.c.l.b16 %v761
    %v1907 = vunpack.c.h.b16 %v761
    %v1908 = vunpack.c.l.b16 %v762
    %v1909 = vunpack.c.l.b16 %v763
    %v1910 = vunpack.c.h.b16 %v763
    %v1911 = vunpack.c.l.b16 %v764
    %v1912 = vunpack.c.h.b16 %v764
    %v1913 = vunpack.c.l.b16 %v765
    %v1914 = vunpack.c.h.b16 %v765
    %v1915 = vunpack.c.l.b16 %v766
    %v1916 = vunpack.c.l.b16 %v767
    %v1917 = vunpack.c.h.b16 %v767
    %v1918 = vunpack.c.l.b16 %v768
    %v1919 = vunpack.c.h.b16 %v768
    %v1920 = vunpack.c.l.b16 %v769
    %v1921 = vunpack.c.h.b16 %v769
    %v1922 = vunpack.c.l.b16 %v770
    %v1923 = vunpack.c.l.b16 %v771
    %v1924 = vunpack.c.h.b16 %v771
    %v1925 = vunpack.c.l.b16 %v772
    %v1926 = vunpack.c.h.b16 %v772
    %v1927 = vunpack.c.l.b16 %v773
    %v1928 = vunpack.c.h.b16 %v773
    %v1929 = vunpack.c.l.b16 %v774
    %v1930 = vunpack.c.l.b16 %v775
    %v1931 = vunpack.c.h.b16 %v775
    %v1932 = vunpack.c.l.b16 %v776
    %v1933 = vunpack.c.h.b16 %v776
    %v1934 = vunpack.c.l.b16 %v777
    %v1935 = vunpack.c.h.b16 %v777
    %v1936 = vunpack.c.l.b16 %v778
    %v1937 = vunpack.c.l.b16 %v779
    %v1938 = vunpack.c.h.b16 %v779
    %v1939 = vunpack.c.l.b16 %v780
    %v1940 = vunpack.c.h.b16 %v780
    %v1941 = vunpack.c.l.b16 %v781
    %v1942 = vunpack.c.h.b16 %v781
    %v1943 = vunpack.c.l.b16 %v782
    %v1944 = vunpack.c.l.b16 %v783
    %v1945 = vunpack.c.h.b16 %v783
    %v1946 = vunpack.c.l.b16 %v784
    %v1947 = vunpack.c.h.b16 %v784
    %v1948 = vunpack.c.l.b16 %v785
    %v1949 = vunpack.c.h.b16 %v785
    %v1950 = vunpack.c.l.b16 %v786
    %v1951 = vunpack.c.l.b16 %v787
    %v1952 = vunpack.c.h.b16 %v787
    %v1953 = vunpack.c.l.b16 %v788
    %v1954 = vunpack.c.h.b16 %v788
    %v1955 = vunpack.c.l.b16 %v789
    %v1956 = vunpack.c.h.b16 %v789
    %v1957 = vunpack.c.l.b16 %v790
    %v1958 = vunpack.c.l.b16 %v791
    %v1959 = vunpack.c.h.b16 %v791
    %v1960 = vunpack.c.l.b16 %v792
    %v1961 = vunpack.c.h.b16 %v792
    %v1962 = vunpack.c.l.b16 %v793
    %v1963 = vunpack.c.h.b16 %v793
    %v1964 = vunpack.c.l.b16 %v794
    %v1965 = vunpack.c.l.b16 %v795
    %v1966 = vunpack.c.h.b16 %v795
    %v1967 = vunpack.c.l.b16 %v796
    %v1968 = vunpack.c.h.b16 %v796
    %v1969 = vunpack.c.l.b16 %v797
    %v1970 = vunpack.c.h.b16 %v797
    %v1971 = vunpack.c.l.b16 %v798
    %v1972 = vunpack.c.l.b16 %v799
    %v1973 = vunpack.c.h.b16 %v799
    %v1974 = vunpack.c.l.b16 %v800
    %v1975 = vunpack.c.h.b16 %v800
    %v1976 = vunpack.c.l.b16 %v801
    %v1977 = vunpack.c.h.b16 %v801
    %v1978 = vunpack.c.l.b16 %v802
    %v1979 = vunpack.c.l.b16 %v803
    %v1980 = vunpack.c.h.b16 %v803
    %v1981 = vunpack.c.l.b16 %v804
    %v1982 = vunpack.c.h.b16 %v804
    %v1983 = vunpack.c.l.b16 %v805
    %v1984 = vunpack.c.h.b16 %v805
    %v1985 = vunpack.c.l.b16 %v806
    %v1986 = vunpack.c.l.b16 %v807
    %v1987 = vunpack.c.h.b16 %v807
    %v1988 = vunpack.c.l.b16 %v808
    %v1989 = vunpack.c.h.b16 %v808
    %v1990 = vunpack.c.l.b16 %v809
    %v1991 = vunpack.c.h.b16 %v809
    %v1992 = vunpack.c.l.b16 %v810
    %v1993 = vunpack.c.l.b16 %v811
    %v1994 = vunpack.c.h.b16 %v811
    %v1995 = vunpack.c.l.b16 %v812
    %v1996 = vunpack.c.h.b16 %v812
    %v1997 = vunpack.c.l.b16 %v813
    %v1998 = vunpack.c.h.b16 %v813
    %v1999 = vunpack.c.l.b16 %v814
    %v2000 = vunpack.c.l.b16 %v815
    %v2001 = vunpack.c.h.b16 %v815
    %v2002 = vunpack.c.l.b16 %v816
    %v2003 = vunpack.c.h.b16 %v816
    %v2004 = vunpack.c.l.b16 %v817
    %v2005 = vunpack.c.h.b16 %v817
    %v2006 = vunpack.c.l.b16 %v818
    %v2007 = vunpack.c.l.b16 %v819
    %v2008 = vunpack.c.h.b16 %v819
    %v2009 = vunpack.c.l.b16 %v820
    %v2010 = vunpack.c.h.b16 %v820
    %v2011 = vunpack.c.l.b16 %v821
    %v2012 = vunpack.c.h.b16 %v821
    %v2013 = vunpack.c.l.b16 %v822
    %v2014 = vunpack.c.l.b16 %v823
    %v2015 = vunpack.c.h.b16 %v823
    %v2016 = vunpack.c.l.b16 %v824
    %v2017 = vunpack.c.h.b16 %v824
    %v2018 = vunpack.c.l.b16 %v825
    %v2019 = vunpack.c.h.b16 %v825
    %v2020 = vunpack.c.l.b16 %v826
    %v2021 = vunpack.c.l.b16 %v827
    %v2022 = vunpack.c.h.b16 %v827
    %v2023 = vunpack.c.l.b16 %v828
    %v2024 = vunpack.c.h.b16 %v828
    %v2025 = vunpack.c.l.b16 %v829
    %v2026 = vunpack.c.h.b16 %v829
    %v2027 = vunpack.c.l.b16 %v830
    %v2028 = vunpack.c.l.b16 %v831
    %v2029 = vunpack.c.h.b16 %v831
    %v2030 = vunpack.c.l.b16 %v832
    %v2031 = vunpack.c.h.b16 %v832
    %v2032 = vunpack.c.l.b16 %v833
    %v2033 = vunpack.c.h.b16 %v833
    %v2034 = vunpack.c.l.b16 %v834
    %v2035 = vunpack.c.l.b16 %v835
    %v2036 = vunpack.c.h.b16 %v835
    %v2037 = vunpack.c.l.b16 %v836
    %v2038 = vunpack.c.h.b16 %v836
    %v2039 = vunpack.c.l.b16 %v837
    %v2040 = vunpack.c.h.b16 %v837
    %v2041 = vunpack.c.l.b16 %v838
    %v2042 = vunpack.c.l.b16 %v839
    %v2043 = vunpack.c.h.b16 %v839
    %v2044 = vunpack.c.l.b16 %v840
    %v2045 = vunpack.c.h.b16 %v840
    %v2046 = vunpack.c.l.b16 %v841
    %v2047 = vunpack.c.h.b16 %v841
    %v2048 = vunpack.c.l.b16 %v842
    %v2049 = vunpack.c.l.b16 %v843
    %v2050 = vunpack.c.h.b16 %v843
    %v2051 = vunpack.c.l.b16 %v844
    %v2052 = vunpack.c.h.b16 %v844
    %v2053 = vunpack.c.l.b16 %v845
    %v2054 = vunpack.c.h.b16 %v845
    %v2055 = vunpack.c.l.b16 %v846
    %v2056 = vunpack.c.l.b16 %v847
    %v2057 = vunpack.c.h.b16 %v847
    %v2058 = vunpack.c.l.b16 %v848
    %v2059 = vunpack.c.h.b16 %v848
    %v2060 = vunpack.c.l.b16 %v849
    %v2061 = vunpack.c.h.b16 %v849
    %v2062 = vunpack.c.l.b16 %v850
    %v2063 = vunpack.c.l.b16 %v851
    %v2064 = vunpack.c.h.b16 %v851
    %v2065 = vunpack.c.l.b16 %v852
    %v2066 = vunpack.c.h.b16 %v852
    %v2067 = vunpack.c.l.b16 %v853
    %v2068 = vunpack.c.h.b16 %v853
    %v2069 = vunpack.c.l.b16 %v854
    %v2070 = vunpack.c.l.b16 %v855
    %v2071 = vunpack.c.h.b16 %v855
    %v2072 = vunpack.c.l.b16 %v856
    %v2073 = vunpack.c.h.b16 %v856
    %v2074 = vunpack.c.l.b16 %v857
    %v2075 = vunpack.c.h.b16 %v857
    %v2076 = vunpack.c.l.b16 %v858
    %v2077 = vunpack.c.l.b16 %v859
    %v2078 = vunpack.c.h.b16 %v859
    %v2079 = vunpack.c.l.b16 %v860
    %v2080 = vunpack.c.h.b16 %v860
    %v2081 = vunpack.c.l.b16 %v861
    %v2082 = vunpack.c.h.b16 %v861
    %v2083 = vunpack.c.l.b16 %v862
    %v2084 = vunpack.c.l.b16 %v863
    %v2085 = vunpack.c.h.b16 %v863
    %v2086 = vunpack.c.l.b16 %v864
    %v2087 = vunpack.c.h.b16 %v864
    %v2088 = vunpack.c.l.b16 %v865
    %v2089 = vunpack.c.h.b16 %v865
    %v2090 = vunpack.c.l.b16 %v866
    %v2091 = vunpack.c.l.b16 %v867
    %v2092 = vunpack.c.h.b16 %v867
    %v2093 = vunpack.c.l.b16 %v868
    %v2094 = vunpack.c.h.b16 %v868
    %v2095 = vunpack.c.l.b16 %v869
    %v2096 = vunpack.c.h.b16 %v869
    %v2097 = vunpack.c.l.b16 %v870
    %v2098 = vunpack.c.l.b16 %v871
    %v2099 = vunpack.c.h.b16 %v871
    %v2100 = vunpack.c.l.b16 %v872
    %v2101 = vunpack.c.h.b16 %v872
    %v2102 = vunpack.c.l.b16 %v873
    %v2103 = vunpack.c.h.b16 %v873
    %v2104 = vunpack.c.l.b16 %v874
    %v2105 = vunpack.c.l.b16 %v875
    %v2106 = vunpack.c.h.b16 %v875
    %v2107 = vunpack.c.l.b16 %v876
    %v2108 = vunpack.c.h.b16 %v876
    %v2109 = vunpack.c.l.b16 %v877
    %v2110 = vunpack.c.h.b16 %v877
    %v2111 = vunpack.c.l.b16 %v878
    %v2112 = vunpack.c.l.b16 %v879
    %v2113 = vunpack.c.h.b16 %v879
    %v2114 = vunpack.c.l.b16 %v880
    %v2115 = vunpack.c.h.b16 %v880
    %v2116 = vunpack.c.l.b16 %v881
    %v2117 = vunpack.c.h.b16 %v881
    %v2118 = vunpack.c.l.b16 %v882
    %v2119 = vunpack.c.l.b16 %v883
    %v2120 = vunpack.c.h.b16 %v883
    %v2121 = vunpack.c.l.b16 %v884
    %v2122 = vunpack.c.h.b16 %v884
    %v2123 = vunpack.c.l.b16 %v885
    %v2124 = vunpack.c.h.b16 %v885
    %v2125 = vunpack.c.l.b16 %v886
    %v2126 = vunpack.c.l.b16 %v887
    %v2127 = vunpack.c.h.b16 %v887
    %v2128 = vunpack.c.l.b16 %v888
    %v2129 = vunpack.c.h.b16 %v888
    %v2130 = vunpack.c.l.b16 %v889
    %v2131 = vunpack.c.h.b16 %v889
    %v2132 = vunpack.c.l.b16 %v890
    %v2133 = vunpack.c.l.b16 %v891
    %v2134 = vunpack.c.h.b16 %v891
    %v2135 = vunpack.c.l.b16 %v892
    %v2136 = vunpack.c.h.b16 %v892
    %v2137 = vunpack.c.l.b16 %v893
    %v2138 = vunpack.c.h.b16 %v893
    %v2139 = vunpack.c.l.b16 %v894
    %v2140 = vunpack.c.l.b16 %v895
    %v2141 = vunpack.c.h.b16 %v895
    %v2142 = vunpack.c.l.b16 %v896
    %v2143 = vunpack.c.h.b16 %v896
    %v2144 = vunpack.c.l.b16 %v897
    %v2145 = vunpack.c.h.b16 %v897
    %v2146 = vunpack.c.l.b16 %v898
    %v2147 = vpack.c.b16 %v1370, %v1363
    %v2148 = vpack.c.b16 %v1371, %v1364
    %v2149 = vpack.c.b16 %v1372, %v1365
    %v2150 = vpack.c.b16 %v1373, %v1366
    %v2151 = vpack.c.b16 %v1374, %v1367
    %v2152 = vpack.c.b16 %v1375, %v1368
    %v2153 = vpack.c.b16 %v1376, %v1369
    %v2154 = vpack.c.b16 %v1384, %v1377
    %v2155 = vpack.c.b16 %v1385, %v1378
    %v2156 = vpack.c.b16 %v1386, %v1379
    %v2157 = vpack.c.b16 %v1387, %v1380
    %v2158 = vpack.c.b16 %v1388, %v1381
    %v2159 = vpack.c.b16 %v1389, %v1382
    %v2160 = vpack.c.b16 %v1390, %v1383
    %v2161 = vpack.c.b16 %v1398, %v1391
    %v2162 = vpack.c.b16 %v1399, %v1392
    %v2163 = vpack.c.b16 %v1400, %v1393
    %v2164 = vpack.c.b16 %v1401, %v1394
    %v2165 = vpack.c.b16 %v1402, %v1395
    %v2166 = vpack.c.b16 %v1403, %v1396
    %v2167 = vpack.c.b16 %v1404, %v1397
    %v2168 = vpack.c.b16 %v1412, %v1405
    %v2169 = vpack.c.b16 %v1413, %v1406
    %v2170 = vpack.c.b16 %v1414, %v1407
    %v2171 = vpack.c.b16 %v1415, %v1408
    %v2172 = vpack.c.b16 %v1416, %v1409
    %v2173 = vpack.c.b16 %v1417, %v1410
    %v2174 = vpack.c.b16 %v1418, %v1411
    %v2175 = vpack.c.b16 %v1426, %v1419
    %v2176 = vpack.c.b16 %v1427, %v1420
    %v2177 = vpack.c.b16 %v1428, %v1421
    %v2178 = vpack.c.b16 %v1429, %v1422
    %v2179 = vpack.c.b16 %v1430, %v1423
    %v2180 = vpack.c.b16 %v1431, %v1424
    %v2181 = vpack.c.b16 %v1432, %v1425
    %v2182 = vpack.c.b16 %v1440, %v1433
    %v2183 = vpack.c.b16 %v1441, %v1434
    %v2184 = vpack.c.b16 %v1442, %v1435
    %v2185 = vpack.c.b16 %v1443, %v1436
    %v2186 = vpack.c.b16 %v1444, %v1437
    %v2187 = vpack.c.b16 %v1445, %v1438
    %v2188 = vpack.c.b16 %v1446, %v1439
    %v2189 = vpack.c.b16 %v1454, %v1447
    %v2190 = vpack.c.b16 %v1455, %v1448
    %v2191 = vpack.c.b16 %v1456, %v1449
    %v2192 = vpack.c.b16 %v1457, %v1450
    %v2193 = vpack.c.b16 %v1458, %v1451
    %v2194 = vpack.c.b16 %v1459, %v1452
    %v2195 = vpack.c.b16 %v1460, %v1453
    %v2196 = vpack.c.b16 %v1468, %v1461
    %v2197 = vpack.c.b16 %v1469, %v1462
    %v2198 = vpack.c.b16 %v1470, %v1463
    %v2199 = vpack.c.b16 %v1471, %v1464
    %v2200 = vpack.c.b16 %v1472, %v1465
    %v2201 = vpack.c.b16 %v1473, %v1466
    %v2202 = vpack.c.b16 %v1474, %v1467
    %v2203 = vpack.c.b16 %v1482, %v1475
    %v2204 = vpack.c.b16 %v1483, %v1476
    %v2205 = vpack.c.b16 %v1484, %v1477
    %v2206 = vpack.c.b16 %v1485, %v1478
    %v2207 = vpack.c.b16 %v1486, %v1479
    %v2208 = vpack.c.b16 %v1487, %v1480
    %v2209 = vpack.c.b16 %v1488, %v1481
    %v2210 = vpack.c.b16 %v1496, %v1489
    %v2211 = vpack.c.b16 %v1497, %v1490
    %v2212 = vpack.c.b16 %v1498, %v1491
    %v2213 = vpack.c.b16 %v1499, %v1492
    %v2214 = vpack.c.b16 %v1500, %v1493
    %v2215 = vpack.c.b16 %v1501, %v1494
    %v2216 = vpack.c.b16 %v1502, %v1495
    %v2217 = vpack.c.b16 %v1510, %v1503
    %v2218 = vpack.c.b16 %v1511, %v1504
    %v2219 = vpack.c.b16 %v1512, %v1505
    %v2220 = vpack.c.b16 %v1513, %v1506
    %v2221 = vpack.c.b16 %v1514, %v1507
    %v2222 = vpack.c.b16 %v1515, %v1508
    %v2223 = vpack.c.b16 %v1516, %v1509
    %v2224 = vpack.c.b16 %v1524, %v1517
    %v2225 = vpack.c.b16 %v1525, %v1518
    %v2226 = vpack.c.b16 %v1526, %v1519
    %v2227 = vpack.c.b16 %v1527, %v1520
    %v2228 = vpack.c.b16 %v1528, %v1521
    %v2229 = vpack.c.b16 %v1529, %v1522
    %v2230 = vpack.c.b16 %v1530, %v1523
    %v2231 = vpack.c.b16 %v1538, %v1531
    %v2232 = vpack.c.b16 %v1539, %v1532
    %v2233 = vpack.c.b16 %v1540, %v1533
    %v2234 = vpack.c.b16 %v1541, %v1534
    %v2235 = vpack.c.b16 %v1542, %v1535
    %v2236 = vpack.c.b16 %v1543, %v1536
    %v2237 = vpack.c.b16 %v1544, %v1537
    %v2238 = vpack.c.b16 %v1552, %v1545
    %v2239 = vpack.c.b16 %v1553, %v1546
    %v2240 = vpack.c.b16 %v1554, %v1547
    %v2241 = vpack.c.b16 %v1555, %v1548
    %v2242 = vpack.c.b16 %v1556, %v1549
    %v2243 = vpack.c.b16 %v1557, %v1550
    %v2244 = vpack.c.b16 %v1558, %v1551
    %v2245 = vpack.c.b16 %v1566, %v1559
    %v2246 = vpack.c.b16 %v1567, %v1560
    %v2247 = vpack.c.b16 %v1568, %v1561
    %v2248 = vpack.c.b16 %v1569, %v1562
    %v2249 = vpack.c.b16 %v1570, %v1563
    %v2250 = vpack.c.b16 %v1571, %v1564
    %v2251 = vpack.c.b16 %v1572, %v1565
    %v2252 = vpack.c.b16 %v1580, %v1573
    %v2253 = vpack.c.b16 %v1581, %v1574
    %v2254 = vpack.c.b16 %v1582, %v1575
    %v2255 = vpack.c.b16 %v1583, %v1576
    %v2256 = vpack.c.b16 %v1584, %v1577
    %v2257 = vpack.c.b16 %v1585, %v1578
    %v2258 = vpack.c.b16 %v1586, %v1579
    %v2259 = vpack.c.b16 %v1594, %v1587
    %v2260 = vpack.c.b16 %v1595, %v1588
    %v2261 = vpack.c.b16 %v1596, %v1589
    %v2262 = vpack.c.b16 %v1597, %v1590
    %v2263 = vpack.c.b16 %v1598, %v1591
    %v2264 = vpack.c.b16 %v1599, %v1592
    %v2265 = vpack.c.b16 %v1600, %v1593
    %v2266 = vpack.c.b16 %v1608, %v1601
    %v2267 = vpack.c.b16 %v1609, %v1602
    %v2268 = vpack.c.b16 %v1610, %v1603
    %v2269 = vpack.c.b16 %v1611, %v1604
    %v2270 = vpack.c.b16 %v1612, %v1605
    %v2271 = vpack.c.b16 %v1613, %v1606
    %v2272 = vpack.c.b16 %v1614, %v1607
    %v2273 = vpack.c.b16 %v1622, %v1615
    %v2274 = vpack.c.b16 %v1623, %v1616
    %v2275 = vpack.c.b16 %v1624, %v1617
    %v2276 = vpack.c.b16 %v1625, %v1618
    %v2277 = vpack.c.b16 %v1626, %v1619
    %v2278 = vpack.c.b16 %v1627, %v1620
    %v2279 = vpack.c.b16 %v1628, %v1621
    %v2280 = vpack.c.b16 %v1636, %v1629
    %v2281 = vpack.c.b16 %v1637, %v1630
    %v2282 = vpack.c.b16 %v1638, %v1631
    %v2283 = vpack.c.b16 %v1639, %v1632
    %v2284 = vpack.c.b16 %v1640, %v1633
    %v2285 = vpack.c.b16 %v1641, %v1634
    %v2286 = vpack.c.b16 %v1642, %v1635
    %v2287 = vpack.c.b16 %v1650, %v1643
    %v2288 = vpack.c.b16 %v1651, %v1644
    %v2289 = vpack.c.b16 %v1652, %v1645
    %v2290 = vpack.c.b16 %v1653, %v1646
    %v2291 = vpack.c.b16 %v1654, %v1647
    %v2292 = vpack.c.b16 %v1655, %v1648
    %v2293 = vpack.c.b16 %v1656, %v1649
    %v2294 = vpack.c.b16 %v1664, %v1657
    %v2295 = vpack.c.b16 %v1665, %v1658
    %v2296 = vpack.c.b16 %v1666, %v1659
    %v2297 = vpack.c.b16 %v1667, %v1660
    %v2298 = vpack.c.b16 %v1668, %v1661
    %v2299 = vpack.c.b16 %v1669, %v1662
    %v2300 = vpack.c.b16 %v1670, %v1663
    %v2301 = vpack.c.b16 %v1678, %v1671
    %v2302 = vpack.c.b16 %v1679, %v1672
    %v2303 = vpack.c.b16 %v1680, %v1673
    %v2304 = vpack.c.b16 %v1681, %v1674
    %v2305 = vpack.c.b16 %v1682, %v1675
    %v2306 = vpack.c.b16 %v1683, %v1676
    %v2307 = vpack.c.b16 %v1684, %v1677
    %v2308 = vpack.c.b16 %v1692, %v1685
    %v2309 = vpack.c.b16 %v1693, %v1686
    %v2310 = vpack.c.b16 %v1694, %v1687
    %v2311 = vpack.c.b16 %v1695, %v1688
    %v2312 = vpack.c.b16 %v1696, %v1689
    %v2313 = vpack.c.b16 %v1697, %v1690
    %v2314 = vpack.c.b16 %v1698, %v1691
    %v2315 = vpack.c.b16 %v1706, %v1699
    %v2316 = vpack.c.b16 %v1707, %v1700
    %v2317 = vpack.c.b16 %v1708, %v1701
    %v2318 = vpack.c.b16 %v1709, %v1702
    %v2319 = vpack.c.b16 %v1710, %v1703
    %v2320 = vpack.c.b16 %v1711, %v1704
    %v2321 = vpack.c.b16 %v1712, %v1705
    %v2322 = vpack.c.b16 %v1720, %v1713
    %v2323 = vpack.c.b16 %v1721, %v1714
    %v2324 = vpack.c.b16 %v1722, %v1715
    %v2325 = vpack.c.b16 %v1723, %v1716
    %v2326 = vpack.c.b16 %v1724, %v1717
    %v2327 = vpack.c.b16 %v1725, %v1718
    %v2328 = vpack.c.b16 %v1726, %v1719
    %v2329 = vpack.c.b16 %v1734, %v1727
    %v2330 = vpack.c.b16 %v1735, %v1728
    %v2331 = vpack.c.b16 %v1736, %v1729
    %v2332 = vpack.c.b16 %v1737, %v1730
    %v2333 = vpack.c.b16 %v1738, %v1731
    %v2334 = vpack.c.b16 %v1739, %v1732
    %v2335 = vpack.c.b16 %v1740, %v1733
    %v2336 = vpack.c.b16 %v1748, %v1741
    %v2337 = vpack.c.b16 %v1749, %v1742
    %v2338 = vpack.c.b16 %v1750, %v1743
    %v2339 = vpack.c.b16 %v1751, %v1744
    %v2340 = vpack.c.b16 %v1752, %v1745
    %v2341 = vpack.c.b16 %v1753, %v1746
    %v2342 = vpack.c.b16 %v1754, %v1747
    %v2343 = vpack.c.b16 %v1762, %v1755
    %v2344 = vpack.c.b16 %v1763, %v1756
    %v2345 = vpack.c.b16 %v1764, %v1757
    %v2346 = vpack.c.b16 %v1765, %v1758
    %v2347 = vpack.c.b16 %v1766, %v1759
    %v2348 = vpack.c.b16 %v1767, %v1760
    %v2349 = vpack.c.b16 %v1768, %v1761
    %v2350 = vpack.c.b16 %v1776, %v1769
    %v2351 = vpack.c.b16 %v1777, %v1770
    %v2352 = vpack.c.b16 %v1778, %v1771
    %v2353 = vpack.c.b16 %v1779, %v1772
    %v2354 = vpack.c.b16 %v1780, %v1773
    %v2355 = vpack.c.b16 %v1781, %v1774
    %v2356 = vpack.c.b16 %v1782, %v1775
    %v2357 = vpack.c.b16 %v1790, %v1783
    %v2358 = vpack.c.b16 %v1791, %v1784
    %v2359 = vpack.c.b16 %v1792, %v1785
    %v2360 = vpack.c.b16 %v1793, %v1786
    %v2361 = vpack.c.b16 %v1794, %v1787
    %v2362 = vpack.c.b16 %v1795, %v1788
    %v2363 = vpack.c.b16 %v1796, %v1789
    %v2364 = vpack.c.b16 %v1804, %v1797
    %v2365 = vpack.c.b16 %v1805, %v1798
    %v2366 = vpack.c.b16 %v1806, %v1799
    %v2367 = vpack.c.b16 %v1807, %v1800
    %v2368 = vpack.c.b16 %v1808, %v1801
    %v2369 = vpack.c.b16 %v1809, %v1802
    %v2370 = vpack.c.b16 %v1810, %v1803
    %v2371 = vpack.c.b16 %v1818, %v1811
    %v2372 = vpack.c.b16 %v1819, %v1812
    %v2373 = vpack.c.b16 %v1820, %v1813
    %v2374 = vpack.c.b16 %v1821, %v1814
    %v2375 = vpack.c.b16 %v1822, %v1815
    %v2376 = vpack.c.b16 %v1823, %v1816
    %v2377 = vpack.c.b16 %v1824, %v1817
    %v2378 = vpack.c.b16 %v1832, %v1825
    %v2379 = vpack.c.b16 %v1833, %v1826
    %v2380 = vpack.c.b16 %v1834, %v1827
    %v2381 = vpack.c.b16 %v1835, %v1828
    %v2382 = vpack.c.b16 %v1836, %v1829
    %v2383 = vpack.c.b16 %v1837, %v1830
    %v2384 = vpack.c.b16 %v1838, %v1831
    %v2385 = vpack.c.b16 %v1846, %v1839
    %v2386 = vpack.c.b16 %v1847, %v1840
    %v2387 = vpack.c.b16 %v1848, %v1841
    %v2388 = vpack.c.b16 %v1849, %v1842
    %v2389 = vpack.c.b16 %v1850, %v1843
    %v2390 = vpack.c.b16 %v1851, %v1844
    %v2391 = vpack.c.b16 %v1852, %v1845
    %v2392 = vpack.c.b16 %v1860, %v1853
    %v2393 = vpack.c.b16 %v1861, %v1854
    %v2394 = vpack.c.b16 %v1862, %v1855
    %v2395 = vpack.c.b16 %v1863, %v1856
    %v2396 = vpack.c.b16 %v1864, %v1857
    %v2397 = vpack.c.b16 %v1865, %v1858
    %v2398 = vpack.c.b16 %v1866, %v1859
    %v2399 = vpack.c.b16 %v1874, %v1867
    %v2400 = vpack.c.b16 %v1875, %v1868
    %v2401 = vpack.c.b16 %v1876, %v1869
    %v2402 = vpack.c.b16 %v1877, %v1870
    %v2403 = vpack.c.b16 %v1878, %v1871
    %v2404 = vpack.c.b16 %v1879, %v1872
    %v2405 = vpack.c.b16 %v1880, %v1873
    %v2406 = vpack.c.b16 %v1888, %v1881
    %v2407 = vpack.c.b16 %v1889, %v1882
    %v2408 = vpack.c.b16 %v1890, %v1883
    %v2409 = vpack.c.b16 %v1891, %v1884
    %v2410 = vpack.c.b16 %v1892, %v1885
    %v2411 = vpack.c.b16 %v1893, %v1886
    %v2412 = vpack.c.b16 %v1894, %v1887
    %v2413 = vpack.c.b16 %v1902, %v1895
    %v2414 = vpack.c.b16 %v1903, %v1896
    %v2415 = vpack.c.b16 %v1904, %v1897
    %v2416 = vpack.c.b16 %v1905, %v1898
    %v2417 = vpack.c.b16 %v1906, %v1899
    %v2418 = vpack.c.b16 %v1907, %v1900
    %v2419 = vpack.c.b16 %v1908, %v1901
    %v2420 = vpack.c.b16 %v1916, %v1909
    %v2421 = vpack.c.b16 %v1917, %v1910
    %v2422 = vpack.c.b16 %v1918, %v1911
    %v2423 = vpack.c.b16 %v1919, %v1912
    %v2424 = vpack.c.b16 %v1920, %v1913
    %v2425 = vpack.c.b16 %v1921, %v1914
    %v2426 = vpack.c.b16 %v1922, %v1915
    %v2427 = vpack.c.b16 %v1930, %v1923
    %v2428 = vpack.c.b16 %v1931, %v1924
    %v2429 = vpack.c.b16 %v1932, %v1925
    %v2430 = vpack.c.b16 %v1933, %v1926
    %v2431 = vpack.c.b16 %v1934, %v1927
    %v2432 = vpack.c.b16 %v1935, %v1928
    %v2433 = vpack.c.b16 %v1936, %v1929
    %v2434 = vpack.c.b16 %v1944, %v1937
    %v2435 = vpack.c.b16 %v1945, %v1938
    %v2436 = vpack.c.b16 %v1946, %v1939
    %v2437 = vpack.c.b16 %v1947, %v1940
    %v2438 = vpack.c.b16 %v1948, %v1941
    %v2439 = vpack.c.b16 %v1949, %v1942
    %v2440 = vpack.c.b16 %v1950, %v1943
    %v2441 = vpack.c.b16 %v1958, %v1951
    %v2442 = vpack.c.b16 %v1959, %v1952
    %v2443 = vpack.c.b16 %v1960, %v1953
    %v2444 = vpack.c.b16 %v1961, %v1954
    %v2445 = vpack.c.b16 %v1962, %v1955
    %v2446 = vpack.c.b16 %v1963, %v1956
    %v2447 = vpack.c.b16 %v1964, %v1957
    %v2448 = vpack.c.b16 %v1972, %v1965
    %v2449 = vpack.c.b16 %v1973, %v1966
    %v2450 = vpack.c.b16 %v1974, %v1967
    %v2451 = vpack.c.b16 %v1975, %v1968
    %v2452 = vpack.c.b16 %v1976, %v1969
    %v2453 = vpack.c.b16 %v1977, %v1970
    %v2454 = vpack.c.b16 %v1978, %v1971
    %v2455 = vpack.c.b16 %v1986, %v1979
    %v2456 = vpack.c.b16 %v1987, %v1980
    %v2457 = vpack.c.b16 %v1988, %v1981
    %v2458 = vpack.c.b16 %v1989, %v1982
    %v2459 = vpack.c.b16 %v1990, %v1983
    %v2460 = vpack.c.b16 %v1991, %v1984
    %v2461 = vpack.c.b16 %v1992, %v1985
    %v2462 = vpack.c.b16 %v2000, %v1993
    %v2463 = vpack.c.b16 %v2001, %v1994
    %v2464 = vpack.c.b16 %v2002, %v1995
    %v2465 = vpack.c.b16 %v2003, %v1996
    %v2466 = vpack.c.b16 %v2004, %v1997
    %v2467 = vpack.c.b16 %v2005, %v1998
    %v2468 = vpack.c.b16 %v2006, %v1999
    %v2469 = vpack.c.b16 %v2014, %v2007
    %v2470 = vpack.c.b16 %v2015, %v2008
    %v2471 = vpack.c.b16 %v2016, %v2009
    %v2472 = vpack.c.b16 %v2017, %v2010
    %v2473 = vpack.c.b16 %v2018, %v2011
    %v2474 = vpack.c.b16 %v2019, %v2012
    %v2475 = vpack.c.b16 %v2020, %v2013
    %v2476 = vpack.c.b16 %v2028, %v2021
    %v2477 = vpack.c.b16 %v2029, %v2022
    %v2478 = vpack.c.b16 %v2030, %v2023
    %v2479 = vpack.c.b16 %v2031, %v2024
    %v2480 = vpack.c.b16 %v2032, %v2025
    %v2481 = vpack.c.b16 %v2033, %v2026
    %v2482 = vpack.c.b16 %v2034, %v2027
    %v2483 = vpack.c.b16 %v2042, %v2035
    %v2484 = vpack.c.b16 %v2043, %v2036
    %v2485 = vpack.c.b16 %v2044, %v2037
    %v2486 = vpack.c.b16 %v2045, %v2038
    %v2487 = vpack.c.b16 %v2046, %v2039
    %v2488 = vpack.c.b16 %v2047, %v2040
    %v2489 = vpack.c.b16 %v2048, %v2041
    %v2490 = vpack.c.b16 %v2056, %v2049
    %v2491 = vpack.c.b16 %v2057, %v2050
    %v2492 = vpack.c.b16 %v2058, %v2051
    %v2493 = vpack.c.b16 %v2059, %v2052
    %v2494 = vpack.c.b16 %v2060, %v2053
    %v2495 = vpack.c.b16 %v2061, %v2054
    %v2496 = vpack.c.b16 %v2062, %v2055
    %v2497 = vpack.c.b16 %v2070, %v2063
    %v2498 = vpack.c.b16 %v2071, %v2064
    %v2499 = vpack.c.b16 %v2072, %v2065
    %v2500 = vpack.c.b16 %v2073, %v2066
    %v2501 = vpack.c.b16 %v2074, %v2067
    %v2502 = vpack.c.b16 %v2075, %v2068
    %v2503 = vpack.c.b16 %v2076, %v2069
    %v2504 = vpack.c.b16 %v2084, %v2077
    %v2505 = vpack.c.b16 %v2085, %v2078
    %v2506 = vpack.c.b16 %v2086, %v2079
    %v2507 = vpack.c.b16 %v2087, %v2080
    %v2508 = vpack.c.b16 %v2088, %v2081
    %v2509 = vpack.c.b16 %v2089, %v2082
    %v2510 = vpack.c.b16 %v2090, %v2083
    %v2511 = vpack.c.b16 %v2098, %v2091
    %v2512 = vpack.c.b16 %v2099, %v2092
    %v2513 = vpack.c.b16 %v2100, %v2093
    %v2514 = vpack.c.b16 %v2101, %v2094
    %v2515 = vpack.c.b16 %v2102, %v2095
    %v2516 = vpack.c.b16 %v2103, %v2096
    %v2517 = vpack.c.b16 %v2104, %v2097
    %v2518 = vpack.c.b16 %v2112, %v2105
    %v2519 = vpack.c.b16 %v2113, %v2106
    %v2520 = vpack.c.b16 %v2114, %v2107
    %v2521 = vpack.c.b16 %v2115, %v2108
    %v2522 = vpack.c.b16 %v2116, %v2109
    %v2523 = vpack.c.b16 %v2117, %v2110
    %v2524 = vpack.c.b16 %v2118, %v2111
    %v2525 = vpack.c.b16 %v2126, %v2119
    %v2526 = vpack.c.b16 %v2127, %v2120
    %v2527 = vpack.c.b16 %v2128, %v2121
    %v2528 = vpack.c.b16 %v2129, %v2122
    %v2529 = vpack.c.b16 %v2130, %v2123
    %v2530 = vpack.c.b16 %v2131, %v2124
    %v2531 = vpack.c.b16 %v2132, %v2125
    %v2532 = vpack.c.b16 %v2140, %v2133
    %v2533 = vpack.c.b16 %v2141, %v2134
    %v2534 = vpack.c.b16 %v2142, %v2135
    %v2535 = vpack.c.b16 %v2143, %v2136
    %v2536 = vpack.c.b16 %v2144, %v2137
    %v2537 = vpack.c.b16 %v2145, %v2138
    %v2538 = vpack.c.b16 %v2146, %v2139
    %2931 = vmatpush.bf16.msra.mxu0 %v2196
    %2932 = vmatpush.bf16.msra.mxu0 %v2189
    %2933 = vmatpush.bf16.msra.mxu0 %v2182
    %2934 = vmatpush.bf16.msra.mxu0 %v2175
    %2935 = vmatpush.bf16.msra.mxu0 %v2168
    %2936 = vmatpush.bf16.msra.mxu0 %v2161
    %2937 = vmatpush.bf16.msra.mxu0 %v2154
    %2938 = vmatpush.bf16.msra.mxu0 %v2147
    %2939 = vmatmul.bf16.gmra.mxu0 %v444
    %v2940 = vpop.f32.mrf.mxu0
    %v2941 = vadd.f32 %v901, %v2940
    %v2942 = vpop.f32.mrf.mxu0
    %2943 = vdwg.mxu0
    %2944 = vmatpush.bf16.msra.mxu0 %v2252
    %2945 = vmatpush.bf16.msra.mxu0 %v2245
    %2946 = vmatpush.bf16.msra.mxu0 %v2238
    %2947 = vmatpush.bf16.msra.mxu0 %v2231
    %2948 = vmatpush.bf16.msra.mxu0 %v2224
    %2949 = vmatpush.bf16.msra.mxu0 %v2217
    %2950 = vmatpush.bf16.msra.mxu0 %v2210
    %2951 = vmatpush.bf16.msra.mxu0 %v2203
    %2952 = vmatmul.bf16.gmra.mxu0 %v445
    %v2953 = vpop.f32.mrf.mxu0
    %v2954 = vadd.f32 %v2941, %v2953
    %v2955 = vpop.f32.mrf.mxu0
    %2956 = vdwg.mxu0
    %2957 = vmatpush.bf16.msra.mxu0 %v2308
    %2958 = vmatpush.bf16.msra.mxu0 %v2301
    %2959 = vmatpush.bf16.msra.mxu0 %v2294
    %2960 = vmatpush.bf16.msra.mxu0 %v2287
    %2961 = vmatpush.bf16.msra.mxu0 %v2280
    %2962 = vmatpush.bf16.msra.mxu0 %v2273
    %2963 = vmatpush.bf16.msra.mxu0 %v2266
    %2964 = vmatpush.bf16.msra.mxu0 %v2259
    %2965 = vmatmul.bf16.gmra.mxu0 %v446
    %v2966 = vpop.f32.mrf.mxu0
    %v2967 = vadd.f32 %v2954, %v2966
    %v2968 = vpop.f32.mrf.mxu0
    %2969 = vdwg.mxu0
    %2970 = vmatpush.bf16.msra.mxu0 %v2364
    %2971 = vmatpush.bf16.msra.mxu0 %v2357
    %2972 = vmatpush.bf16.msra.mxu0 %v2350
    %2973 = vmatpush.bf16.msra.mxu0 %v2343
    %2974 = vmatpush.bf16.msra.mxu0 %v2336
    %2975 = vmatpush.bf16.msra.mxu0 %v2329
    %2976 = vmatpush.bf16.msra.mxu0 %v2322
    %2977 = vmatpush.bf16.msra.mxu0 %v2315
    %2978 = vmatmul.bf16.gmra.mxu0 %v447
    %v2979 = vpop.f32.mrf.mxu0
    %v2980 = vadd.f32 %v2967, %v2979
    %v2981 = vpop.f32.mrf.mxu0
    %2982 = vdwg.mxu0
    %2983 = vmatpush.bf16.msra.mxu0 %v2420
    %2984 = vmatpush.bf16.msra.mxu0 %v2413
    %2985 = vmatpush.bf16.msra.mxu0 %v2406
    %2986 = vmatpush.bf16.msra.mxu0 %v2399
    %2987 = vmatpush.bf16.msra.mxu0 %v2392
    %2988 = vmatpush.bf16.msra.mxu0 %v2385
    %2989 = vmatpush.bf16.msra.mxu0 %v2378
    %2990 = vmatpush.bf16.msra.mxu0 %v2371
    %2991 = vmatmul.bf16.gmra.mxu0 %v448
    %v2992 = vpop.f32.mrf.mxu0
    %v2993 = vadd.f32 %v2980, %v2992
    %v2994 = vpop.f32.mrf.mxu0
    %2995 = vdwg.mxu0
    %2996 = vmatpush.bf16.msra.mxu0 %v2476
    %2997 = vmatpush.bf16.msra.mxu0 %v2469
    %2998 = vmatpush.bf16.msra.mxu0 %v2462
    %2999 = vmatpush.bf16.msra.mxu0 %v2455
    %3000 = vmatpush.bf16.msra.mxu0 %v2448
    %3001 = vmatpush.bf16.msra.mxu0 %v2441
    %3002 = vmatpush.bf16.msra.mxu0 %v2434
    %3003 = vmatpush.bf16.msra.mxu0 %v2427
    %3004 = vmatmul.bf16.gmra.mxu0 %v449
    %v3005 = vpop.f32.mrf.mxu0
    %v3006 = vadd.f32 %v2993, %v3005
    %v3007 = vpop.f32.mrf.mxu0
    %3008 = vdwg.mxu0
    %3009 = vmatpush.bf16.msra.mxu0 %v2532
    %3010 = vmatpush.bf16.msra.mxu0 %v2525
    %3011 = vmatpush.bf16.msra.mxu0 %v2518
    %3012 = vmatpush.bf16.msra.mxu0 %v2511
    %3013 = vmatpush.bf16.msra.mxu0 %v2504
    %3014 = vmatpush.bf16.msra.mxu0 %v2497
    %3015 = vmatpush.bf16.msra.mxu0 %v2490
    %3016 = vmatpush.bf16.msra.mxu0 %v2483
    %3017 = vmatmul.bf16.gmra.mxu0 %v450
    %v3018 = vpop.f32.mrf.mxu0
    %v3019 = vadd.f32 %v3006, %v3018
    %v3020 = vpop.f32.mrf.mxu0
    %3021 = vdwg.mxu0
    %3022 = vmatpush.bf16.msra.mxu0 %v2197
    %3023 = vmatpush.bf16.msra.mxu0 %v2190
    %3024 = vmatpush.bf16.msra.mxu0 %v2183
    %3025 = vmatpush.bf16.msra.mxu0 %v2176
    %3026 = vmatpush.bf16.msra.mxu0 %v2169
    %3027 = vmatpush.bf16.msra.mxu0 %v2162
    %3028 = vmatpush.bf16.msra.mxu0 %v2155
    %3029 = vmatpush.bf16.msra.mxu0 %v2148
    %3030 = vmatmul.bf16.gmra.mxu0 %v444
    %v3031 = vpop.f32.mrf.mxu0
    %v3032 = vadd.f32 %v902, %v3031
    %v3033 = vpop.f32.mrf.mxu0
    %3034 = vdwg.mxu0
    %3035 = vmatpush.bf16.msra.mxu0 %v2253
    %3036 = vmatpush.bf16.msra.mxu0 %v2246
    %3037 = vmatpush.bf16.msra.mxu0 %v2239
    %3038 = vmatpush.bf16.msra.mxu0 %v2232
    %3039 = vmatpush.bf16.msra.mxu0 %v2225
    %3040 = vmatpush.bf16.msra.mxu0 %v2218
    %3041 = vmatpush.bf16.msra.mxu0 %v2211
    %3042 = vmatpush.bf16.msra.mxu0 %v2204
    %3043 = vmatmul.bf16.gmra.mxu0 %v445
    %v3044 = vpop.f32.mrf.mxu0
    %v3045 = vadd.f32 %v3032, %v3044
    %v3046 = vpop.f32.mrf.mxu0
    %3047 = vdwg.mxu0
    %3048 = vmatpush.bf16.msra.mxu0 %v2309
    %3049 = vmatpush.bf16.msra.mxu0 %v2302
    %3050 = vmatpush.bf16.msra.mxu0 %v2295
    %3051 = vmatpush.bf16.msra.mxu0 %v2288
    %3052 = vmatpush.bf16.msra.mxu0 %v2281
    %3053 = vmatpush.bf16.msra.mxu0 %v2274
    %3054 = vmatpush.bf16.msra.mxu0 %v2267
    %3055 = vmatpush.bf16.msra.mxu0 %v2260
    %3056 = vmatmul.bf16.gmra.mxu0 %v446
    %v3057 = vpop.f32.mrf.mxu0
    %v3058 = vadd.f32 %v3045, %v3057
    %v3059 = vpop.f32.mrf.mxu0
    %3060 = vdwg.mxu0
    %3061 = vmatpush.bf16.msra.mxu0 %v2365
    %3062 = vmatpush.bf16.msra.mxu0 %v2358
    %3063 = vmatpush.bf16.msra.mxu0 %v2351
    %3064 = vmatpush.bf16.msra.mxu0 %v2344
    %3065 = vmatpush.bf16.msra.mxu0 %v2337
    %3066 = vmatpush.bf16.msra.mxu0 %v2330
    %3067 = vmatpush.bf16.msra.mxu0 %v2323
    %3068 = vmatpush.bf16.msra.mxu0 %v2316
    %3069 = vmatmul.bf16.gmra.mxu0 %v447
    %v3070 = vpop.f32.mrf.mxu0
    %v3071 = vadd.f32 %v3058, %v3070
    %v3072 = vpop.f32.mrf.mxu0
    %3073 = vdwg.mxu0
    %3074 = vmatpush.bf16.msra.mxu0 %v2421
    %3075 = vmatpush.bf16.msra.mxu0 %v2414
    %3076 = vmatpush.bf16.msra.mxu0 %v2407
    %3077 = vmatpush.bf16.msra.mxu0 %v2400
    %3078 = vmatpush.bf16.msra.mxu0 %v2393
    %3079 = vmatpush.bf16.msra.mxu0 %v2386
    %3080 = vmatpush.bf16.msra.mxu0 %v2379
    %3081 = vmatpush.bf16.msra.mxu0 %v2372
    %3082 = vmatmul.bf16.gmra.mxu0 %v448
    %v3083 = vpop.f32.mrf.mxu0
    %v3084 = vadd.f32 %v3071, %v3083
    %v3085 = vpop.f32.mrf.mxu0
    %3086 = vdwg.mxu0
    %3087 = vmatpush.bf16.msra.mxu0 %v2477
    %3088 = vmatpush.bf16.msra.mxu0 %v2470
    %3089 = vmatpush.bf16.msra.mxu0 %v2463
    %3090 = vmatpush.bf16.msra.mxu0 %v2456
    %3091 = vmatpush.bf16.msra.mxu0 %v2449
    %3092 = vmatpush.bf16.msra.mxu0 %v2442
    %3093 = vmatpush.bf16.msra.mxu0 %v2435
    %3094 = vmatpush.bf16.msra.mxu0 %v2428
    %3095 = vmatmul.bf16.gmra.mxu0 %v449
    %v3096 = vpop.f32.mrf.mxu0
    %v3097 = vadd.f32 %v3084, %v3096
    %v3098 = vpop.f32.mrf.mxu0
    %3099 = vdwg.mxu0
    %3100 = vmatpush.bf16.msra.mxu0 %v2533
    %3101 = vmatpush.bf16.msra.mxu0 %v2526
    %3102 = vmatpush.bf16.msra.mxu0 %v2519
    %3103 = vmatpush.bf16.msra.mxu0 %v2512
    %3104 = vmatpush.bf16.msra.mxu0 %v2505
    %3105 = vmatpush.bf16.msra.mxu0 %v2498
    %3106 = vmatpush.bf16.msra.mxu0 %v2491
    %3107 = vmatpush.bf16.msra.mxu0 %v2484
    %3108 = vmatmul.bf16.gmra.mxu0 %v450
    %v3109 = vpop.f32.mrf.mxu0
    %v3110 = vadd.f32 %v3097, %v3109
    %v3111 = vpop.f32.mrf.mxu0
    %3112 = vdwg.mxu0
    %3113 = vmatpush.bf16.msra.mxu0 %v2198
    %3114 = vmatpush.bf16.msra.mxu0 %v2191
    %3115 = vmatpush.bf16.msra.mxu0 %v2184
    %3116 = vmatpush.bf16.msra.mxu0 %v2177
    %3117 = vmatpush.bf16.msra.mxu0 %v2170
    %3118 = vmatpush.bf16.msra.mxu0 %v2163
    %3119 = vmatpush.bf16.msra.mxu0 %v2156
    %3120 = vmatpush.bf16.msra.mxu0 %v2149
    %3121 = vmatmul.bf16.gmra.mxu0 %v444
    %v3122 = vpop.f32.mrf.mxu0
    %v3123 = vadd.f32 %v903, %v3122
    %v3124 = vpop.f32.mrf.mxu0
    %3125 = vdwg.mxu0
    %3126 = vmatpush.bf16.msra.mxu0 %v2254
    %3127 = vmatpush.bf16.msra.mxu0 %v2247
    %3128 = vmatpush.bf16.msra.mxu0 %v2240
    %3129 = vmatpush.bf16.msra.mxu0 %v2233
    %3130 = vmatpush.bf16.msra.mxu0 %v2226
    %3131 = vmatpush.bf16.msra.mxu0 %v2219
    %3132 = vmatpush.bf16.msra.mxu0 %v2212
    %3133 = vmatpush.bf16.msra.mxu0 %v2205
    %3134 = vmatmul.bf16.gmra.mxu0 %v445
    %v3135 = vpop.f32.mrf.mxu0
    %v3136 = vadd.f32 %v3123, %v3135
    %v3137 = vpop.f32.mrf.mxu0
    %3138 = vdwg.mxu0
    %3139 = vmatpush.bf16.msra.mxu0 %v2310
    %3140 = vmatpush.bf16.msra.mxu0 %v2303
    %3141 = vmatpush.bf16.msra.mxu0 %v2296
    %3142 = vmatpush.bf16.msra.mxu0 %v2289
    %3143 = vmatpush.bf16.msra.mxu0 %v2282
    %3144 = vmatpush.bf16.msra.mxu0 %v2275
    %3145 = vmatpush.bf16.msra.mxu0 %v2268
    %3146 = vmatpush.bf16.msra.mxu0 %v2261
    %3147 = vmatmul.bf16.gmra.mxu0 %v446
    %v3148 = vpop.f32.mrf.mxu0
    %v3149 = vadd.f32 %v3136, %v3148
    %v3150 = vpop.f32.mrf.mxu0
    %3151 = vdwg.mxu0
    %3152 = vmatpush.bf16.msra.mxu0 %v2366
    %3153 = vmatpush.bf16.msra.mxu0 %v2359
    %3154 = vmatpush.bf16.msra.mxu0 %v2352
    %3155 = vmatpush.bf16.msra.mxu0 %v2345
    %3156 = vmatpush.bf16.msra.mxu0 %v2338
    %3157 = vmatpush.bf16.msra.mxu0 %v2331
    %3158 = vmatpush.bf16.msra.mxu0 %v2324
    %3159 = vmatpush.bf16.msra.mxu0 %v2317
    %3160 = vmatmul.bf16.gmra.mxu0 %v447
    %v3161 = vpop.f32.mrf.mxu0
    %v3162 = vadd.f32 %v3149, %v3161
    %v3163 = vpop.f32.mrf.mxu0
    %3164 = vdwg.mxu0
    %3165 = vmatpush.bf16.msra.mxu0 %v2422
    %3166 = vmatpush.bf16.msra.mxu0 %v2415
    %3167 = vmatpush.bf16.msra.mxu0 %v2408
    %3168 = vmatpush.bf16.msra.mxu0 %v2401
    %3169 = vmatpush.bf16.msra.mxu0 %v2394
    %3170 = vmatpush.bf16.msra.mxu0 %v2387
    %3171 = vmatpush.bf16.msra.mxu0 %v2380
    %3172 = vmatpush.bf16.msra.mxu0 %v2373
    %3173 = vmatmul.bf16.gmra.mxu0 %v448
    %v3174 = vpop.f32.mrf.mxu0
    %v3175 = vadd.f32 %v3162, %v3174
    %v3176 = vpop.f32.mrf.mxu0
    %3177 = vdwg.mxu0
    %3178 = vmatpush.bf16.msra.mxu0 %v2478
    %3179 = vmatpush.bf16.msra.mxu0 %v2471
    %3180 = vmatpush.bf16.msra.mxu0 %v2464
    %3181 = vmatpush.bf16.msra.mxu0 %v2457
    %3182 = vmatpush.bf16.msra.mxu0 %v2450
    %3183 = vmatpush.bf16.msra.mxu0 %v2443
    %3184 = vmatpush.bf16.msra.mxu0 %v2436
    %3185 = vmatpush.bf16.msra.mxu0 %v2429
    %3186 = vmatmul.bf16.gmra.mxu0 %v449
    %v3187 = vpop.f32.mrf.mxu0
    %v3188 = vadd.f32 %v3175, %v3187
    %v3189 = vpop.f32.mrf.mxu0
    %3190 = vdwg.mxu0
    %3191 = vmatpush.bf16.msra.mxu0 %v2534
    %3192 = vmatpush.bf16.msra.mxu0 %v2527
    %3193 = vmatpush.bf16.msra.mxu0 %v2520
    %3194 = vmatpush.bf16.msra.mxu0 %v2513
    %3195 = vmatpush.bf16.msra.mxu0 %v2506
    %3196 = vmatpush.bf16.msra.mxu0 %v2499
    %3197 = vmatpush.bf16.msra.mxu0 %v2492
    %3198 = vmatpush.bf16.msra.mxu0 %v2485
    %3199 = vmatmul.bf16.gmra.mxu0 %v450
    %v3200 = vpop.f32.mrf.mxu0
    %v3201 = vadd.f32 %v3188, %v3200
    %v3202 = vpop.f32.mrf.mxu0
    %3203 = vdwg.mxu0
    %3204 = vmatpush.bf16.msra.mxu0 %v2199
    %3205 = vmatpush.bf16.msra.mxu0 %v2192
    %3206 = vmatpush.bf16.msra.mxu0 %v2185
    %3207 = vmatpush.bf16.msra.mxu0 %v2178
    %3208 = vmatpush.bf16.msra.mxu0 %v2171
    %3209 = vmatpush.bf16.msra.mxu0 %v2164
    %3210 = vmatpush.bf16.msra.mxu0 %v2157
    %3211 = vmatpush.bf16.msra.mxu0 %v2150
    %3212 = vmatmul.bf16.gmra.mxu0 %v444
    %v3213 = vpop.f32.mrf.mxu0
    %v3214 = vadd.f32 %v904, %v3213
    %v3215 = vpop.f32.mrf.mxu0
    %3216 = vdwg.mxu0
    %3217 = vmatpush.bf16.msra.mxu0 %v2255
    %3218 = vmatpush.bf16.msra.mxu0 %v2248
    %3219 = vmatpush.bf16.msra.mxu0 %v2241
    %3220 = vmatpush.bf16.msra.mxu0 %v2234
    %3221 = vmatpush.bf16.msra.mxu0 %v2227
    %3222 = vmatpush.bf16.msra.mxu0 %v2220
    %3223 = vmatpush.bf16.msra.mxu0 %v2213
    %3224 = vmatpush.bf16.msra.mxu0 %v2206
    %3225 = vmatmul.bf16.gmra.mxu0 %v445
    %v3226 = vpop.f32.mrf.mxu0
    %v3227 = vadd.f32 %v3214, %v3226
    %v3228 = vpop.f32.mrf.mxu0
    %3229 = vdwg.mxu0
    %3230 = vmatpush.bf16.msra.mxu0 %v2311
    %3231 = vmatpush.bf16.msra.mxu0 %v2304
    %3232 = vmatpush.bf16.msra.mxu0 %v2297
    %3233 = vmatpush.bf16.msra.mxu0 %v2290
    %3234 = vmatpush.bf16.msra.mxu0 %v2283
    %3235 = vmatpush.bf16.msra.mxu0 %v2276
    %3236 = vmatpush.bf16.msra.mxu0 %v2269
    %3237 = vmatpush.bf16.msra.mxu0 %v2262
    %3238 = vmatmul.bf16.gmra.mxu0 %v446
    %v3239 = vpop.f32.mrf.mxu0
    %v3240 = vadd.f32 %v3227, %v3239
    %v3241 = vpop.f32.mrf.mxu0
    %3242 = vdwg.mxu0
    %3243 = vmatpush.bf16.msra.mxu0 %v2367
    %3244 = vmatpush.bf16.msra.mxu0 %v2360
    %3245 = vmatpush.bf16.msra.mxu0 %v2353
    %3246 = vmatpush.bf16.msra.mxu0 %v2346
    %3247 = vmatpush.bf16.msra.mxu0 %v2339
    %3248 = vmatpush.bf16.msra.mxu0 %v2332
    %3249 = vmatpush.bf16.msra.mxu0 %v2325
    %3250 = vmatpush.bf16.msra.mxu0 %v2318
    %3251 = vmatmul.bf16.gmra.mxu0 %v447
    %v3252 = vpop.f32.mrf.mxu0
    %v3253 = vadd.f32 %v3240, %v3252
    %v3254 = vpop.f32.mrf.mxu0
    %3255 = vdwg.mxu0
    %3256 = vmatpush.bf16.msra.mxu0 %v2423
    %3257 = vmatpush.bf16.msra.mxu0 %v2416
    %3258 = vmatpush.bf16.msra.mxu0 %v2409
    %3259 = vmatpush.bf16.msra.mxu0 %v2402
    %3260 = vmatpush.bf16.msra.mxu0 %v2395
    %3261 = vmatpush.bf16.msra.mxu0 %v2388
    %3262 = vmatpush.bf16.msra.mxu0 %v2381
    %3263 = vmatpush.bf16.msra.mxu0 %v2374
    %3264 = vmatmul.bf16.gmra.mxu0 %v448
    %v3265 = vpop.f32.mrf.mxu0
    %v3266 = vadd.f32 %v3253, %v3265
    %v3267 = vpop.f32.mrf.mxu0
    %3268 = vdwg.mxu0
    %3269 = vmatpush.bf16.msra.mxu0 %v2479
    %3270 = vmatpush.bf16.msra.mxu0 %v2472
    %3271 = vmatpush.bf16.msra.mxu0 %v2465
    %3272 = vmatpush.bf16.msra.mxu0 %v2458
    %3273 = vmatpush.bf16.msra.mxu0 %v2451
    %3274 = vmatpush.bf16.msra.mxu0 %v2444
    %3275 = vmatpush.bf16.msra.mxu0 %v2437
    %3276 = vmatpush.bf16.msra.mxu0 %v2430
    %3277 = vmatmul.bf16.gmra.mxu0 %v449
    %v3278 = vpop.f32.mrf.mxu0
    %v3279 = vadd.f32 %v3266, %v3278
    %v3280 = vpop.f32.mrf.mxu0
    %3281 = vdwg.mxu0
    %3282 = vmatpush.bf16.msra.mxu0 %v2535
    %3283 = vmatpush.bf16.msra.mxu0 %v2528
    %3284 = vmatpush.bf16.msra.mxu0 %v2521
    %3285 = vmatpush.bf16.msra.mxu0 %v2514
    %3286 = vmatpush.bf16.msra.mxu0 %v2507
    %3287 = vmatpush.bf16.msra.mxu0 %v2500
    %3288 = vmatpush.bf16.msra.mxu0 %v2493
    %3289 = vmatpush.bf16.msra.mxu0 %v2486
    %3290 = vmatmul.bf16.gmra.mxu0 %v450
    %v3291 = vpop.f32.mrf.mxu0
    %v3292 = vadd.f32 %v3279, %v3291
    %v3293 = vpop.f32.mrf.mxu0
    %3294 = vdwg.mxu0
    %3295 = vmatpush.bf16.msra.mxu0 %v2200
    %3296 = vmatpush.bf16.msra.mxu0 %v2193
    %3297 = vmatpush.bf16.msra.mxu0 %v2186
    %3298 = vmatpush.bf16.msra.mxu0 %v2179
    %3299 = vmatpush.bf16.msra.mxu0 %v2172
    %3300 = vmatpush.bf16.msra.mxu0 %v2165
    %3301 = vmatpush.bf16.msra.mxu0 %v2158
    %3302 = vmatpush.bf16.msra.mxu0 %v2151
    %3303 = vmatmul.bf16.gmra.mxu0 %v444
    %v3304 = vpop.f32.mrf.mxu0
    %v3305 = vadd.f32 %v905, %v3304
    %v3306 = vpop.f32.mrf.mxu0
    %3307 = vdwg.mxu0
    %3308 = vmatpush.bf16.msra.mxu0 %v2256
    %3309 = vmatpush.bf16.msra.mxu0 %v2249
    %3310 = vmatpush.bf16.msra.mxu0 %v2242
    %3311 = vmatpush.bf16.msra.mxu0 %v2235
    %3312 = vmatpush.bf16.msra.mxu0 %v2228
    %3313 = vmatpush.bf16.msra.mxu0 %v2221
    %3314 = vmatpush.bf16.msra.mxu0 %v2214
    %3315 = vmatpush.bf16.msra.mxu0 %v2207
    %3316 = vmatmul.bf16.gmra.mxu0 %v445
    %v3317 = vpop.f32.mrf.mxu0
    %v3318 = vadd.f32 %v3305, %v3317
    %v3319 = vpop.f32.mrf.mxu0
    %3320 = vdwg.mxu0
    %3321 = vmatpush.bf16.msra.mxu0 %v2312
    %3322 = vmatpush.bf16.msra.mxu0 %v2305
    %3323 = vmatpush.bf16.msra.mxu0 %v2298
    %3324 = vmatpush.bf16.msra.mxu0 %v2291
    %3325 = vmatpush.bf16.msra.mxu0 %v2284
    %3326 = vmatpush.bf16.msra.mxu0 %v2277
    %3327 = vmatpush.bf16.msra.mxu0 %v2270
    %3328 = vmatpush.bf16.msra.mxu0 %v2263
    %3329 = vmatmul.bf16.gmra.mxu0 %v446
    %v3330 = vpop.f32.mrf.mxu0
    %v3331 = vadd.f32 %v3318, %v3330
    %v3332 = vpop.f32.mrf.mxu0
    %3333 = vdwg.mxu0
    %3334 = vmatpush.bf16.msra.mxu0 %v2368
    %3335 = vmatpush.bf16.msra.mxu0 %v2361
    %3336 = vmatpush.bf16.msra.mxu0 %v2354
    %3337 = vmatpush.bf16.msra.mxu0 %v2347
    %3338 = vmatpush.bf16.msra.mxu0 %v2340
    %3339 = vmatpush.bf16.msra.mxu0 %v2333
    %3340 = vmatpush.bf16.msra.mxu0 %v2326
    %3341 = vmatpush.bf16.msra.mxu0 %v2319
    %3342 = vmatmul.bf16.gmra.mxu0 %v447
    %v3343 = vpop.f32.mrf.mxu0
    %v3344 = vadd.f32 %v3331, %v3343
    %v3345 = vpop.f32.mrf.mxu0
    %3346 = vdwg.mxu0
    %3347 = vmatpush.bf16.msra.mxu0 %v2424
    %3348 = vmatpush.bf16.msra.mxu0 %v2417
    %3349 = vmatpush.bf16.msra.mxu0 %v2410
    %3350 = vmatpush.bf16.msra.mxu0 %v2403
    %3351 = vmatpush.bf16.msra.mxu0 %v2396
    %3352 = vmatpush.bf16.msra.mxu0 %v2389
    %3353 = vmatpush.bf16.msra.mxu0 %v2382
    %3354 = vmatpush.bf16.msra.mxu0 %v2375
    %3355 = vmatmul.bf16.gmra.mxu0 %v448
    %v3356 = vpop.f32.mrf.mxu0
    %v3357 = vadd.f32 %v3344, %v3356
    %v3358 = vpop.f32.mrf.mxu0
    %3359 = vdwg.mxu0
    %3360 = vmatpush.bf16.msra.mxu0 %v2480
    %3361 = vmatpush.bf16.msra.mxu0 %v2473
    %3362 = vmatpush.bf16.msra.mxu0 %v2466
    %3363 = vmatpush.bf16.msra.mxu0 %v2459
    %3364 = vmatpush.bf16.msra.mxu0 %v2452
    %3365 = vmatpush.bf16.msra.mxu0 %v2445
    %3366 = vmatpush.bf16.msra.mxu0 %v2438
    %3367 = vmatpush.bf16.msra.mxu0 %v2431
    %3368 = vmatmul.bf16.gmra.mxu0 %v449
    %v3369 = vpop.f32.mrf.mxu0
    %v3370 = vadd.f32 %v3357, %v3369
    %v3371 = vpop.f32.mrf.mxu0
    %3372 = vdwg.mxu0
    %3373 = vmatpush.bf16.msra.mxu0 %v2536
    %3374 = vmatpush.bf16.msra.mxu0 %v2529
    %3375 = vmatpush.bf16.msra.mxu0 %v2522
    %3376 = vmatpush.bf16.msra.mxu0 %v2515
    %3377 = vmatpush.bf16.msra.mxu0 %v2508
    %3378 = vmatpush.bf16.msra.mxu0 %v2501
    %3379 = vmatpush.bf16.msra.mxu0 %v2494
    %3380 = vmatpush.bf16.msra.mxu0 %v2487
    %3381 = vmatmul.bf16.gmra.mxu0 %v450
    %v3382 = vpop.f32.mrf.mxu0
    %v3383 = vadd.f32 %v3370, %v3382
    %v3384 = vpop.f32.mrf.mxu0
    %3385 = vdwg.mxu0
    %3386 = vmatpush.bf16.msra.mxu0 %v2201
    %3387 = vmatpush.bf16.msra.mxu0 %v2194
    %3388 = vmatpush.bf16.msra.mxu0 %v2187
    %3389 = vmatpush.bf16.msra.mxu0 %v2180
    %3390 = vmatpush.bf16.msra.mxu0 %v2173
    %3391 = vmatpush.bf16.msra.mxu0 %v2166
    %3392 = vmatpush.bf16.msra.mxu0 %v2159
    %3393 = vmatpush.bf16.msra.mxu0 %v2152
    %3394 = vmatmul.bf16.gmra.mxu0 %v444
    %v3395 = vpop.f32.mrf.mxu0
    %v3396 = vadd.f32 %v906, %v3395
    %v3397 = vpop.f32.mrf.mxu0
    %3398 = vdwg.mxu0
    %3399 = vmatpush.bf16.msra.mxu0 %v2257
    %3400 = vmatpush.bf16.msra.mxu0 %v2250
    %3401 = vmatpush.bf16.msra.mxu0 %v2243
    %3402 = vmatpush.bf16.msra.mxu0 %v2236
    %3403 = vmatpush.bf16.msra.mxu0 %v2229
    %3404 = vmatpush.bf16.msra.mxu0 %v2222
    %3405 = vmatpush.bf16.msra.mxu0 %v2215
    %3406 = vmatpush.bf16.msra.mxu0 %v2208
    %3407 = vmatmul.bf16.gmra.mxu0 %v445
    %v3408 = vpop.f32.mrf.mxu0
    %v3409 = vadd.f32 %v3396, %v3408
    %v3410 = vpop.f32.mrf.mxu0
    %3411 = vdwg.mxu0
    %3412 = vmatpush.bf16.msra.mxu0 %v2313
    %3413 = vmatpush.bf16.msra.mxu0 %v2306
    %3414 = vmatpush.bf16.msra.mxu0 %v2299
    %3415 = vmatpush.bf16.msra.mxu0 %v2292
    %3416 = vmatpush.bf16.msra.mxu0 %v2285
    %3417 = vmatpush.bf16.msra.mxu0 %v2278
    %3418 = vmatpush.bf16.msra.mxu0 %v2271
    %3419 = vmatpush.bf16.msra.mxu0 %v2264
    %3420 = vmatmul.bf16.gmra.mxu0 %v446
    %v3421 = vpop.f32.mrf.mxu0
    %v3422 = vadd.f32 %v3409, %v3421
    %v3423 = vpop.f32.mrf.mxu0
    %3424 = vdwg.mxu0
    %3425 = vmatpush.bf16.msra.mxu0 %v2369
    %3426 = vmatpush.bf16.msra.mxu0 %v2362
    %3427 = vmatpush.bf16.msra.mxu0 %v2355
    %3428 = vmatpush.bf16.msra.mxu0 %v2348
    %3429 = vmatpush.bf16.msra.mxu0 %v2341
    %3430 = vmatpush.bf16.msra.mxu0 %v2334
    %3431 = vmatpush.bf16.msra.mxu0 %v2327
    %3432 = vmatpush.bf16.msra.mxu0 %v2320
    %3433 = vmatmul.bf16.gmra.mxu0 %v447
    %v3434 = vpop.f32.mrf.mxu0
    %v3435 = vadd.f32 %v3422, %v3434
    %v3436 = vpop.f32.mrf.mxu0
    %3437 = vdwg.mxu0
    %3438 = vmatpush.bf16.msra.mxu0 %v2425
    %3439 = vmatpush.bf16.msra.mxu0 %v2418
    %3440 = vmatpush.bf16.msra.mxu0 %v2411
    %3441 = vmatpush.bf16.msra.mxu0 %v2404
    %3442 = vmatpush.bf16.msra.mxu0 %v2397
    %3443 = vmatpush.bf16.msra.mxu0 %v2390
    %3444 = vmatpush.bf16.msra.mxu0 %v2383
    %3445 = vmatpush.bf16.msra.mxu0 %v2376
    %3446 = vmatmul.bf16.gmra.mxu0 %v448
    %v3447 = vpop.f32.mrf.mxu0
    %v3448 = vadd.f32 %v3435, %v3447
    %v3449 = vpop.f32.mrf.mxu0
    %3450 = vdwg.mxu0
    %3451 = vmatpush.bf16.msra.mxu0 %v2481
    %3452 = vmatpush.bf16.msra.mxu0 %v2474
    %3453 = vmatpush.bf16.msra.mxu0 %v2467
    %3454 = vmatpush.bf16.msra.mxu0 %v2460
    %3455 = vmatpush.bf16.msra.mxu0 %v2453
    %3456 = vmatpush.bf16.msra.mxu0 %v2446
    %3457 = vmatpush.bf16.msra.mxu0 %v2439
    %3458 = vmatpush.bf16.msra.mxu0 %v2432
    %3459 = vmatmul.bf16.gmra.mxu0 %v449
    %v3460 = vpop.f32.mrf.mxu0
    %v3461 = vadd.f32 %v3448, %v3460
    %v3462 = vpop.f32.mrf.mxu0
    %3463 = vdwg.mxu0
    %3464 = vmatpush.bf16.msra.mxu0 %v2537
    %3465 = vmatpush.bf16.msra.mxu0 %v2530
    %3466 = vmatpush.bf16.msra.mxu0 %v2523
    %3467 = vmatpush.bf16.msra.mxu0 %v2516
    %3468 = vmatpush.bf16.msra.mxu0 %v2509
    %3469 = vmatpush.bf16.msra.mxu0 %v2502
    %3470 = vmatpush.bf16.msra.mxu0 %v2495
    %3471 = vmatpush.bf16.msra.mxu0 %v2488
    %3472 = vmatmul.bf16.gmra.mxu0 %v450
    %v3473 = vpop.f32.mrf.mxu0
    %v3474 = vadd.f32 %v3461, %v3473
    %v3475 = vpop.f32.mrf.mxu0
    %3476 = vdwg.mxu0
    %3477 = vmatpush.bf16.msra.mxu0 %v2202
    %3478 = vmatpush.bf16.msra.mxu0 %v2195
    %3479 = vmatpush.bf16.msra.mxu0 %v2188
    %3480 = vmatpush.bf16.msra.mxu0 %v2181
    %3481 = vmatpush.bf16.msra.mxu0 %v2174
    %3482 = vmatpush.bf16.msra.mxu0 %v2167
    %3483 = vmatpush.bf16.msra.mxu0 %v2160
    %3484 = vmatpush.bf16.msra.mxu0 %v2153
    %3485 = vmatmul.bf16.gmra.mxu0 %v444
    %v3486 = vpop.f32.mrf.mxu0
    %v3487 = vadd.f32 %v907, %v3486
    %v3488 = vpop.f32.mrf.mxu0
    %3489 = vdwg.mxu0
    %3490 = vmatpush.bf16.msra.mxu0 %v2258
    %3491 = vmatpush.bf16.msra.mxu0 %v2251
    %3492 = vmatpush.bf16.msra.mxu0 %v2244
    %3493 = vmatpush.bf16.msra.mxu0 %v2237
    %3494 = vmatpush.bf16.msra.mxu0 %v2230
    %3495 = vmatpush.bf16.msra.mxu0 %v2223
    %3496 = vmatpush.bf16.msra.mxu0 %v2216
    %3497 = vmatpush.bf16.msra.mxu0 %v2209
    %3498 = vmatmul.bf16.gmra.mxu0 %v445
    %v3499 = vpop.f32.mrf.mxu0
    %v3500 = vadd.f32 %v3487, %v3499
    %v3501 = vpop.f32.mrf.mxu0
    %3502 = vdwg.mxu0
    %3503 = vmatpush.bf16.msra.mxu0 %v2314
    %3504 = vmatpush.bf16.msra.mxu0 %v2307
    %3505 = vmatpush.bf16.msra.mxu0 %v2300
    %3506 = vmatpush.bf16.msra.mxu0 %v2293
    %3507 = vmatpush.bf16.msra.mxu0 %v2286
    %3508 = vmatpush.bf16.msra.mxu0 %v2279
    %3509 = vmatpush.bf16.msra.mxu0 %v2272
    %3510 = vmatpush.bf16.msra.mxu0 %v2265
    %3511 = vmatmul.bf16.gmra.mxu0 %v446
    %v3512 = vpop.f32.mrf.mxu0
    %v3513 = vadd.f32 %v3500, %v3512
    %v3514 = vpop.f32.mrf.mxu0
    %3515 = vdwg.mxu0
    %3516 = vmatpush.bf16.msra.mxu0 %v2370
    %3517 = vmatpush.bf16.msra.mxu0 %v2363
    %3518 = vmatpush.bf16.msra.mxu0 %v2356
    %3519 = vmatpush.bf16.msra.mxu0 %v2349
    %3520 = vmatpush.bf16.msra.mxu0 %v2342
    %3521 = vmatpush.bf16.msra.mxu0 %v2335
    %3522 = vmatpush.bf16.msra.mxu0 %v2328
    %3523 = vmatpush.bf16.msra.mxu0 %v2321
    %3524 = vmatmul.bf16.gmra.mxu0 %v447
    %v3525 = vpop.f32.mrf.mxu0
    %v3526 = vadd.f32 %v3513, %v3525
    %v3527 = vpop.f32.mrf.mxu0
    %3528 = vdwg.mxu0
    %3529 = vmatpush.bf16.msra.mxu0 %v2426
    %3530 = vmatpush.bf16.msra.mxu0 %v2419
    %3531 = vmatpush.bf16.msra.mxu0 %v2412
    %3532 = vmatpush.bf16.msra.mxu0 %v2405
    %3533 = vmatpush.bf16.msra.mxu0 %v2398
    %3534 = vmatpush.bf16.msra.mxu0 %v2391
    %3535 = vmatpush.bf16.msra.mxu0 %v2384
    %3536 = vmatpush.bf16.msra.mxu0 %v2377
    %3537 = vmatmul.bf16.gmra.mxu0 %v448
    %v3538 = vpop.f32.mrf.mxu0
    %v3539 = vadd.f32 %v3526, %v3538
    %v3540 = vpop.f32.mrf.mxu0
    %3541 = vdwg.mxu0
    %3542 = vmatpush.bf16.msra.mxu0 %v2482
    %3543 = vmatpush.bf16.msra.mxu0 %v2475
    %3544 = vmatpush.bf16.msra.mxu0 %v2468
    %3545 = vmatpush.bf16.msra.mxu0 %v2461
    %3546 = vmatpush.bf16.msra.mxu0 %v2454
    %3547 = vmatpush.bf16.msra.mxu0 %v2447
    %3548 = vmatpush.bf16.msra.mxu0 %v2440
    %3549 = vmatpush.bf16.msra.mxu0 %v2433
    %3550 = vmatmul.bf16.gmra.mxu0 %v449
    %v3551 = vpop.f32.mrf.mxu0
    %v3552 = vadd.f32 %v3539, %v3551
    %v3553 = vpop.f32.mrf.mxu0
    %3554 = vdwg.mxu0
    %3555 = vmatpush.bf16.msra.mxu0 %v2538
    %3556 = vmatpush.bf16.msra.mxu0 %v2531
    %3557 = vmatpush.bf16.msra.mxu0 %v2524
    %3558 = vmatpush.bf16.msra.mxu0 %v2517
    %3559 = vmatpush.bf16.msra.mxu0 %v2510
    %3560 = vmatpush.bf16.msra.mxu0 %v2503
    %3561 = vmatpush.bf16.msra.mxu0 %v2496
    %3562 = vmatpush.bf16.msra.mxu0 %v2489
    %3563 = vmatmul.bf16.gmra.mxu0 %v450
    %v3564 = vpop.f32.mrf.mxu0
    %v3565 = vadd.f32 %v3552, %v3564
    %v3566 = vpop.f32.mrf.mxu0
    %3567 = vdwg.mxu0
    %v3568 = vmax.f32 %v3019, 0.0
    %v3569 = vmax.f32 %v3110, 0.0
    %v3570 = vmax.f32 %v3201, 0.0
    %v3571 = vmax.f32 %v3292, 0.0
    %v3572 = vmax.f32 %v3383, 0.0
    %v3573 = vmax.f32 %v3474, 0.0
    %v3574 = vmax.f32 %v3565, 0.0
    %v3575 = vpack.c.bf16 %v3568, %v3568
    %v3576 = vpack.c.bf16 %v3569, %v3569
    %v3577 = vpack.c.bf16 %v3570, %v3570
    %v3578 = vpack.c.bf16 %v3571, %v3571
    %v3579 = vpack.c.bf16 %v3572, %v3572
    %v3580 = vpack.c.bf16 %v3573, %v3573
    %v3581 = vpack.c.bf16 %v3574, %v3574
    %v3582 = vld [vmem:[#allocation13] sm:$0xf]
    %v3583 = vld [vmem:[#allocation13 + $0x4] sm:$0xf]
    %v3584 = vld [vmem:[#allocation13 + $0x8] sm:$0xf]
    %v3585 = vld [vmem:[#allocation13 + $0xc] sm:$0xf]
    %v3586 = vld [vmem:[#allocation13 + $0x10] sm:$0xf]
    %v3587 = vld [vmem:[#allocation13 + $0x14] sm:$0xf]
    %v3588 = vld [vmem:[#allocation13 + $0x18] sm:$0xf]
    %v3589 = vld [vmem:[#allocation13 + $0x1c] sm:$0xf]
    %v3590 = vld [vmem:[#allocation13 + $0x20] sm:$0xf]
    %v3591 = vld [vmem:[#allocation13 + $0x24] sm:$0xf]
    %v3592 = vld [vmem:[#allocation13 + $0x28] sm:$0xf]
    %v3593 = vld [vmem:[#allocation13 + $0x2c] sm:$0xf]
    %v3594 = vld [vmem:[#allocation13 + $0x30] sm:$0xf]
    %v3595 = vld [vmem:[#allocation13 + $0x34] sm:$0xf]
    %v3596 = vld [vmem:[#allocation13 + $0x38] sm:$0xf]
    %v3597 = vld [vmem:[#allocation13 + $0x3c] sm:$0xf]
    %v3598 = vld [vmem:[#allocation13 + $0x40] sm:$0xf]
    %v3599 = vld [vmem:[#allocation13 + $0x44] sm:$0xf]
    %v3600 = vld [vmem:[#allocation13 + $0x48] sm:$0xf]
    %v3601 = vld [vmem:[#allocation13 + $0x4c] sm:$0xf]
    %v3602 = vld [vmem:[#allocation13 + $0x50] sm:$0xf]
    %v3603 = vld [vmem:[#allocation13 + $0x54] sm:$0xf]
    %v3604 = vld [vmem:[#allocation13 + $0x58] sm:$0xf]
    %v3605 = vld [vmem:[#allocation13 + $0x5c] sm:$0xf]
    %v3606 = vld [vmem:[#allocation13 + $0x60] sm:$0xf]
    %v3607 = vld [vmem:[#allocation13 + $0x64] sm:$0xf]
    %v3608 = vld [vmem:[#allocation13 + $0x68] sm:$0xf]
    %v3609 = vld [vmem:[#allocation13 + $0x6c] sm:$0xf]
    %v3610 = vld [vmem:[#allocation13 + $0x70] sm:$0xf]
    %v3611 = vld [vmem:[#allocation13 + $0x74] sm:$0xf]
    %v3612 = vld [vmem:[#allocation13 + $0x78] sm:$0xf]
    %v3613 = vld [vmem:[#allocation13 + $0x7c] sm:$0xf]
    %v3614 = vld [vmem:[#allocation13 + $0x80] sm:$0xf]
    %v3615 = vld [vmem:[#allocation13 + $0x84] sm:$0xf]
    %v3616 = vld [vmem:[#allocation13 + $0x88] sm:$0xf]
    %v3617 = vld [vmem:[#allocation13 + $0x8c] sm:$0xf]
    %v3618 = vld [vmem:[#allocation13 + $0x90] sm:$0xf]
    %v3619 = vld [vmem:[#allocation13 + $0x94] sm:$0xf]
    %v3620 = vld [vmem:[#allocation13 + $0x98] sm:$0xf]
    %v3621 = vld [vmem:[#allocation13 + $0x9c] sm:$0xf]
    %v3622 = vld [vmem:[#allocation13 + $0xa0] sm:$0xf]
    %v3623 = vld [vmem:[#allocation13 + $0xa4] sm:$0xf]
    %v3624 = vld [vmem:[#allocation13 + $0xa8] sm:$0xf]
    %v3625 = vld [vmem:[#allocation13 + $0xac] sm:$0xf]
    %v3626 = vld [vmem:[#allocation13 + $0xb0] sm:$0xf]
    %v3627 = vld [vmem:[#allocation13 + $0xb4] sm:$0xf]
    %v3628 = vld [vmem:[#allocation13 + $0xb8] sm:$0xf]
    %v3629 = vld [vmem:[#allocation13 + $0xbc] sm:$0xf]
    %v3630 = vld [vmem:[#allocation13 + $0xc0] sm:$0xf]
    %v3631 = vld [vmem:[#allocation13 + $0xc4] sm:$0xf]
    %v3632 = vld [vmem:[#allocation13 + $0xc8] sm:$0xf]
    %v3633 = vld [vmem:[#allocation13 + $0xcc] sm:$0xf]
    %v3634 = vld [vmem:[#allocation13 + $0xd0] sm:$0xf]
    %v3635 = vld [vmem:[#allocation13 + $0xd4] sm:$0xf]
    %v3636 = vld [vmem:[#allocation13 + $0xd8] sm:$0xf]
    %v3637 = vld [vmem:[#allocation13 + $0xdc] sm:$0xf]
    %v3638 = vld [vmem:[#allocation13 + $0xe0] sm:$0xf]
    %v3639 = vld [vmem:[#allocation13 + $0xe4] sm:$0xf]
    %v3640 = vld [vmem:[#allocation13 + $0xe8] sm:$0xf]
    %v3641 = vld [vmem:[#allocation13 + $0xec] sm:$0xf]
    %v3642 = vld [vmem:[#allocation13 + $0xf0] sm:$0xf]
    %v3643 = vld [vmem:[#allocation13 + $0xf4] sm:$0xf]
    %v3644 = vld [vmem:[#allocation13 + $0xf8] sm:$0xf]
    %v3645 = vld [vmem:[#allocation13 + $0xfc] sm:$0xf]
    %v3646 = vld [vmem:[#allocation13 + $0x100] sm:$0xf]
    %v3647 = vld [vmem:[#allocation13 + $0x104] sm:$0xf]
    %v3648 = vld [vmem:[#allocation13 + $0x108] sm:$0xf]
    %v3649 = vld [vmem:[#allocation13 + $0x10c] sm:$0xf]
    %v3650 = vld [vmem:[#allocation13 + $0x110] sm:$0xf]
    %v3651 = vld [vmem:[#allocation13 + $0x114] sm:$0xf]
    %v3652 = vld [vmem:[#allocation13 + $0x118] sm:$0xf]
    %v3653 = vld [vmem:[#allocation13 + $0x11c] sm:$0xf]
    %v3654 = vld [vmem:[#allocation13 + $0x120] sm:$0xf]
    %v3655 = vld [vmem:[#allocation13 + $0x124] sm:$0xf]
    %v3656 = vld [vmem:[#allocation13 + $0x128] sm:$0xf]
    %v3657 = vld [vmem:[#allocation13 + $0x12c] sm:$0xf]
    %v3658 = vld [vmem:[#allocation13 + $0x130] sm:$0xf]
    %v3659 = vld [vmem:[#allocation13 + $0x134] sm:$0xf]
    %v3660 = vld [vmem:[#allocation13 + $0x138] sm:$0xf]
    %v3661 = vld [vmem:[#allocation13 + $0x13c] sm:$0xf]
    %v3662 = vld [vmem:[#allocation13 + $0x140] sm:$0xf]
    %v3663 = vld [vmem:[#allocation13 + $0x144] sm:$0xf]
    %v3664 = vld [vmem:[#allocation13 + $0x148] sm:$0xf]
    %v3665 = vld [vmem:[#allocation13 + $0x14c] sm:$0xf]
    %v3666 = vld [vmem:[#allocation13 + $0x150] sm:$0xf]
    %v3667 = vld [vmem:[#allocation13 + $0x154] sm:$0xf]
    %v3668 = vld [vmem:[#allocation13 + $0x158] sm:$0xf]
    %v3669 = vld [vmem:[#allocation13 + $0x15c] sm:$0xf]
    %v3670 = vld [vmem:[#allocation13 + $0x160] sm:$0xf]
    %v3671 = vld [vmem:[#allocation13 + $0x164] sm:$0xf]
    %v3672 = vld [vmem:[#allocation13 + $0x168] sm:$0xf]
    %v3673 = vld [vmem:[#allocation13 + $0x16c] sm:$0xf]
    %v3674 = vld [vmem:[#allocation13 + $0x170] sm:$0xf]
    %v3675 = vld [vmem:[#allocation13 + $0x174] sm:$0xf]
    %v3676 = vld [vmem:[#allocation13 + $0x178] sm:$0xf]
    %v3677 = vld [vmem:[#allocation13 + $0x17c] sm:$0xf]
    %v3678 = vld [vmem:[#allocation13 + $0x180] sm:$0xf]
    %v3679 = vld [vmem:[#allocation13 + $0x184] sm:$0xf]
    %v3680 = vld [vmem:[#allocation13 + $0x188] sm:$0xf]
    %v3681 = vld [vmem:[#allocation13 + $0x18c] sm:$0xf]
    %v3682 = vld [vmem:[#allocation13 + $0x190] sm:$0xf]
    %v3683 = vld [vmem:[#allocation13 + $0x194] sm:$0xf]
    %v3684 = vld [vmem:[#allocation13 + $0x198] sm:$0xf]
    %v3685 = vld [vmem:[#allocation13 + $0x19c] sm:$0xf]
    %v3686 = vld [vmem:[#allocation13 + $0x1a0] sm:$0xf]
    %v3687 = vld [vmem:[#allocation13 + $0x1a4] sm:$0xf]
    %v3688 = vld [vmem:[#allocation13 + $0x1a8] sm:$0xf]
    %v3689 = vld [vmem:[#allocation13 + $0x1ac] sm:$0xf]
    %v3690 = vld [vmem:[#allocation13 + $0x1b0] sm:$0xf]
    %v3691 = vld [vmem:[#allocation13 + $0x1b4] sm:$0xf]
    %v3692 = vld [vmem:[#allocation13 + $0x1b8] sm:$0xf]
    %v3693 = vld [vmem:[#allocation13 + $0x1bc] sm:$0xf]
    %v3694 = vld [vmem:[#allocation15] sm:$0x1]
    %v3696 = vperm.slane %v3694, 0
    %v3810 = vunpack.c.l.b16 %v3582
    %v3811 = vunpack.c.l.b16 %v3583
    %v3812 = vunpack.c.l.b16 %v3584
    %v3813 = vunpack.c.l.b16 %v3585
    %v3814 = vunpack.c.l.b16 %v3586
    %v3815 = vunpack.c.l.b16 %v3587
    %v3816 = vunpack.c.l.b16 %v3588
    %v3817 = vunpack.c.l.b16 %v3589
    %v3818 = vunpack.c.l.b16 %v3590
    %v3819 = vunpack.c.l.b16 %v3591
    %v3820 = vunpack.c.l.b16 %v3592
    %v3821 = vunpack.c.l.b16 %v3593
    %v3822 = vunpack.c.l.b16 %v3594
    %v3823 = vunpack.c.l.b16 %v3595
    %v3824 = vunpack.c.l.b16 %v3596
    %v3825 = vunpack.c.l.b16 %v3597
    %v3826 = vunpack.c.l.b16 %v3598
    %v3827 = vunpack.c.l.b16 %v3599
    %v3828 = vunpack.c.l.b16 %v3600
    %v3829 = vunpack.c.l.b16 %v3601
    %v3830 = vunpack.c.l.b16 %v3602
    %v3831 = vunpack.c.l.b16 %v3603
    %v3832 = vunpack.c.l.b16 %v3604
    %v3833 = vunpack.c.l.b16 %v3605
    %v3834 = vunpack.c.l.b16 %v3606
    %v3835 = vunpack.c.l.b16 %v3607
    %v3836 = vunpack.c.l.b16 %v3608
    %v3837 = vunpack.c.l.b16 %v3609
    %v3838 = vunpack.c.l.b16 %v3610
    %v3839 = vunpack.c.l.b16 %v3611
    %v3840 = vunpack.c.l.b16 %v3612
    %v3841 = vunpack.c.l.b16 %v3613
    %v3842 = vunpack.c.l.b16 %v3614
    %v3843 = vunpack.c.l.b16 %v3615
    %v3844 = vunpack.c.l.b16 %v3616
    %v3845 = vunpack.c.l.b16 %v3617
    %v3846 = vunpack.c.l.b16 %v3618
    %v3847 = vunpack.c.l.b16 %v3619
    %v3848 = vunpack.c.l.b16 %v3620
    %v3849 = vunpack.c.l.b16 %v3621
    %v3850 = vunpack.c.l.b16 %v3622
    %v3851 = vunpack.c.l.b16 %v3623
    %v3852 = vunpack.c.l.b16 %v3624
    %v3853 = vunpack.c.l.b16 %v3625
    %v3854 = vunpack.c.l.b16 %v3626
    %v3855 = vunpack.c.l.b16 %v3627
    %v3856 = vunpack.c.l.b16 %v3628
    %v3857 = vunpack.c.l.b16 %v3629
    %v3858 = vunpack.c.l.b16 %v3630
    %v3859 = vunpack.c.l.b16 %v3631
    %v3860 = vunpack.c.l.b16 %v3632
    %v3861 = vunpack.c.l.b16 %v3633
    %v3862 = vunpack.c.l.b16 %v3634
    %v3863 = vunpack.c.l.b16 %v3635
    %v3864 = vunpack.c.l.b16 %v3636
    %v3865 = vunpack.c.l.b16 %v3637
    %v3866 = vunpack.c.l.b16 %v3638
    %v3867 = vunpack.c.l.b16 %v3639
    %v3868 = vunpack.c.l.b16 %v3640
    %v3869 = vunpack.c.l.b16 %v3641
    %v3870 = vunpack.c.l.b16 %v3642
    %v3871 = vunpack.c.l.b16 %v3643
    %v3872 = vunpack.c.l.b16 %v3644
    %v3873 = vunpack.c.l.b16 %v3645
    %v3874 = vunpack.c.l.b16 %v3646
    %v3875 = vunpack.c.l.b16 %v3647
    %v3876 = vunpack.c.l.b16 %v3648
    %v3877 = vunpack.c.l.b16 %v3649
    %v3878 = vunpack.c.l.b16 %v3650
    %v3879 = vunpack.c.l.b16 %v3651
    %v3880 = vunpack.c.l.b16 %v3652
    %v3881 = vunpack.c.l.b16 %v3653
    %v3882 = vunpack.c.l.b16 %v3654
    %v3883 = vunpack.c.l.b16 %v3655
    %v3884 = vunpack.c.l.b16 %v3656
    %v3885 = vunpack.c.l.b16 %v3657
    %v3886 = vunpack.c.l.b16 %v3658
    %v3887 = vunpack.c.l.b16 %v3659
    %v3888 = vunpack.c.l.b16 %v3660
    %v3889 = vunpack.c.l.b16 %v3661
    %v3890 = vunpack.c.l.b16 %v3662
    %v3891 = vunpack.c.l.b16 %v3663
    %v3892 = vunpack.c.l.b16 %v3664
    %v3893 = vunpack.c.l.b16 %v3665
    %v3894 = vunpack.c.l.b16 %v3666
    %v3895 = vunpack.c.l.b16 %v3667
    %v3896 = vunpack.c.l.b16 %v3668
    %v3897 = vunpack.c.l.b16 %v3669
    %v3898 = vunpack.c.l.b16 %v3670
    %v3899 = vunpack.c.l.b16 %v3671
    %v3900 = vunpack.c.l.b16 %v3672
    %v3901 = vunpack.c.l.b16 %v3673
    %v3902 = vunpack.c.l.b16 %v3674
    %v3903 = vunpack.c.l.b16 %v3675
    %v3904 = vunpack.c.l.b16 %v3676
    %v3905 = vunpack.c.l.b16 %v3677
    %v3906 = vunpack.c.l.b16 %v3678
    %v3907 = vunpack.c.l.b16 %v3679
    %v3908 = vunpack.c.l.b16 %v3680
    %v3909 = vunpack.c.l.b16 %v3681
    %v3910 = vunpack.c.l.b16 %v3682
    %v3911 = vunpack.c.l.b16 %v3683
    %v3912 = vunpack.c.l.b16 %v3684
    %v3913 = vunpack.c.l.b16 %v3685
    %v3914 = vunpack.c.l.b16 %v3686
    %v3915 = vunpack.c.l.b16 %v3687
    %v3916 = vunpack.c.l.b16 %v3688
    %v3917 = vunpack.c.l.b16 %v3689
    %v3918 = vunpack.c.l.b16 %v3690
    %v3919 = vunpack.c.l.b16 %v3691
    %v3920 = vunpack.c.l.b16 %v3692
    %v3921 = vunpack.c.l.b16 %v3693
    %v3922 = vpack.c.b16 %v3811, %v3810
    %v3923 = vpack.c.b16 %v3813, %v3812
    %v3924 = vpack.c.b16 %v3815, %v3814
    %v3925 = vpack.c.b16 %v3817, %v3816
    %v3926 = vpack.c.b16 %v3819, %v3818
    %v3927 = vpack.c.b16 %v3821, %v3820
    %v3928 = vpack.c.b16 %v3823, %v3822
    %v3929 = vpack.c.b16 %v3825, %v3824
    %v3930 = vpack.c.b16 %v3827, %v3826
    %v3931 = vpack.c.b16 %v3829, %v3828
    %v3932 = vpack.c.b16 %v3831, %v3830
    %v3933 = vpack.c.b16 %v3833, %v3832
    %v3934 = vpack.c.b16 %v3835, %v3834
    %v3935 = vpack.c.b16 %v3837, %v3836
    %v3936 = vpack.c.b16 %v3839, %v3838
    %v3937 = vpack.c.b16 %v3841, %v3840
    %v3938 = vpack.c.b16 %v3843, %v3842
    %v3939 = vpack.c.b16 %v3845, %v3844
    %v3940 = vpack.c.b16 %v3847, %v3846
    %v3941 = vpack.c.b16 %v3849, %v3848
    %v3942 = vpack.c.b16 %v3851, %v3850
    %v3943 = vpack.c.b16 %v3853, %v3852
    %v3944 = vpack.c.b16 %v3855, %v3854
    %v3945 = vpack.c.b16 %v3857, %v3856
    %v3946 = vpack.c.b16 %v3859, %v3858
    %v3947 = vpack.c.b16 %v3861, %v3860
    %v3948 = vpack.c.b16 %v3863, %v3862
    %v3949 = vpack.c.b16 %v3865, %v3864
    %v3950 = vpack.c.b16 %v3867, %v3866
    %v3951 = vpack.c.b16 %v3869, %v3868
    %v3952 = vpack.c.b16 %v3871, %v3870
    %v3953 = vpack.c.b16 %v3873, %v3872
    %v3954 = vpack.c.b16 %v3875, %v3874
    %v3955 = vpack.c.b16 %v3877, %v3876
    %v3956 = vpack.c.b16 %v3879, %v3878
    %v3957 = vpack.c.b16 %v3881, %v3880
    %v3958 = vpack.c.b16 %v3883, %v3882
    %v3959 = vpack.c.b16 %v3885, %v3884
    %v3960 = vpack.c.b16 %v3887, %v3886
    %v3961 = vpack.c.b16 %v3889, %v3888
    %v3962 = vpack.c.b16 %v3891, %v3890
    %v3963 = vpack.c.b16 %v3893, %v3892
    %v3964 = vpack.c.b16 %v3895, %v3894
    %v3965 = vpack.c.b16 %v3897, %v3896
    %v3966 = vpack.c.b16 %v3899, %v3898
    %v3967 = vpack.c.b16 %v3901, %v3900
    %v3968 = vpack.c.b16 %v3903, %v3902
    %v3969 = vpack.c.b16 %v3905, %v3904
    %v3970 = vpack.c.b16 %v3907, %v3906
    %v3971 = vpack.c.b16 %v3909, %v3908
    %v3972 = vpack.c.b16 %v3911, %v3910
    %v3973 = vpack.c.b16 %v3913, %v3912
    %v3974 = vpack.c.b16 %v3915, %v3914
    %v3975 = vpack.c.b16 %v3917, %v3916
    %v3976 = vpack.c.b16 %v3919, %v3918
    %v3977 = vpack.c.b16 %v3921, %v3920
    %4034 = vmatpush.bf16.msra.mxu0 %v3929
    %4035 = vmatpush.bf16.msra.mxu0 %v3928
    %4036 = vmatpush.bf16.msra.mxu0 %v3927
    %4037 = vmatpush.bf16.msra.mxu0 %v3926
    %4038 = vmatpush.bf16.msra.mxu0 %v3925
    %4039 = vmatpush.bf16.msra.mxu0 %v3924
    %4040 = vmatpush.bf16.msra.mxu0 %v3923
    %4041 = vmatpush.bf16.msra.mxu0 %v3922
    %4042 = vmatmul.bf16.gmra.mxu0 %v3575
    %v4043 = vpop.f32.mrf.mxu0
    %v4044 = vadd.f32 %v3696, %v4043
    %v4045 = vpop.f32.mrf.mxu0
    %4046 = vdwg.mxu0
    %4047 = vmatpush.bf16.msra.mxu0 %v3937
    %4048 = vmatpush.bf16.msra.mxu0 %v3936
    %4049 = vmatpush.bf16.msra.mxu0 %v3935
    %4050 = vmatpush.bf16.msra.mxu0 %v3934
    %4051 = vmatpush.bf16.msra.mxu0 %v3933
    %4052 = vmatpush.bf16.msra.mxu0 %v3932
    %4053 = vmatpush.bf16.msra.mxu0 %v3931
    %4054 = vmatpush.bf16.msra.mxu0 %v3930
    %4055 = vmatmul.bf16.gmra.mxu0 %v3576
    %v4056 = vpop.f32.mrf.mxu0
    %v4057 = vadd.f32 %v4044, %v4056
    %v4058 = vpop.f32.mrf.mxu0
    %4059 = vdwg.mxu0
    %4060 = vmatpush.bf16.msra.mxu0 %v3945
    %4061 = vmatpush.bf16.msra.mxu0 %v3944
    %4062 = vmatpush.bf16.msra.mxu0 %v3943
    %4063 = vmatpush.bf16.msra.mxu0 %v3942
    %4064 = vmatpush.bf16.msra.mxu0 %v3941
    %4065 = vmatpush.bf16.msra.mxu0 %v3940
    %4066 = vmatpush.bf16.msra.mxu0 %v3939
    %4067 = vmatpush.bf16.msra.mxu0 %v3938
    %4068 = vmatmul.bf16.gmra.mxu0 %v3577
    %v4069 = vpop.f32.mrf.mxu0
    %v4070 = vadd.f32 %v4057, %v4069
    %v4071 = vpop.f32.mrf.mxu0
    %4072 = vdwg.mxu0
    %4073 = vmatpush.bf16.msra.mxu0 %v3953
    %4074 = vmatpush.bf16.msra.mxu0 %v3952
    %4075 = vmatpush.bf16.msra.mxu0 %v3951
    %4076 = vmatpush.bf16.msra.mxu0 %v3950
    %4077 = vmatpush.bf16.msra.mxu0 %v3949
    %4078 = vmatpush.bf16.msra.mxu0 %v3948
    %4079 = vmatpush.bf16.msra.mxu0 %v3947
    %4080 = vmatpush.bf16.msra.mxu0 %v3946
    %4081 = vmatmul.bf16.gmra.mxu0 %v3578
    %v4082 = vpop.f32.mrf.mxu0
    %v4083 = vadd.f32 %v4070, %v4082
    %v4084 = vpop.f32.mrf.mxu0
    %4085 = vdwg.mxu0
    %4086 = vmatpush.bf16.msra.mxu0 %v3961
    %4087 = vmatpush.bf16.msra.mxu0 %v3960
    %4088 = vmatpush.bf16.msra.mxu0 %v3959
    %4089 = vmatpush.bf16.msra.mxu0 %v3958
    %4090 = vmatpush.bf16.msra.mxu0 %v3957
    %4091 = vmatpush.bf16.msra.mxu0 %v3956
    %4092 = vmatpush.bf16.msra.mxu0 %v3955
    %4093 = vmatpush.bf16.msra.mxu0 %v3954
    %4094 = vmatmul.bf16.gmra.mxu0 %v3579
    %v4095 = vpop.f32.mrf.mxu0
    %v4096 = vadd.f32 %v4083, %v4095
    %v4097 = vpop.f32.mrf.mxu0
    %4098 = vdwg.mxu0
    %4099 = vmatpush.bf16.msra.mxu0 %v3969
    %4100 = vmatpush.bf16.msra.mxu0 %v3968
    %4101 = vmatpush.bf16.msra.mxu0 %v3967
    %4102 = vmatpush.bf16.msra.mxu0 %v3966
    %4103 = vmatpush.bf16.msra.mxu0 %v3965
    %4104 = vmatpush.bf16.msra.mxu0 %v3964
    %4105 = vmatpush.bf16.msra.mxu0 %v3963
    %4106 = vmatpush.bf16.msra.mxu0 %v3962
    %4107 = vmatmul.bf16.gmra.mxu0 %v3580
    %v4108 = vpop.f32.mrf.mxu0
    %v4109 = vadd.f32 %v4096, %v4108
    %v4110 = vpop.f32.mrf.mxu0
    %4111 = vdwg.mxu0
    %4112 = vmatpush.bf16.msra.mxu0 %v3977
    %4113 = vmatpush.bf16.msra.mxu0 %v3976
    %4114 = vmatpush.bf16.msra.mxu0 %v3975
    %4115 = vmatpush.bf16.msra.mxu0 %v3974
    %4116 = vmatpush.bf16.msra.mxu0 %v3973
    %4117 = vmatpush.bf16.msra.mxu0 %v3972
    %4118 = vmatpush.bf16.msra.mxu0 %v3971
    %4119 = vmatpush.bf16.msra.mxu0 %v3970
    %4120 = vmatmul.bf16.gmra.mxu0 %v3581
    %v4121 = vpop.f32.mrf.mxu0
    %v4122 = vadd.f32 %v4109, %v4121
    %v4123 = vpop.f32.mrf.mxu0
    %4124 = vdwg.mxu0
    %4125 = vst [vmem:[#allocation16] sm:$0xff] %v4122
    // Predicated region
    $region58: #{_masse_call.1} parent=1 // pred_check
      _
    $region59: #{_masse_call.1} parent=1 // pred_check_branch
      %4127 = sbr.rel (0) target = $region61
    $region60: #{_masse_call.1} parent=1 // pred_region
      %4129 = vsyncadd [#allocation6], 0
      %s4131 = sshll.u32 [#allocation16], 4
      %s4132 = int_to_ptr.vmem [resolvable:$true] %s4131
      %s4133 = sshll.u32 %s8, 4
      %s4134 = int_to_ptr.hbm [resolvable:$true] %s4133
      %4136 = dma.vmem_to_hbm [thread:$0]  %s4132, 128, %s4134, [#allocation6]
    $region61: #{_masse_call.1} parent=1 // pred_fallthru
      _
    // Predicated region
    $region62: #{_masse_call.1} parent=1 // pred_check
      _
    $region63: #{_masse_call.1} parent=1 // pred_check_branch
      %4138 = sbr.rel (0) target = $region65
    $region64: #{_masse_call.1} parent=1 // pred_region
      %4140 = dma.done [#allocation6], 128
    $region65: #{_masse_call.1} parent=1 // pred_fallthru
      _
    %4141 = vsyncpa [#allocation5], 1
    %4142 = vsyncpa [#allocation8], 1
    %4143 = vsyncpa [#allocation11], 1
    %4144 = vsyncpa [#allocation14], 1
    %4145 = vsyncpa [#allocation6], 1

</llo_original>
